<compile_context>
chip_gen: v6e
topology: v6e:2x2x1
jax: 0.10.0
libtpu: 0.0.40
codegen_flags: <defaults>
</compile_context>

<pallas_src>
import functools

import jax
import jax.numpy as jnp
from jax.experimental import pallas as pl
from jax.experimental.pallas import tpu as pltpu


# K widths <= this run as a single reduction step (no k grid axis / scratch).
_SINGLE_K_MAX = 2048
# K-tile used when a reduction grid axis is needed (e.g. the 31104-wide FC).
_TK = 512


def _ru(x, m):
    return (x + m - 1) // m * m


def _apply_act(y, act):
    if act == "relu":
        return jnp.maximum(y, 0.0)
    return y


# ----------------------------- Pallas kernels ------------------------------

def _mm_single_kernel(a_ref, b_ref, bias_ref, o_ref, *, act):
    """Single-shot matmul (full K in one block): bf16 in, f32 acc, fused
    bias + activation epilogue."""
    y = jnp.dot(a_ref[...], b_ref[...], preferred_element_type=jnp.float32)
    y = y + bias_ref[...]
    o_ref[...] = _apply_act(y, act).astype(o_ref.dtype)


def _mm_reduce_kernel(a_ref, b_ref, bias_ref, o_ref, acc_ref, *, act, nsteps):
    """K-tiled matmul with f32 VMEM accumulator (only when K > _SINGLE_K_MAX)."""
    k = pl.program_id(2)

    @pl.when(k == 0)
    def _():
        acc_ref[...] = jnp.zeros_like(acc_ref)

    acc_ref[...] += jnp.dot(a_ref[...], b_ref[...],
                            preferred_element_type=jnp.float32)

    @pl.when(k == nsteps - 1)
    def _():
        y = acc_ref[...] + bias_ref[...]
        o_ref[...] = _apply_act(y, act).astype(o_ref.dtype)


def matmul_bias_act(a, w_p, bias_p, n_out, act="none", out_dtype=jnp.bfloat16,
                    tm=256, tn=256):
    """act(a @ w + bias) with weights pre-padded/cast by prep_params.

    a      : (M, K)   activations (any float dtype; cast to bf16 inside).
    w_p    : (Kp, Np) pre-padded bf16 weight.
    bias_p : (1, Np)  pre-padded f32 bias.
    n_out  : true output width; result sliced to (M, n_out).
    """
    M, K = a.shape
    Kp, Np = w_p.shape
    assert Kp >= K and Np >= n_out

    # M tiling: never pad tiny M up to 128; prefer a tile that divides M.
    tm = min(tm, _ru(M, 16))
    for cand in (256, 128):
        if cand <= tm and M % cand == 0:
            tm = cand
            break
    Mp = _ru(M, tm)

    # N tiling: Np is pre-padded to 128 or a multiple of 256.
    tn = min(tn, Np)
    assert Np % tn == 0

    a_p = a
    if Mp != M or Kp != K:
        a_p = jnp.pad(a, ((0, Mp - M), (0, Kp - K)))
    a_p = a_p.astype(jnp.bfloat16)

    if Kp <= _SINGLE_K_MAX:
        out = pl.pallas_call(
            functools.partial(_mm_single_kernel, act=act),
            out_shape=jax.ShapeDtypeStruct((Mp, Np), out_dtype),
            grid=(Mp // tm, Np // tn),
            in_specs=[
                pl.BlockSpec((tm, Kp), lambda i, j: (i, 0)),
                pl.BlockSpec((Kp, tn), lambda i, j: (0, j)),
                pl.BlockSpec((1, tn), lambda i, j: (0, j)),
            ],
            out_specs=pl.BlockSpec((tm, tn), lambda i, j: (i, j)),
            compiler_params=pltpu.CompilerParams(
                dimension_semantics=("parallel", "parallel")),
        )(a_p, w_p, bias_p)
    else:
        assert Kp % _TK == 0
        nsteps = Kp // _TK
        out = pl.pallas_call(
            functools.partial(_mm_reduce_kernel, act=act, nsteps=nsteps),
            out_shape=jax.ShapeDtypeStruct((Mp, Np), out_dtype),
            grid=(Mp // tm, Np // tn, nsteps),
            in_specs=[
                pl.BlockSpec((tm, _TK), lambda i, j, k: (i, k)),
                pl.BlockSpec((_TK, tn), lambda i, j, k: (k, j)),
                pl.BlockSpec((1, tn), lambda i, j, k: (0, j)),
            ],
            out_specs=pl.BlockSpec((tm, tn), lambda i, j, k: (i, j)),
            scratch_shapes=[pltpu.VMEM((tm, tn), jnp.float32)],
            compiler_params=pltpu.CompilerParams(
                dimension_semantics=("parallel", "parallel", "arbitrary")),
        )(a_p, w_p, bias_p)

    return out[:M, :n_out]


# --------------------------- conv / glue helpers ----------------------------

def _im2col_3x3(x):
    """3x3, stride 1, pad 1 patch extraction (JAX glue, bf16 to halve traffic)."""
    B, H, W, C = x.shape
    xp = jnp.pad(x, ((0, 0), (1, 1), (1, 1), (0, 0)))
    cols = jnp.concatenate(
        [xp[:, dy:dy + H, dx:dx + W, :] for dy in range(3) for dx in range(3)],
        axis=-1)
    return cols.reshape(B * H * W, 9 * C)


def conv3x3_bias_act(x, w_p, bias_p, cout, act):
    B, H, W, _ = x.shape
    cols = _im2col_3x3(x.astype(jnp.bfloat16))
    y = matmul_bias_act(cols, w_p, bias_p, cout, act=act)
    return y.reshape(B, H, W, cout)


# --------------------------- parameter preparation --------------------------

def _prep_matmul_weight(w_kn, bias):
    """Pad / cast a (K, N) weight + bias once (done outside the forward)."""
    K, N = w_kn.shape
    Kp = _ru(K, 128)
    if Kp > _SINGLE_K_MAX:
        Kp = _ru(K, _TK)
    Np = _ru(N, 128)
    if Np > 256:
        Np = _ru(N, 256)
    w_p = jnp.pad(w_kn.astype(jnp.float32),
                  ((0, Kp - K), (0, Np - N))).astype(jnp.bfloat16)
    if bias is None:
        bias = jnp.zeros((N,), jnp.float32)
    b_p = jnp.pad(bias.astype(jnp.float32), (0, Np - N)).reshape(1, Np)
    return w_p, b_p


def _prep_conv3x3(w_oihw, bias):
    cout, cin, kh, kw = w_oihw.shape
    w_kn = jnp.transpose(w_oihw, (2, 3, 1, 0)).reshape(kh * kw * cin, cout)
    return _prep_matmul_weight(w_kn, bias)


def prep_params(raw, pooled_hw, eps=1e-5):
    """Fold eval-mode BN into conv1; pre-transpose / pad / cast all weights."""
    Ph, Pw = pooled_hw
    pp = {}
    # vgg19_bn features[0:3] = Conv(3,64,k3,p1) -> BN(64) -> ReLU.
    # Eval-mode BN (running statistics) folded into the conv weights/bias.
    # TODO(synk): training-mode BN (batch statistics) not implemented; this
    # pretrained classifier is used in eval() mode in MopNet.
    scale = raw["bn_gamma"] / jnp.sqrt(raw["bn_var"] + eps)
    w1 = raw["feat_conv_w"] * scale[:, None, None, None]
    b1 = (raw["feat_conv_b"] - raw["bn_mean"]) * scale + raw["bn_beta"]
    pp["conv1_w"], pp["conv1_b"] = _prep_conv3x3(w1, b1)
    pp["conv16_w"], pp["conv16_b"] = _prep_conv3x3(raw["conv16_w"],
                                                   raw["conv16_b"])
    # dense_classifier: PyTorch flattens the pooled map in (C,H,W) order; we
    # flatten in (H,W,C) order, so reorder the weight columns once here.
    n_hidden, fc_in = raw["fc1_w"].shape
    assert fc_in == 24 * Ph * Pw
    w_fc1 = (raw["fc1_w"].reshape(n_hidden, 24, Ph, Pw)
             .transpose(0, 2, 3, 1).reshape(n_hidden, fc_in))
    pp["fc1_w"], pp["fc1_b"] = _prep_matmul_weight(w_fc1.T, raw["fc1_b"])
    pp["fc2_w"], pp["fc2_b"] = _prep_matmul_weight(raw["fc2_w"].T,
                                                   raw["fc2_b"])
    return pp


# ------------------------------ full forward --------------------------------

def vgg19ca_forward(pp, x_nchw):
    """x_nchw: (B, 3, H, W) float32.  Returns (B, 2) float32 logits."""
    x = jnp.transpose(x_nchw, (0, 2, 3, 1))                 # NHWC
    B, H, W, _ = x.shape
    # feature (conv + folded BN + ReLU) and conv16 + ReLU — fused matmuls.
    f = conv3x3_bias_act(x, pp["conv1_w"], pp["conv1_b"], 64, act="relu")
    f = conv3x3_bias_act(f, pp["conv16_w"], pp["conv16_b"], 24, act="relu")
    # F.avg_pool2d(kernel_size=7): stride 7, floor mode.  Tiny reduction over
    # a ~B*H*W*24 map; done as JAX reshape/mean glue (not worth a kernel).
    Ph, Pw = H // 7, W // 7
    f = f[:, :Ph * 7, :Pw * 7, :].astype(jnp.float32)
    pooled = f.reshape(B, Ph, 7, Pw, 7, 24).mean(axis=(2, 4))
    flat = pooled.reshape(B, Ph * Pw * 24)   # NHWC flatten (fc1 cols reordered)
    h = matmul_bias_act(flat, pp["fc1_w"], pp["fc1_b"], 512, act="relu")
    out = matmul_bias_act(h, pp["fc2_w"], pp["fc2_b"], 2, act="none",
                          out_dtype=jnp.float32)
    return out


# ------------------------------ parameters ----------------------------------

def init_raw_params(key, pooled_hw):
    """PyTorch-layout parameters with the module's layer shapes.

    TODO(synk): torchvision vgg19_bn pretrained weights cannot be loaded here
    (no files / network); shapes match the module, values are random.
    """
    Ph, Pw = pooled_hw
    fc_in = 24 * Ph * Pw
    ks = jax.random.split(key, 12)

    def nrm(k, shape, scale=0.05):
        return jax.random.normal(k, shape, jnp.float32) * scale

    return {
        "feat_conv_w": nrm(ks[0], (64, 3, 3, 3)),
        "feat_conv_b": nrm(ks[1], (64,), 0.01),
        "bn_gamma": 1.0 + 0.1 * jax.random.normal(ks[2], (64,), jnp.float32),
        "bn_beta": nrm(ks[3], (64,), 0.01),
        "bn_mean": nrm(ks[4], (64,), 0.05),
        "bn_var": 1.0 + jax.random.uniform(ks[5], (64,), jnp.float32),
        "conv16_w": nrm(ks[6], (24, 64, 3, 3)),
        "conv16_b": nrm(ks[7], (24,), 0.01),
        "fc1_w": nrm(ks[8], (512, fc_in), 0.02),
        "fc1_b": nrm(ks[9], (512,), 0.01),
        "fc2_w": nrm(ks[10], (2, 512), 0.02),
        "fc2_b": nrm(ks[11], (2,), 0.01),
    }


if __name__ == "__main__":
    key = jax.random.PRNGKey(0)
    kp, kx = jax.random.split(key)

    # The original module hard-codes Linear(31104, 512), which implies 252x252
    # inputs (24 * 36 * 36).  For a fast self-test we use 56x56 and size the
    # first Linear consistently (24 * 8 * 8 = 1536); every other layer shape
    # matches the PyTorch module exactly.
    B, H, W = 2, 56, 56
    pooled_hw = (H // 7, W // 7)

    raw = init_raw_params(kp, pooled_hw)
    params = prep_params(raw, pooled_hw)
    x = jax.random.normal(kx, (B, 3, H, W), jnp.float32)

    fwd = jax.jit(vgg19ca_forward)
    out = jax.block_until_ready(fwd(params, x))

    assert out.shape == (B, 2), out.shape
    assert out.dtype == jnp.float32
    assert bool(jnp.all(jnp.isfinite(out)))
    print("KERNEL_OK")
</pallas_src>

<mosaic_0001>
module attributes {stable_mosaic.version = 11 : i64} {
  func.func @_mm_single_kernel(%arg0: i32, %arg1: i32, %arg2: memref<128x128xbf16, #tpu.memory_space<vmem>>, %arg3: memref<128x128xbf16, #tpu.memory_space<vmem>>, %arg4: memref<1x128xf32, #tpu.memory_space<vmem>>, %arg5: memref<128x128xbf16, #tpu.memory_space<vmem>>) attributes {dimension_semantics = [#tpu.dimension_semantics<parallel>, #tpu.dimension_semantics<parallel>], iteration_bounds = array<i64: 49, 1>, scalar_prefetch = 0 : i64, scratch_operands = 0 : i64, tpu.core_type = #tpu.core_type<tc>, window_params = [{transform_indices = @transform_0, window_bounds = array<i64: 128, 128>}, {transform_indices = @transform_1, window_bounds = array<i64: 128, 128>}, {transform_indices = @transform_2, window_bounds = array<i64: 1, 128>}, {transform_indices = @transform_3, window_bounds = array<i64: 128, 128>}]} {
    %c0 = arith.constant 0 : index
    %c0_0 = arith.constant 0 : index
    %0 = vector.load %arg2[%c0, %c0_0] : memref<128x128xbf16, #tpu.memory_space<vmem>>, vector<128x128xbf16>
    %c0_1 = arith.constant 0 : index
    %c0_2 = arith.constant 0 : index
    %1 = vector.load %arg3[%c0_1, %c0_2] : memref<128x128xbf16, #tpu.memory_space<vmem>>, vector<128x128xbf16>
    %cst = arith.constant dense<0.000000e+00> : vector<128x128xf32>
    %2 = tpu.matmul %0, %1, %cst {dimension_numbers = #tpu.dot_dimension_numbers<[1], [0], [0], [1], [0, 0, 1, 1], [], []>} : vector<128x128xbf16>, vector<128x128xbf16>, vector<128x128xf32> -> vector<128x128xf32>
    %c0_3 = arith.constant 0 : index
    %c0_4 = arith.constant 0 : index
    %3 = vector.load %arg4[%c0_3, %c0_4] : memref<1x128xf32, #tpu.memory_space<vmem>>, vector<1x128xf32>
    %4 = vector.broadcast %3 : vector<1x128xf32> to vector<128x128xf32>
    %5 = arith.addf %2, %4 : vector<128x128xf32>
    %cst_5 = arith.constant 0.000000e+00 : f32
    %6 = vector.broadcast %cst_5 : f32 to vector<128x128xf32>
    %7 = arith.maximumf %5, %6 : vector<128x128xf32>
    %8 = arith.truncf %7 : vector<128x128xf32> to vector<128x128xbf16>
    %c0_6 = arith.constant 0 : index
    %c0_7 = arith.constant 0 : index
    %9 = vector.load %arg5[%c0_6, %c0_7] : memref<128x128xbf16, #tpu.memory_space<vmem>>, vector<128x128xbf16>
    tpu.vector_store %arg5[%c0_6, %c0_7], %8 {strides = array<i32>} : memref<128x128xbf16, #tpu.memory_space<vmem>>, vector<128x128xbf16>,
    return
  }
  func.func @transform_0(%arg0: i32, %arg1: i32) -> (i32, i32) {
    %c0_i32 = arith.constant 0 : i32
    %c0_i32_0 = arith.constant 0 : i32
    return %arg0, %c0_i32 : i32, i32
  }
  func.func @transform_1(%arg0: i32, %arg1: i32) -> (i32, i32) {
    %c0_i32 = arith.constant 0 : i32
    %c0_i32_0 = arith.constant 0 : i32
    return %c0_i32, %arg1 : i32, i32
  }
  func.func @transform_2(%arg0: i32, %arg1: i32) -> (i32, i32) {
    %c0_i32 = arith.constant 0 : i32
    %c0_i32_0 = arith.constant 0 : i32
    return %c0_i32, %arg1 : i32, i32
  }
  func.func @transform_3(%arg0: i32, %arg1: i32) -> (i32, i32) {
    %c0_i32 = arith.constant 0 : i32
    return %arg0, %arg1 : i32, i32
  }
}

module attributes {stable_mosaic.version = 11 : i64} {
  func.func @_mm_single_kernel(%arg0: i32, %arg1: i32, %arg2: memref<128x640xbf16, #tpu.memory_space<vmem>>, %arg3: memref<640x128xbf16, #tpu.memory_space<vmem>>, %arg4: memref<1x128xf32, #tpu.memory_space<vmem>>, %arg5: memref<128x128xbf16, #tpu.memory_space<vmem>>) attributes {dimension_semantics = [#tpu.dimension_semantics<parallel>, #tpu.dimension_semantics<parallel>], iteration_bounds = array<i64: 49, 1>, scalar_prefetch = 0 : i64, scratch_operands = 0 : i64, tpu.core_type = #tpu.core_type<tc>, window_params = [{transform_indices = @transform_0, window_bounds = array<i64: 128, 640>}, {transform_indices = @transform_1, window_bounds = array<i64: 640, 128>}, {transform_indices = @transform_2, window_bounds = array<i64: 1, 128>}, {transform_indices = @transform_3, window_bounds = array<i64: 128, 128>}]} {
    %c0 = arith.constant 0 : index
    %c0_0 = arith.constant 0 : index
    %0 = vector.load %arg2[%c0, %c0_0] : memref<128x640xbf16, #tpu.memory_space<vmem>>, vector<128x640xbf16>
    %c0_1 = arith.constant 0 : index
    %c0_2 = arith.constant 0 : index
    %1 = vector.load %arg3[%c0_1, %c0_2] : memref<640x128xbf16, #tpu.memory_space<vmem>>, vector<640x128xbf16>
    %cst = arith.constant dense<0.000000e+00> : vector<128x128xf32>
    %2 = tpu.matmul %0, %1, %cst {dimension_numbers = #tpu.dot_dimension_numbers<[1], [0], [0], [1], [0, 0, 1, 1], [], []>} : vector<128x640xbf16>, vector<640x128xbf16>, vector<128x128xf32> -> vector<128x128xf32>
    %c0_3 = arith.constant 0 : index
    %c0_4 = arith.constant 0 : index
    %3 = vector.load %arg4[%c0_3, %c0_4] : memref<1x128xf32, #tpu.memory_space<vmem>>, vector<1x128xf32>
    %4 = vector.broadcast %3 : vector<1x128xf32> to vector<128x128xf32>
    %5 = arith.addf %2, %4 : vector<128x128xf32>
    %cst_5 = arith.constant 0.000000e+00 : f32
    %6 = vector.broadcast %cst_5 : f32 to vector<128x128xf32>
    %7 = arith.maximumf %5, %6 : vector<128x128xf32>
    %8 = arith.truncf %7 : vector<128x128xf32> to vector<128x128xbf16>
    %c0_6 = arith.constant 0 : index
    %c0_7 = arith.constant 0 : index
    %9 = vector.load %arg5[%c0_6, %c0_7] : memref<128x128xbf16, #tpu.memory_space<vmem>>, vector<128x128xbf16>
    tpu.vector_store %arg5[%c0_6, %c0_7], %8 {strides = array<i32>} : memref<128x128xbf16, #tpu.memory_space<vmem>>, vector<128x128xbf16>,
    return
  }
  func.func @transform_0(%arg0: i32, %arg1: i32) -> (i32, i32) {
    %c0_i32 = arith.constant 0 : i32
    %c0_i32_0 = arith.constant 0 : i32
    return %arg0, %c0_i32 : i32, i32
  }
  func.func @transform_1(%arg0: i32, %arg1: i32) -> (i32, i32) {
    %c0_i32 = arith.constant 0 : i32
    %c0_i32_0 = arith.constant 0 : i32
    return %c0_i32, %arg1 : i32, i32
  }
  func.func @transform_2(%arg0: i32, %arg1: i32) -> (i32, i32) {
    %c0_i32 = arith.constant 0 : i32
    %c0_i32_0 = arith.constant 0 : i32
    return %c0_i32, %arg1 : i32, i32
  }
  func.func @transform_3(%arg0: i32, %arg1: i32) -> (i32, i32) {
    %c0_i32 = arith.constant 0 : i32
    return %arg0, %arg1 : i32, i32
  }
}

module attributes {stable_mosaic.version = 11 : i64} {
  func.func @_mm_single_kernel(%arg0: i32, %arg1: i32, %arg2: memref<16x1536xbf16, #tpu.memory_space<vmem>>, %arg3: memref<1536x256xbf16, #tpu.memory_space<vmem>>, %arg4: memref<1x256xf32, #tpu.memory_space<vmem>>, %arg5: memref<16x256xbf16, #tpu.memory_space<vmem>>) attributes {dimension_semantics = [#tpu.dimension_semantics<parallel>, #tpu.dimension_semantics<parallel>], iteration_bounds = array<i64: 1, 2>, scalar_prefetch = 0 : i64, scratch_operands = 0 : i64, tpu.core_type = #tpu.core_type<tc>, window_params = [{transform_indices = @transform_0, window_bounds = array<i64: 16, 1536>}, {transform_indices = @transform_1, window_bounds = array<i64: 1536, 256>}, {transform_indices = @transform_2, window_bounds = array<i64: 1, 256>}, {transform_indices = @transform_3, window_bounds = array<i64: 16, 256>}]} {
    %c0 = arith.constant 0 : index
    %c0_0 = arith.constant 0 : index
    %0 = vector.load %arg2[%c0, %c0_0] : memref<16x1536xbf16, #tpu.memory_space<vmem>>, vector<16x1536xbf16>
    %c0_1 = arith.constant 0 : index
    %c0_2 = arith.constant 0 : index
    %1 = vector.load %arg3[%c0_1, %c0_2] : memref<1536x256xbf16, #tpu.memory_space<vmem>>, vector<1536x256xbf16>
    %cst = arith.constant dense<0.000000e+00> : vector<16x256xf32>
    %2 = tpu.matmul %0, %1, %cst {dimension_numbers = #tpu.dot_dimension_numbers<[1], [0], [0], [1], [0, 0, 1, 1], [], []>} : vector<16x1536xbf16>, vector<1536x256xbf16>, vector<16x256xf32> -> vector<16x256xf32>
    %c0_3 = arith.constant 0 : index
    %c0_4 = arith.constant 0 : index
    %3 = vector.load %arg4[%c0_3, %c0_4] : memref<1x256xf32, #tpu.memory_space<vmem>>, vector<1x256xf32>
    %4 = vector.broadcast %3 : vector<1x256xf32> to vector<16x256xf32>
    %5 = arith.addf %2, %4 : vector<16x256xf32>
    %cst_5 = arith.constant 0.000000e+00 : f32
    %6 = vector.broadcast %cst_5 : f32 to vector<16x256xf32>
    %7 = arith.maximumf %5, %6 : vector<16x256xf32>
    %8 = arith.truncf %7 : vector<16x256xf32> to vector<16x256xbf16>
    %c0_6 = arith.constant 0 : index
    %c0_7 = arith.constant 0 : index
    %9 = vector.load %arg5[%c0_6, %c0_7] : memref<16x256xbf16, #tpu.memory_space<vmem>>, vector<16x256xbf16>
    tpu.vector_store %arg5[%c0_6, %c0_7], %8 {strides = array<i32>} : memref<16x256xbf16, #tpu.memory_space<vmem>>, vector<16x256xbf16>,
    return
  }
  func.func @transform_0(%arg0: i32, %arg1: i32) -> (i32, i32) {
    %c0_i32 = arith.constant 0 : i32
    %c0_i32_0 = arith.constant 0 : i32
    return %arg0, %c0_i32 : i32, i32
  }
  func.func @transform_1(%arg0: i32, %arg1: i32) -> (i32, i32) {
    %c0_i32 = arith.constant 0 : i32
    %c0_i32_0 = arith.constant 0 : i32
    return %c0_i32, %arg1 : i32, i32
  }
  func.func @transform_2(%arg0: i32, %arg1: i32) -> (i32, i32) {
    %c0_i32 = arith.constant 0 : i32
    %c0_i32_0 = arith.constant 0 : i32
    return %c0_i32, %arg1 : i32, i32
  }
  func.func @transform_3(%arg0: i32, %arg1: i32) -> (i32, i32) {
    %c0_i32 = arith.constant 0 : i32
    return %arg0, %arg1 : i32, i32
  }
}

module attributes {stable_mosaic.version = 11 : i64} {
  func.func @_mm_single_kernel(%arg0: i32, %arg1: i32, %arg2: memref<16x512xbf16, #tpu.memory_space<vmem>>, %arg3: memref<512x128xbf16, #tpu.memory_space<vmem>>, %arg4: memref<1x128xf32, #tpu.memory_space<vmem>>, %arg5: memref<16x128xf32, #tpu.memory_space<vmem>>) attributes {dimension_semantics = [#tpu.dimension_semantics<parallel>, #tpu.dimension_semantics<parallel>], iteration_bounds = array<i64: 1, 1>, scalar_prefetch = 0 : i64, scratch_operands = 0 : i64, tpu.core_type = #tpu.core_type<tc>, window_params = [{transform_indices = @transform_0, window_bounds = array<i64: 16, 512>}, {transform_indices = @transform_1, window_bounds = array<i64: 512, 128>}, {transform_indices = @transform_2, window_bounds = array<i64: 1, 128>}, {transform_indices = @transform_3, window_bounds = array<i64: 16, 128>}]} {
    %c0 = arith.constant 0 : index
    %c0_0 = arith.constant 0 : index
    %0 = vector.load %arg2[%c0, %c0_0] : memref<16x512xbf16, #tpu.memory_space<vmem>>, vector<16x512xbf16>
    %c0_1 = arith.constant 0 : index
    %c0_2 = arith.constant 0 : index
    %1 = vector.load %arg3[%c0_1, %c0_2] : memref<512x128xbf16, #tpu.memory_space<vmem>>, vector<512x128xbf16>
    %cst = arith.constant dense<0.000000e+00> : vector<16x128xf32>
    %2 = tpu.matmul %0, %1, %cst {dimension_numbers = #tpu.dot_dimension_numbers<[1], [0], [0], [1], [0, 0, 1, 1], [], []>} : vector<16x512xbf16>, vector<512x128xbf16>, vector<16x128xf32> -> vector<16x128xf32>
    %c0_3 = arith.constant 0 : index
    %c0_4 = arith.constant 0 : index
    %3 = vector.load %arg4[%c0_3, %c0_4] : memref<1x128xf32, #tpu.memory_space<vmem>>, vector<1x128xf32>
    %4 = vector.broadcast %3 : vector<1x128xf32> to vector<16x128xf32>
    %5 = arith.addf %2, %4 : vector<16x128xf32>
    %c0_5 = arith.constant 0 : index
    %c0_6 = arith.constant 0 : index
    %6 = vector.load %arg5[%c0_5, %c0_6] : memref<16x128xf32, #tpu.memory_space<vmem>>, vector<16x128xf32>
    tpu.vector_store %arg5[%c0_5, %c0_6], %5 {strides = array<i32>} : memref<16x128xf32, #tpu.memory_space<vmem>>, vector<16x128xf32>,
    return
  }
  func.func @transform_0(%arg0: i32, %arg1: i32) -> (i32, i32) {
    %c0_i32 = arith.constant 0 : i32
    %c0_i32_0 = arith.constant 0 : i32
    return %arg0, %c0_i32 : i32, i32
  }
  func.func @transform_1(%arg0: i32, %arg1: i32) -> (i32, i32) {
    %c0_i32 = arith.constant 0 : i32
    %c0_i32_0 = arith.constant 0 : i32
    return %c0_i32, %arg1 : i32, i32
  }
  func.func @transform_2(%arg0: i32, %arg1: i32) -> (i32, i32) {
    %c0_i32 = arith.constant 0 : i32
    %c0_i32_0 = arith.constant 0 : i32
    return %c0_i32, %arg1 : i32, i32
  }
  func.func @transform_3(%arg0: i32, %arg1: i32) -> (i32, i32) {
    %c0_i32 = arith.constant 0 : i32
    return %arg0, %arg1 : i32, i32
  }
}

</mosaic_0001>

<llo_original>
// kernel: vgg19ca_forward.4
$region0: #{vgg19ca_forward.4}
  #allocation0 [shape = 'u32[]', space=smem, size = 0x4, offset = 0x4, fixed_abs, tag = 'smem constant byte address 0x4 - core index']
  #allocation1 [shape = 'u32[144,128]{1,0:T(1,128)}', space=vmem, size = 0x12000, scoped, tag = 'internal scratch']
  %s0 = inlined_call_operand.vmem [shape: bf16[6272,128], index: 0, kind: input, shape index: {}]
  %s1 = inlined_call_operand.vmem [shape: bf16[128,128], index: 1, kind: input, shape index: {}]
  %s2 = inlined_call_operand.vmem [shape: f32[1,128], index: 2, kind: input, shape index: {}]
  %s3 = inlined_call_operand.vmem [shape: bf16[6272,128], index: 3, kind: output, shape index: {}]
  %s4 = sld [smem:[#allocation0]]
  $region45: #{vgg19ca_forward.4} parent=0
    _
  %s6 = ssub.s32 1, %s4
  %s7 = scalar_select 0, %s6, %s4
  loop: start=0, step=1, limit=51
  $region2: #{vgg19ca_forward.4} parent=0 // loop_pre_header
    _
  $region3: #{vgg19ca_forward.4} parent=0 // loop_header
    %s9 = sphi 0, %s13
    %p10 = scmp.ge.s32.totalorder %s9, 51
    %s16 = sphi 0, %s28
    %s17 = sphi 0, %s24
    %s18 = sphi 0, %s16
    %s19 = sphi 0, %s17
    %s20 = sphi 0, %s18
    %s21 = sphi 0, %s19
    %s31 = sphi 0, %s33
    %s34 = sphi 0, %s31
    %s35 = sphi 0, %s34
    %s51 = sphi 0, %s35
    %s57 = sphi 0, %s59
    %s60 = sphi 0, %s57
    %s61 = sphi 0, %s60
    %s77 = sphi 0, %s61
    %s83 = sphi 0, %s85
    %s86 = sphi 0, %s83
    %s87 = sphi 0, %s86
    %s103 = sphi 0, %s87
    %s111 = sphi 0, %s113
    %s114 = sphi 0, %s111
    %s115 = sphi 0, %s114
    %s131 = sphi 0, %s115
  $region4: #{vgg19ca_forward.4} parent=0 // loop_header_branch
    %12 = sbr.rel (%p10) target = $region8
  $region5: #{vgg19ca_forward.4} parent=0 // loop_body
    %s14 = ssub.s32 %s9, 1
    %s15 = ssub.s32 %s9, 2
    %s22 = sadd.s32 1, %s17
    %p23 = scmp.ge.s32.totalorder %s22, 1
    %s24 = scalar_select %p23, 0, %s22
    %s25 = sadd.s32 1, %s16
    %s26 = scalar_select %p23, %s25, %s16
    %p27 = scmp.ge.s32.totalorder %s26, 49
    %s28 = scalar_select %p27, 0, %s26
    %s29 = ssub.s32 %s16, %s28
    %p30 = scmp.eq.s32.totalorder %s29, 0
    %s32 = sadd.s32 %s31, 1
    %s33 = scalar_select %p30, %s31, %s32
    %p36 = pneg %p30
    %p37 = scmp.eq.s32.totalorder %s9, 48
    %p38 = por %p36, %p37
    %p39 = scmp.ne.s32.totalorder %s31, %s34
    %p40 = scmp.eq.s32.totalorder %s9, 0
    %p41 = por %p39, %p40
    %p42 = scmp.ne.s32.totalorder %s31, %s34
    %p43 = scmp.eq.s32.totalorder %s14, 48
    %p44 = por %p42, %p43
    %p45 = scmp.ne.s32.totalorder %s34, %s35
    %p46 = scmp.eq.s32.totalorder %s14, 0
    %p47 = por %p45, %p46
    %p48 = scmp.ne.s32.totalorder %s34, %s35
    %p49 = scmp.eq.s32.totalorder %s15, 48
    %p50 = por %p48, %p49
    %p52 = scmp.ne.s32.totalorder %s35, %s51
    %p53 = scmp.eq.s32.totalorder %s15, 0
    %p54 = por %p52, %p53
    %s55 = ssub.s32 %s17, %s24
    %p56 = scmp.eq.s32.totalorder %s55, 0
    %s58 = sadd.s32 %s57, 1
    %s59 = scalar_select %p56, %s57, %s58
    %p62 = pneg %p56
    %p63 = scmp.eq.s32.totalorder %s9, 48
    %p64 = por %p62, %p63
    %p65 = scmp.ne.s32.totalorder %s57, %s60
    %p66 = scmp.eq.s32.totalorder %s9, 0
    %p67 = por %p65, %p66
    %p68 = scmp.ne.s32.totalorder %s57, %s60
    %p69 = scmp.eq.s32.totalorder %s14, 48
    %p70 = por %p68, %p69
    %p71 = scmp.ne.s32.totalorder %s60, %s61
    %p72 = scmp.eq.s32.totalorder %s14, 0
    %p73 = por %p71, %p72
    %p74 = scmp.ne.s32.totalorder %s60, %s61
    %p75 = scmp.eq.s32.totalorder %s15, 48
    %p76 = por %p74, %p75
    %p78 = scmp.ne.s32.totalorder %s61, %s77
    %p79 = scmp.eq.s32.totalorder %s15, 0
    %p80 = por %p78, %p79
    %s81 = ssub.s32 %s17, %s24
    %p82 = scmp.eq.s32.totalorder %s81, 0
    %s84 = sadd.s32 %s83, 1
    %s85 = scalar_select %p82, %s83, %s84
    %p88 = pneg %p82
    %p89 = scmp.eq.s32.totalorder %s9, 48
    %p90 = por %p88, %p89
    %p91 = scmp.ne.s32.totalorder %s83, %s86
    %p92 = scmp.eq.s32.totalorder %s9, 0
    %p93 = por %p91, %p92
    %p94 = scmp.ne.s32.totalorder %s83, %s86
    %p95 = scmp.eq.s32.totalorder %s14, 48
    %p96 = por %p94, %p95
    %p97 = scmp.ne.s32.totalorder %s86, %s87
    %p98 = scmp.eq.s32.totalorder %s14, 0
    %p99 = por %p97, %p98
    %p100 = scmp.ne.s32.totalorder %s86, %s87
    %p101 = scmp.eq.s32.totalorder %s15, 48
    %p102 = por %p100, %p101
    %p104 = scmp.ne.s32.totalorder %s87, %s103
    %p105 = scmp.eq.s32.totalorder %s15, 0
    %p106 = por %p104, %p105
    %s107 = ssub.s32 %s16, %s28
    %s108 = ssub.s32 %s17, %s24
    %s109 = sor.u32 %s107, %s108
    %p110 = scmp.eq.s32.totalorder %s109, 0
    %s112 = sadd.s32 %s111, 1
    %s113 = scalar_select %p110, %s111, %s112
    %p116 = pneg %p110
    %p117 = scmp.eq.s32.totalorder %s9, 48
    %p118 = por %p116, %p117
    %p119 = scmp.ne.s32.totalorder %s111, %s114
    %p120 = scmp.eq.s32.totalorder %s9, 0
    %p121 = por %p119, %p120
    %p122 = scmp.ne.s32.totalorder %s111, %s114
    %p123 = scmp.eq.s32.totalorder %s14, 48
    %p124 = por %p122, %p123
    %p125 = scmp.ne.s32.totalorder %s114, %s115
    %p126 = scmp.eq.s32.totalorder %s14, 0
    %p127 = por %p125, %p126
    %p128 = scmp.ne.s32.totalorder %s114, %s115
    %p129 = scmp.eq.s32.totalorder %s15, 48
    %p130 = por %p128, %p129
    %p132 = scmp.ne.s32.totalorder %s115, %s131
    %p133 = scmp.eq.s32.totalorder %s15, 0
    %p134 = por %p132, %p133
    %p135 = scmp.le.s32.totalorder 1, %s9
    %p136 = scmp.lt.s32.totalorder %s9, 50
    %p137 = pnand %p135, %p136
    %p138 = pneg %p137
    // Predicated region
    $region9: #{vgg19ca_forward.4} parent=5 // pred_check
      _
    $region10: #{vgg19ca_forward.4} parent=5 // pred_check_branch
      %140 = sbr.rel (%p137) target = $region12
    $region11: #{vgg19ca_forward.4} parent=5 // pred_region
      %s141 = ssub.s32 %s9, 1
      // Predicated region
      $region13: #{vgg19ca_forward.4} parent=11 // pred_check
        %p142 = pneg %p73
      $region14: #{vgg19ca_forward.4} parent=11 // pred_check_branch
        %144 = sbr.rel (%p142) target = $region16
      $region15: #{vgg19ca_forward.4} parent=11 // pred_region
        %p145 = scmp.lt.s32.totalorder %s19, 0
        %s146 = scalar_select %p145, %s19, 0
        %s147 = smul.addr %s146, 4
        %s148 = scalar_lea.vmem %s1, %s147
      $region16: #{vgg19ca_forward.4} parent=11 // pred_fallthru
        _
      // Predicated region
      $region17: #{vgg19ca_forward.4} parent=11 // pred_check
        %p149 = pneg %p99
      $region18: #{vgg19ca_forward.4} parent=11 // pred_check_branch
        %151 = sbr.rel (%p149) target = $region20
      $region19: #{vgg19ca_forward.4} parent=11 // pred_region
        %p152 = scmp.lt.s32.totalorder %s19, 0
        %s153 = scalar_select %p152, %s19, 0
        %s154 = scalar_lea.vmem %s2, %s153
      $region20: #{vgg19ca_forward.4} parent=11 // pred_fallthru
        _
    $region12: #{vgg19ca_forward.4} parent=5 // pred_fallthru
      _
    %p155 = scmp.lt.s32.totalorder %s9, 49
    // Predicated region
    $region21: #{vgg19ca_forward.4} parent=5 // pred_check
      %p156 = pneg %p155
    $region22: #{vgg19ca_forward.4} parent=5 // pred_check_branch
      %158 = sbr.rel (%p156) target = $region24
    $region23: #{vgg19ca_forward.4} parent=5 // pred_region
      // Predicated region
      $region25: #{vgg19ca_forward.4} parent=23 // pred_check
        %p159 = pneg %p41
      $region26: #{vgg19ca_forward.4} parent=23 // pred_check_branch
        %161 = sbr.rel (%p159) target = $region28
      $region27: #{vgg19ca_forward.4} parent=23 // pred_region
        %s162 = smul.u32 16, %s16
        %p163 = scmp.lt.s32.totalorder %s162, 783
        %s164 = scalar_select %p163, %s162, 783
        %s165 = smul.addr %s164, 4
        %s166 = scalar_lea.vmem %s0, %s165
        %s167 = smul.u32 16, %s16
      $region28: #{vgg19ca_forward.4} parent=23 // pred_fallthru
        _
    $region24: #{vgg19ca_forward.4} parent=5 // pred_fallthru
      _
    %p168 = scmp.le.s32.totalorder 1, %s9
    %p169 = scmp.lt.s32.totalorder %s9, 50
    %p170 = pnand %p168, %p169
    %p171 = pneg %p170
    // Predicated region
    $region29: #{vgg19ca_forward.4} parent=5 // pred_check
      _
    $region30: #{vgg19ca_forward.4} parent=5 // pred_check_branch
      %173 = sbr.rel (%p170) target = $region32
    $region31: #{vgg19ca_forward.4} parent=5 // pred_region
      %s174 = ssub.s32 %s9, 1
      %s175 = smul.u32 16, %s18
      %p176 = scmp.lt.s32.totalorder %s175, 783
      %s177 = scalar_select %p176, %s175, 783
      %s178 = smul.addr %s177, 4
      %s179 = scalar_lea.vmem %s0, %s178
      %p180 = pneg %p47
      %p181 = pneg %p44
      %p182 = scmp.lt.s32.totalorder %s19, 0
      %s183 = scalar_select %p182, %s19, 0
      %s184 = smul.addr %s183, 4
      %s185 = scalar_lea.vmem %s1, %s184
      %p186 = pneg %p73
      %p187 = pneg %p70
      %p188 = scmp.lt.s32.totalorder %s19, 0
      %s189 = scalar_select %p188, %s19, 0
      %s190 = scalar_lea.vmem %s2, %s189
      %p191 = pneg %p99
      %p192 = pneg %p96
      %p193 = pneg %p127
      %p194 = pneg %p124
      %s195 = smul.u32 16, %s18
      %p196 = scmp.lt.s32.totalorder %s195, 783
      %s197 = scalar_select %p196, %s195, 783
      %p198 = scmp.lt.s32.totalorder %s19, 0
      %s199 = scalar_select %p198, %s19, 0
      %s200 = sadd.s32 %s199, %s197
      %s201 = smul.addr %s200, 4
      %s202 = scalar_lea.vmem %s3, %s201
      %s203 = smul.u32 16, %s18
      %p204 = scmp.lt.s32.totalorder %s203, 783
      %s205 = scalar_select %p204, %s203, 783
      %s206 = smul.addr %s205, 4
      %s207 = scalar_lea.vmem %s0, %s206
      %s208 = smul.u32 16, %s18
      %p209 = scmp.lt.s32.totalorder %s19, 0
      %s210 = scalar_select %p209, %s19, 0
      %s211 = smul.addr %s210, 4
      %s212 = scalar_lea.vmem %s1, %s211
      %p213 = scmp.lt.s32.totalorder %s19, 0
      %s214 = scalar_select %p213, %s19, 0
      %s215 = scalar_lea.vmem %s2, %s214
      %s216 = smul.u32 16, %s18
      %p217 = scmp.lt.s32.totalorder %s216, 783
      %s218 = scalar_select %p217, %s216, 783
      %p219 = scmp.lt.s32.totalorder %s19, 0
      %s220 = scalar_select %p219, %s19, 0
      %s221 = sadd.s32 %s220, %s218
      %s222 = smul.addr %s221, 4
      %s223 = scalar_lea.vmem %s3, %s222
      %s224 = smul.u32 16, %s18
      %v226 = vld [vmem:[%s207] sm:$0xf]
      %v227 = vld [vmem:[%s207 + $0x4] sm:$0xf]
      %v228 = vld [vmem:[%s207 + $0x8] sm:$0xf]
      %v229 = vld [vmem:[%s207 + $0xc] sm:$0xf]
      %v230 = vld [vmem:[%s207 + $0x10] sm:$0xf]
      %v231 = vld [vmem:[%s207 + $0x14] sm:$0xf]
      %v232 = vld [vmem:[%s207 + $0x18] sm:$0xf]
      %v233 = vld [vmem:[%s207 + $0x1c] sm:$0xf]
      %v234 = vld [vmem:[%s207 + $0x20] sm:$0xf]
      %v235 = vld [vmem:[%s207 + $0x24] sm:$0xf]
      %v236 = vld [vmem:[%s207 + $0x28] sm:$0xf]
      %v237 = vld [vmem:[%s207 + $0x2c] sm:$0xf]
      %v238 = vld [vmem:[%s207 + $0x30] sm:$0xf]
      %v239 = vld [vmem:[%s207 + $0x34] sm:$0xf]
      %v240 = vld [vmem:[%s207 + $0x38] sm:$0xf]
      %v241 = vld [vmem:[%s207 + $0x3c] sm:$0xf]
      %v242 = vld [vmem:[%s212] sm:$0xf]
      %v243 = vld [vmem:[%s212 + $0x4] sm:$0xf]
      %v244 = vld [vmem:[%s212 + $0x8] sm:$0xf]
      %v245 = vld [vmem:[%s212 + $0xc] sm:$0xf]
      %v246 = vld [vmem:[%s212 + $0x10] sm:$0xf]
      %v247 = vld [vmem:[%s212 + $0x14] sm:$0xf]
      %v248 = vld [vmem:[%s212 + $0x18] sm:$0xf]
      %v249 = vld [vmem:[%s212 + $0x1c] sm:$0xf]
      %v250 = vld [vmem:[%s212 + $0x20] sm:$0xf]
      %v251 = vld [vmem:[%s212 + $0x24] sm:$0xf]
      %v252 = vld [vmem:[%s212 + $0x28] sm:$0xf]
      %v253 = vld [vmem:[%s212 + $0x2c] sm:$0xf]
      %v254 = vld [vmem:[%s212 + $0x30] sm:$0xf]
      %v255 = vld [vmem:[%s212 + $0x34] sm:$0xf]
      %v256 = vld [vmem:[%s212 + $0x38] sm:$0xf]
      %v257 = vld [vmem:[%s212 + $0x3c] sm:$0xf]
      %v258 = vld [vmem:[%s215] sm:$0x1]
      %v260 = vlaneseq
      %v261 = vshrl.u32 %v260, 7
      %v262 = vsub.s32 0, %v261
      %v263 = vrot.slane %v258, %v262
      %v281 = vunpack.c.l.b16 %v226
      %v282 = vunpack.c.l.b16 %v227
      %v283 = vunpack.c.l.b16 %v228
      %v284 = vunpack.c.l.b16 %v229
      %v285 = vunpack.c.l.b16 %v230
      %v286 = vunpack.c.l.b16 %v231
      %v287 = vunpack.c.l.b16 %v232
      %v288 = vunpack.c.l.b16 %v233
      %v289 = vunpack.c.l.b16 %v234
      %v290 = vunpack.c.l.b16 %v235
      %v291 = vunpack.c.l.b16 %v236
      %v292 = vunpack.c.l.b16 %v237
      %v293 = vunpack.c.l.b16 %v238
      %v294 = vunpack.c.l.b16 %v239
      %v295 = vunpack.c.l.b16 %v240
      %v296 = vunpack.c.l.b16 %v241
      %v297 = vpack.c.b16 %v282, %v281
      %v298 = vpack.c.b16 %v284, %v283
      %v299 = vpack.c.b16 %v286, %v285
      %v300 = vpack.c.b16 %v288, %v287
      %v301 = vpack.c.b16 %v290, %v289
      %v302 = vpack.c.b16 %v292, %v291
      %v303 = vpack.c.b16 %v294, %v293
      %v304 = vpack.c.b16 %v296, %v295
      %v329 = vunpack.c.l.b16 %v242
      %v330 = vunpack.c.l.b16 %v243
      %v331 = vunpack.c.l.b16 %v244
      %v332 = vunpack.c.l.b16 %v245
      %v333 = vunpack.c.l.b16 %v246
      %v334 = vunpack.c.l.b16 %v247
      %v335 = vunpack.c.l.b16 %v248
      %v336 = vunpack.c.l.b16 %v249
      %v337 = vunpack.c.l.b16 %v250
      %v338 = vunpack.c.l.b16 %v251
      %v339 = vunpack.c.l.b16 %v252
      %v340 = vunpack.c.l.b16 %v253
      %v341 = vunpack.c.l.b16 %v254
      %v342 = vunpack.c.l.b16 %v255
      %v343 = vunpack.c.l.b16 %v256
      %v344 = vunpack.c.l.b16 %v257
      %v345 = vpack.c.b16 %v330, %v329
      %v346 = vpack.c.b16 %v332, %v331
      %v347 = vpack.c.b16 %v334, %v333
      %v348 = vpack.c.b16 %v336, %v335
      %v349 = vpack.c.b16 %v338, %v337
      %v350 = vpack.c.b16 %v340, %v339
      %v351 = vpack.c.b16 %v342, %v341
      %v352 = vpack.c.b16 %v344, %v343
      %361 = vmatprep.subr.bf16.mxu0 0
      %362 = vmatpush1.bf16.msra.mxu0 %v352
      %363 = vmatprep.subr.bf16.mxu0 0
      %364 = vmatpush1.bf16.msra.mxu0 %v351
      %365 = vmatprep.subr.bf16.mxu0 0
      %366 = vmatpush1.bf16.msra.mxu0 %v350
      %367 = vmatprep.subr.bf16.mxu0 0
      %368 = vmatpush1.bf16.msra.mxu0 %v349
      %369 = vmatprep.subr.bf16.mxu0 0
      %370 = vmatpush1.bf16.msra.mxu0 %v348
      %371 = vmatprep.subr.bf16.mxu0 0
      %372 = vmatpush1.bf16.msra.mxu0 %v347
      %373 = vmatprep.subr.bf16.mxu0 0
      %374 = vmatpush1.bf16.msra.mxu0 %v346
      %375 = vmatprep.subr.bf16.mxu0 0
      %376 = vmatpush1.bf16.msra.mxu0 %v345
      %377 = vmatprep.subr.bf16.mxu0 0
      %378 = vmatpush2.bf16.msra.mxu0 0
      %379 = vmatprep.subr.bf16.mxu0 0
      %380 = vmatpush2.bf16.msra.mxu0 0
      %381 = vmatprep.subr.bf16.mxu0 0
      %382 = vmatpush2.bf16.msra.mxu0 0
      %383 = vmatprep.subr.bf16.mxu0 0
      %384 = vmatpush2.bf16.msra.mxu0 0
      %385 = vmatprep.subr.bf16.mxu0 0
      %386 = vmatpush2.bf16.msra.mxu0 0
      %387 = vmatprep.subr.bf16.mxu0 0
      %388 = vmatpush2.bf16.msra.mxu0 0
      %389 = vmatprep.subr.bf16.mxu0 0
      %390 = vmatpush2.bf16.msra.mxu0 0
      %391 = vmatprep.subr.bf16.mxu0 0
      %392 = vmatpush2.bf16.msra.mxu0 0
      %393 = vmatprep.mubr.bf16.mxu0 0
      %394 = vmatmul.mubr.bf16.gmra.mxu0 %v297
      %v395 = vpop.f32.mrf.mxu0
      %v396 = vadd.f32 %v263, %v395
      %v397 = vpop.f32.mrf.mxu0
      %v398 = vpop.f32.mrf.mxu0
      %v399 = vadd.f32 %v263, %v398
      %v400 = vpop.f32.mrf.mxu0
      %401 = vmatprep.mubr.bf16.mxu0 0
      %402 = vmatmul.mubr.bf16.gmra.mxu0 %v298
      %v403 = vpop.f32.mrf.mxu0
      %v404 = vadd.f32 %v263, %v403
      %v405 = vpop.f32.mrf.mxu0
      %v406 = vpop.f32.mrf.mxu0
      %v407 = vadd.f32 %v263, %v406
      %v408 = vpop.f32.mrf.mxu0
      %409 = vmatprep.mubr.bf16.mxu0 0
      %410 = vmatmul.mubr.bf16.gmra.mxu0 %v299
      %v411 = vpop.f32.mrf.mxu0
      %v412 = vadd.f32 %v263, %v411
      %v413 = vpop.f32.mrf.mxu0
      %v414 = vpop.f32.mrf.mxu0
      %v415 = vadd.f32 %v263, %v414
      %v416 = vpop.f32.mrf.mxu0
      %417 = vmatprep.mubr.bf16.mxu0 0
      %418 = vmatmul.mubr.bf16.gmra.mxu0 %v300
      %v419 = vpop.f32.mrf.mxu0
      %v420 = vadd.f32 %v263, %v419
      %v421 = vpop.f32.mrf.mxu0
      %v422 = vpop.f32.mrf.mxu0
      %v423 = vadd.f32 %v263, %v422
      %v424 = vpop.f32.mrf.mxu0
      %425 = vmatprep.mubr.bf16.mxu0 0
      %426 = vmatmul.mubr.bf16.gmra.mxu0 %v301
      %v427 = vpop.f32.mrf.mxu0
      %v428 = vadd.f32 %v263, %v427
      %v429 = vpop.f32.mrf.mxu0
      %v430 = vpop.f32.mrf.mxu0
      %v431 = vadd.f32 %v263, %v430
      %v432 = vpop.f32.mrf.mxu0
      %433 = vmatprep.mubr.bf16.mxu0 0
      %434 = vmatmul.mubr.bf16.gmra.mxu0 %v302
      %v435 = vpop.f32.mrf.mxu0
      %v436 = vadd.f32 %v263, %v435
      %v437 = vpop.f32.mrf.mxu0
      %v438 = vpop.f32.mrf.mxu0
      %v439 = vadd.f32 %v263, %v438
      %v440 = vpop.f32.mrf.mxu0
      %441 = vmatprep.mubr.bf16.mxu0 0
      %442 = vmatmul.mubr.bf16.gmra.mxu0 %v303
      %v443 = vpop.f32.mrf.mxu0
      %v444 = vadd.f32 %v263, %v443
      %v445 = vpop.f32.mrf.mxu0
      %v446 = vpop.f32.mrf.mxu0
      %v447 = vadd.f32 %v263, %v446
      %v448 = vpop.f32.mrf.mxu0
      %449 = vmatprep.mubr.bf16.mxu0 0
      %450 = vmatmul.mubr.bf16.gmra.mxu0 %v304
      %v451 = vpop.f32.mrf.mxu0
      %v452 = vadd.f32 %v263, %v451
      %v453 = vpop.f32.mrf.mxu0
      %v454 = vpop.f32.mrf.mxu0
      %v455 = vadd.f32 %v263, %v454
      %v456 = vpop.f32.mrf.mxu0
      %457 = vdwg.mxu0
      %v458 = vmax.f32 %v396, 0.0
      %v459 = vmax.f32 %v399, 0.0
      %v460 = vmax.f32 %v404, 0.0
      %v461 = vmax.f32 %v407, 0.0
      %v462 = vmax.f32 %v412, 0.0
      %v463 = vmax.f32 %v415, 0.0
      %v464 = vmax.f32 %v420, 0.0
      %v465 = vmax.f32 %v423, 0.0
      %v466 = vmax.f32 %v428, 0.0
      %v467 = vmax.f32 %v431, 0.0
      %v468 = vmax.f32 %v436, 0.0
      %v469 = vmax.f32 %v439, 0.0
      %v470 = vmax.f32 %v444, 0.0
      %v471 = vmax.f32 %v447, 0.0
      %v472 = vmax.f32 %v452, 0.0
      %v473 = vmax.f32 %v455, 0.0
      %v474 = vpack.c.bf16 %v459, %v458
      %v475 = vpack.c.bf16 %v461, %v460
      %v476 = vpack.c.bf16 %v463, %v462
      %v477 = vpack.c.bf16 %v465, %v464
      %v478 = vpack.c.bf16 %v467, %v466
      %v479 = vpack.c.bf16 %v469, %v468
      %v480 = vpack.c.bf16 %v471, %v470
      %v481 = vpack.c.bf16 %v473, %v472
      %v490 = vunpack.c.l.b16 %v474
      %v491 = vunpack.c.h.b16 %v474
      %v492 = vunpack.c.l.b16 %v475
      %v493 = vunpack.c.h.b16 %v475
      %v494 = vunpack.c.l.b16 %v476
      %v495 = vunpack.c.h.b16 %v476
      %v496 = vunpack.c.l.b16 %v477
      %v497 = vunpack.c.h.b16 %v477
      %v498 = vunpack.c.l.b16 %v478
      %v499 = vunpack.c.h.b16 %v478
      %v500 = vunpack.c.l.b16 %v479
      %v501 = vunpack.c.h.b16 %v479
      %v502 = vunpack.c.l.b16 %v480
      %v503 = vunpack.c.h.b16 %v480
      %v504 = vunpack.c.l.b16 %v481
      %v505 = vunpack.c.h.b16 %v481
      %v506 = vpack.c.b16 %v490, %v490
      %v507 = vpack.c.b16 %v491, %v491
      %v508 = vpack.c.b16 %v492, %v492
      %v509 = vpack.c.b16 %v493, %v493
      %v510 = vpack.c.b16 %v494, %v494
      %v511 = vpack.c.b16 %v495, %v495
      %v512 = vpack.c.b16 %v496, %v496
      %v513 = vpack.c.b16 %v497, %v497
      %v514 = vpack.c.b16 %v498, %v498
      %v515 = vpack.c.b16 %v499, %v499
      %v516 = vpack.c.b16 %v500, %v500
      %v517 = vpack.c.b16 %v501, %v501
      %v518 = vpack.c.b16 %v502, %v502
      %v519 = vpack.c.b16 %v503, %v503
      %v520 = vpack.c.b16 %v504, %v504
      %v521 = vpack.c.b16 %v505, %v505
      %538 = vst [vmem:[%s223] sm:$0xf] %v506
      %539 = vst [vmem:[%s223 + $0x4] sm:$0xf] %v507
      %540 = vst [vmem:[%s223 + $0x8] sm:$0xf] %v508
      %541 = vst [vmem:[%s223 + $0xc] sm:$0xf] %v509
      %542 = vst [vmem:[%s223 + $0x10] sm:$0xf] %v510
      %543 = vst [vmem:[%s223 + $0x14] sm:$0xf] %v511
      %544 = vst [vmem:[%s223 + $0x18] sm:$0xf] %v512
      %545 = vst [vmem:[%s223 + $0x1c] sm:$0xf] %v513
      %546 = vst [vmem:[%s223 + $0x20] sm:$0xf] %v514
      %547 = vst [vmem:[%s223 + $0x24] sm:$0xf] %v515
      %548 = vst [vmem:[%s223 + $0x28] sm:$0xf] %v516
      %549 = vst [vmem:[%s223 + $0x2c] sm:$0xf] %v517
      %550 = vst [vmem:[%s223 + $0x30] sm:$0xf] %v518
      %551 = vst [vmem:[%s223 + $0x34] sm:$0xf] %v519
      %552 = vst [vmem:[%s223 + $0x38] sm:$0xf] %v520
      %553 = vst [vmem:[%s223 + $0x3c] sm:$0xf] %v521
      %s554 = smul.u32 16, %s18
      %p555 = scmp.lt.s32.totalorder %s554, 783
      %s556 = scalar_select %p555, %s554, 783
      %p557 = scmp.lt.s32.totalorder %s19, 0
      %s558 = scalar_select %p557, %s19, 0
      %s559 = sadd.s32 %s558, %s556
      %s560 = smul.addr %s559, 4
      %s561 = scalar_lea.vmem %s3, %s560
      // Predicated region
      $region33: #{vgg19ca_forward.4} parent=31 // pred_check
        %p562 = pneg %p124
      $region34: #{vgg19ca_forward.4} parent=31 // pred_check_branch
        %564 = sbr.rel (%p562) target = $region36
      $region35: #{vgg19ca_forward.4} parent=31 // pred_region
        %s565 = smul.u32 16, %s18
      $region36: #{vgg19ca_forward.4} parent=31 // pred_fallthru
        _
    $region32: #{vgg19ca_forward.4} parent=5 // pred_fallthru
      _
    %p566 = scmp.le.s32.totalorder 2, %s9
    // Predicated region
    $region37: #{vgg19ca_forward.4} parent=5 // pred_check
      %p567 = pneg %p566
    $region38: #{vgg19ca_forward.4} parent=5 // pred_check_branch
      %569 = sbr.rel (%p567) target = $region40
    $region39: #{vgg19ca_forward.4} parent=5 // pred_region
      %s570 = ssub.s32 %s9, 2
      // Predicated region
      $region41: #{vgg19ca_forward.4} parent=39 // pred_check
        %p571 = pneg %p130
      $region42: #{vgg19ca_forward.4} parent=39 // pred_check_branch
        %573 = sbr.rel (%p571) target = $region44
      $region43: #{vgg19ca_forward.4} parent=39 // pred_region
        %s574 = smul.u32 16, %s20
        %p575 = scmp.lt.s32.totalorder %s574, 783
        %s576 = scalar_select %p575, %s574, 783
        %p577 = scmp.lt.s32.totalorder %s21, 0
        %s578 = scalar_select %p577, %s21, 0
        %s579 = sadd.s32 %s578, %s576
        %s580 = smul.addr %s579, 4
        %s581 = scalar_lea.vmem %s3, %s580
      $region44: #{vgg19ca_forward.4} parent=39 // pred_fallthru
        _
    $region40: #{vgg19ca_forward.4} parent=5 // pred_fallthru
      _
  $region6: #{vgg19ca_forward.4} parent=0 // loop_footer
    %s13 = sadd.s32 1, %s9
  $region7: #{vgg19ca_forward.4} parent=0 // loop_footer_branch
    %8 = sbr.rel target = $region3
  $region8: #{vgg19ca_forward.4} parent=0 // loop_exit
    _

// kernel: vgg19ca_forward.5
$region0: #{vgg19ca_forward.5}
  #allocation0 [shape = 'u32[]', space=smem, size = 0x4, offset = 0x4, fixed_abs, tag = 'smem constant byte address 0x4 - core index']
  #allocation1 [shape = 'u32[144,128]{1,0:T(1,128)}', space=vmem, size = 0x12000, scoped, tag = 'internal scratch']
  %s0 = inlined_call_operand.vmem [shape: bf16[6272,640], index: 0, kind: input, shape index: {}]
  %s1 = inlined_call_operand.vmem [shape: bf16[640,128], index: 1, kind: input, shape index: {}]
  %s2 = inlined_call_operand.vmem [shape: f32[1,128], index: 2, kind: input, shape index: {}]
  %s3 = inlined_call_operand.vmem [shape: bf16[6272,128], index: 3, kind: output, shape index: {}]
  %s4 = sld [smem:[#allocation0]]
  $region45: #{vgg19ca_forward.5} parent=0
    _
  %s6 = ssub.s32 1, %s4
  %s7 = scalar_select 0, %s6, %s4
  loop: start=0, step=1, limit=51
  $region2: #{vgg19ca_forward.5} parent=0 // loop_pre_header
    _
  $region3: #{vgg19ca_forward.5} parent=0 // loop_header
    %s9 = sphi 0, %s13
    %p10 = scmp.ge.s32.totalorder %s9, 51
    %s16 = sphi 0, %s28
    %s17 = sphi 0, %s24
    %s18 = sphi 0, %s16
    %s19 = sphi 0, %s17
    %s20 = sphi 0, %s18
    %s21 = sphi 0, %s19
    %s31 = sphi 0, %s33
    %s34 = sphi 0, %s31
    %s35 = sphi 0, %s34
    %s51 = sphi 0, %s35
    %s57 = sphi 0, %s59
    %s60 = sphi 0, %s57
    %s61 = sphi 0, %s60
    %s77 = sphi 0, %s61
    %s83 = sphi 0, %s85
    %s86 = sphi 0, %s83
    %s87 = sphi 0, %s86
    %s103 = sphi 0, %s87
    %s111 = sphi 0, %s113
    %s114 = sphi 0, %s111
    %s115 = sphi 0, %s114
    %s131 = sphi 0, %s115
  $region4: #{vgg19ca_forward.5} parent=0 // loop_header_branch
    %12 = sbr.rel (%p10) target = $region8
  $region5: #{vgg19ca_forward.5} parent=0 // loop_body
    %s14 = ssub.s32 %s9, 1
    %s15 = ssub.s32 %s9, 2
    %s22 = sadd.s32 1, %s17
    %p23 = scmp.ge.s32.totalorder %s22, 1
    %s24 = scalar_select %p23, 0, %s22
    %s25 = sadd.s32 1, %s16
    %s26 = scalar_select %p23, %s25, %s16
    %p27 = scmp.ge.s32.totalorder %s26, 49
    %s28 = scalar_select %p27, 0, %s26
    %s29 = ssub.s32 %s16, %s28
    %p30 = scmp.eq.s32.totalorder %s29, 0
    %s32 = sadd.s32 %s31, 1
    %s33 = scalar_select %p30, %s31, %s32
    %p36 = pneg %p30
    %p37 = scmp.eq.s32.totalorder %s9, 48
    %p38 = por %p36, %p37
    %p39 = scmp.ne.s32.totalorder %s31, %s34
    %p40 = scmp.eq.s32.totalorder %s9, 0
    %p41 = por %p39, %p40
    %p42 = scmp.ne.s32.totalorder %s31, %s34
    %p43 = scmp.eq.s32.totalorder %s14, 48
    %p44 = por %p42, %p43
    %p45 = scmp.ne.s32.totalorder %s34, %s35
    %p46 = scmp.eq.s32.totalorder %s14, 0
    %p47 = por %p45, %p46
    %p48 = scmp.ne.s32.totalorder %s34, %s35
    %p49 = scmp.eq.s32.totalorder %s15, 48
    %p50 = por %p48, %p49
    %p52 = scmp.ne.s32.totalorder %s35, %s51
    %p53 = scmp.eq.s32.totalorder %s15, 0
    %p54 = por %p52, %p53
    %s55 = ssub.s32 %s17, %s24
    %p56 = scmp.eq.s32.totalorder %s55, 0
    %s58 = sadd.s32 %s57, 1
    %s59 = scalar_select %p56, %s57, %s58
    %p62 = pneg %p56
    %p63 = scmp.eq.s32.totalorder %s9, 48
    %p64 = por %p62, %p63
    %p65 = scmp.ne.s32.totalorder %s57, %s60
    %p66 = scmp.eq.s32.totalorder %s9, 0
    %p67 = por %p65, %p66
    %p68 = scmp.ne.s32.totalorder %s57, %s60
    %p69 = scmp.eq.s32.totalorder %s14, 48
    %p70 = por %p68, %p69
    %p71 = scmp.ne.s32.totalorder %s60, %s61
    %p72 = scmp.eq.s32.totalorder %s14, 0
    %p73 = por %p71, %p72
    %p74 = scmp.ne.s32.totalorder %s60, %s61
    %p75 = scmp.eq.s32.totalorder %s15, 48
    %p76 = por %p74, %p75
    %p78 = scmp.ne.s32.totalorder %s61, %s77
    %p79 = scmp.eq.s32.totalorder %s15, 0
    %p80 = por %p78, %p79
    %s81 = ssub.s32 %s17, %s24
    %p82 = scmp.eq.s32.totalorder %s81, 0
    %s84 = sadd.s32 %s83, 1
    %s85 = scalar_select %p82, %s83, %s84
    %p88 = pneg %p82
    %p89 = scmp.eq.s32.totalorder %s9, 48
    %p90 = por %p88, %p89
    %p91 = scmp.ne.s32.totalorder %s83, %s86
    %p92 = scmp.eq.s32.totalorder %s9, 0
    %p93 = por %p91, %p92
    %p94 = scmp.ne.s32.totalorder %s83, %s86
    %p95 = scmp.eq.s32.totalorder %s14, 48
    %p96 = por %p94, %p95
    %p97 = scmp.ne.s32.totalorder %s86, %s87
    %p98 = scmp.eq.s32.totalorder %s14, 0
    %p99 = por %p97, %p98
    %p100 = scmp.ne.s32.totalorder %s86, %s87
    %p101 = scmp.eq.s32.totalorder %s15, 48
    %p102 = por %p100, %p101
    %p104 = scmp.ne.s32.totalorder %s87, %s103
    %p105 = scmp.eq.s32.totalorder %s15, 0
    %p106 = por %p104, %p105
    %s107 = ssub.s32 %s16, %s28
    %s108 = ssub.s32 %s17, %s24
    %s109 = sor.u32 %s107, %s108
    %p110 = scmp.eq.s32.totalorder %s109, 0
    %s112 = sadd.s32 %s111, 1
    %s113 = scalar_select %p110, %s111, %s112
    %p116 = pneg %p110
    %p117 = scmp.eq.s32.totalorder %s9, 48
    %p118 = por %p116, %p117
    %p119 = scmp.ne.s32.totalorder %s111, %s114
    %p120 = scmp.eq.s32.totalorder %s9, 0
    %p121 = por %p119, %p120
    %p122 = scmp.ne.s32.totalorder %s111, %s114
    %p123 = scmp.eq.s32.totalorder %s14, 48
    %p124 = por %p122, %p123
    %p125 = scmp.ne.s32.totalorder %s114, %s115
    %p126 = scmp.eq.s32.totalorder %s14, 0
    %p127 = por %p125, %p126
    %p128 = scmp.ne.s32.totalorder %s114, %s115
    %p129 = scmp.eq.s32.totalorder %s15, 48
    %p130 = por %p128, %p129
    %p132 = scmp.ne.s32.totalorder %s115, %s131
    %p133 = scmp.eq.s32.totalorder %s15, 0
    %p134 = por %p132, %p133
    %p135 = scmp.le.s32.totalorder 1, %s9
    %p136 = scmp.lt.s32.totalorder %s9, 50
    %p137 = pnand %p135, %p136
    %p138 = pneg %p137
    // Predicated region
    $region9: #{vgg19ca_forward.5} parent=5 // pred_check
      _
    $region10: #{vgg19ca_forward.5} parent=5 // pred_check_branch
      %140 = sbr.rel (%p137) target = $region12
    $region11: #{vgg19ca_forward.5} parent=5 // pred_region
      %s141 = ssub.s32 %s9, 1
      // Predicated region
      $region13: #{vgg19ca_forward.5} parent=11 // pred_check
        %p142 = pneg %p73
      $region14: #{vgg19ca_forward.5} parent=11 // pred_check_branch
        %144 = sbr.rel (%p142) target = $region16
      $region15: #{vgg19ca_forward.5} parent=11 // pred_region
        %p145 = scmp.lt.s32.totalorder %s19, 0
        %s146 = scalar_select %p145, %s19, 0
        %s147 = smul.addr %s146, 4
        %s148 = scalar_lea.vmem %s1, %s147
      $region16: #{vgg19ca_forward.5} parent=11 // pred_fallthru
        _
      // Predicated region
      $region17: #{vgg19ca_forward.5} parent=11 // pred_check
        %p149 = pneg %p99
      $region18: #{vgg19ca_forward.5} parent=11 // pred_check_branch
        %151 = sbr.rel (%p149) target = $region20
      $region19: #{vgg19ca_forward.5} parent=11 // pred_region
        %p152 = scmp.lt.s32.totalorder %s19, 0
        %s153 = scalar_select %p152, %s19, 0
        %s154 = scalar_lea.vmem %s2, %s153
      $region20: #{vgg19ca_forward.5} parent=11 // pred_fallthru
        _
    $region12: #{vgg19ca_forward.5} parent=5 // pred_fallthru
      _
    %p155 = scmp.lt.s32.totalorder %s9, 49
    // Predicated region
    $region21: #{vgg19ca_forward.5} parent=5 // pred_check
      %p156 = pneg %p155
    $region22: #{vgg19ca_forward.5} parent=5 // pred_check_branch
      %158 = sbr.rel (%p156) target = $region24
    $region23: #{vgg19ca_forward.5} parent=5 // pred_region
      // Predicated region
      $region25: #{vgg19ca_forward.5} parent=23 // pred_check
        %p159 = pneg %p41
      $region26: #{vgg19ca_forward.5} parent=23 // pred_check_branch
        %161 = sbr.rel (%p159) target = $region28
      $region27: #{vgg19ca_forward.5} parent=23 // pred_region
        %s162 = smul.u32 16, %s16
        %p163 = scmp.lt.s32.totalorder %s162, 783
        %s164 = scalar_select %p163, %s162, 783
        %s165 = smul.addr %s164, 5
        %s166 = smul.addr %s165, 4
        %s167 = scalar_lea.vmem %s0, %s166
        %s168 = smul.u32 16, %s16
      $region28: #{vgg19ca_forward.5} parent=23 // pred_fallthru
        _
    $region24: #{vgg19ca_forward.5} parent=5 // pred_fallthru
      _
    %p169 = scmp.le.s32.totalorder 1, %s9
    %p170 = scmp.lt.s32.totalorder %s9, 50
    %p171 = pnand %p169, %p170
    %p172 = pneg %p171
    // Predicated region
    $region29: #{vgg19ca_forward.5} parent=5 // pred_check
      _
    $region30: #{vgg19ca_forward.5} parent=5 // pred_check_branch
      %174 = sbr.rel (%p171) target = $region32
    $region31: #{vgg19ca_forward.5} parent=5 // pred_region
      %s175 = ssub.s32 %s9, 1
      %s176 = smul.u32 16, %s18
      %p177 = scmp.lt.s32.totalorder %s176, 783
      %s178 = scalar_select %p177, %s176, 783
      %s179 = smul.addr %s178, 5
      %s180 = smul.addr %s179, 4
      %s181 = scalar_lea.vmem %s0, %s180
      %p182 = pneg %p47
      %p183 = pneg %p44
      %p184 = scmp.lt.s32.totalorder %s19, 0
      %s185 = scalar_select %p184, %s19, 0
      %s186 = smul.addr %s185, 4
      %s187 = scalar_lea.vmem %s1, %s186
      %p188 = pneg %p73
      %p189 = pneg %p70
      %p190 = scmp.lt.s32.totalorder %s19, 0
      %s191 = scalar_select %p190, %s19, 0
      %s192 = scalar_lea.vmem %s2, %s191
      %p193 = pneg %p99
      %p194 = pneg %p96
      %p195 = pneg %p127
      %p196 = pneg %p124
      %s197 = smul.u32 16, %s18
      %p198 = scmp.lt.s32.totalorder %s197, 783
      %s199 = scalar_select %p198, %s197, 783
      %p200 = scmp.lt.s32.totalorder %s19, 0
      %s201 = scalar_select %p200, %s19, 0
      %s202 = sadd.s32 %s201, %s199
      %s203 = smul.addr %s202, 4
      %s204 = scalar_lea.vmem %s3, %s203
      %s205 = smul.u32 16, %s18
      %p206 = scmp.lt.s32.totalorder %s205, 783
      %s207 = scalar_select %p206, %s205, 783
      %s208 = smul.addr %s207, 5
      %s209 = smul.addr %s208, 4
      %s210 = scalar_lea.vmem %s0, %s209
      %s211 = smul.u32 16, %s18
      %p212 = scmp.lt.s32.totalorder %s19, 0
      %s213 = scalar_select %p212, %s19, 0
      %s214 = smul.addr %s213, 4
      %s215 = scalar_lea.vmem %s1, %s214
      %p216 = scmp.lt.s32.totalorder %s19, 0
      %s217 = scalar_select %p216, %s19, 0
      %s218 = scalar_lea.vmem %s2, %s217
      %s219 = smul.u32 16, %s18
      %p220 = scmp.lt.s32.totalorder %s219, 783
      %s221 = scalar_select %p220, %s219, 783
      %p222 = scmp.lt.s32.totalorder %s19, 0
      %s223 = scalar_select %p222, %s19, 0
      %s224 = sadd.s32 %s223, %s221
      %s225 = smul.addr %s224, 4
      %s226 = scalar_lea.vmem %s3, %s225
      %s227 = smul.u32 16, %s18
      %v229 = vld [vmem:[%s210] sm:$0xff]
      %v230 = vld [vmem:[%s210 + $0x8] sm:$0xff]
      %v231 = vld [vmem:[%s210 + $0x10] sm:$0xf]
      %v232 = vld [vmem:[%s210 + $0x14] sm:$0xff]
      %v233 = vld [vmem:[%s210 + $0x1c] sm:$0xff]
      %v234 = vld [vmem:[%s210 + $0x24] sm:$0xf]
      %v235 = vld [vmem:[%s210 + $0x28] sm:$0xff]
      %v236 = vld [vmem:[%s210 + $0x30] sm:$0xff]
      %v237 = vld [vmem:[%s210 + $0x38] sm:$0xf]
      %v238 = vld [vmem:[%s210 + $0x3c] sm:$0xff]
      %v239 = vld [vmem:[%s210 + $0x44] sm:$0xff]
      %v240 = vld [vmem:[%s210 + $0x4c] sm:$0xf]
      %v241 = vld [vmem:[%s210 + $0x50] sm:$0xff]
      %v242 = vld [vmem:[%s210 + $0x58] sm:$0xff]
      %v243 = vld [vmem:[%s210 + $0x60] sm:$0xf]
      %v244 = vld [vmem:[%s210 + $0x64] sm:$0xff]
      %v245 = vld [vmem:[%s210 + $0x6c] sm:$0xff]
      %v246 = vld [vmem:[%s210 + $0x74] sm:$0xf]
      %v247 = vld [vmem:[%s210 + $0x78] sm:$0xff]
      %v248 = vld [vmem:[%s210 + $0x80] sm:$0xff]
      %v249 = vld [vmem:[%s210 + $0x88] sm:$0xf]
      %v250 = vld [vmem:[%s210 + $0x8c] sm:$0xff]
      %v251 = vld [vmem:[%s210 + $0x94] sm:$0xff]
      %v252 = vld [vmem:[%s210 + $0x9c] sm:$0xf]
      %v253 = vld [vmem:[%s210 + $0xa0] sm:$0xff]
      %v254 = vld [vmem:[%s210 + $0xa8] sm:$0xff]
      %v255 = vld [vmem:[%s210 + $0xb0] sm:$0xf]
      %v256 = vld [vmem:[%s210 + $0xb4] sm:$0xff]
      %v257 = vld [vmem:[%s210 + $0xbc] sm:$0xff]
      %v258 = vld [vmem:[%s210 + $0xc4] sm:$0xf]
      %v259 = vld [vmem:[%s210 + $0xc8] sm:$0xff]
      %v260 = vld [vmem:[%s210 + $0xd0] sm:$0xff]
      %v261 = vld [vmem:[%s210 + $0xd8] sm:$0xf]
      %v262 = vld [vmem:[%s210 + $0xdc] sm:$0xff]
      %v263 = vld [vmem:[%s210 + $0xe4] sm:$0xff]
      %v264 = vld [vmem:[%s210 + $0xec] sm:$0xf]
      %v265 = vld [vmem:[%s210 + $0xf0] sm:$0xff]
      %v266 = vld [vmem:[%s210 + $0xf8] sm:$0xff]
      %v267 = vld [vmem:[%s210 + $0x100] sm:$0xf]
      %v268 = vld [vmem:[%s210 + $0x104] sm:$0xff]
      %v269 = vld [vmem:[%s210 + $0x10c] sm:$0xff]
      %v270 = vld [vmem:[%s210 + $0x114] sm:$0xf]
      %v271 = vld [vmem:[%s210 + $0x118] sm:$0xff]
      %v272 = vld [vmem:[%s210 + $0x120] sm:$0xff]
      %v273 = vld [vmem:[%s210 + $0x128] sm:$0xf]
      %v274 = vld [vmem:[%s210 + $0x12c] sm:$0xff]
      %v275 = vld [vmem:[%s210 + $0x134] sm:$0xff]
      %v276 = vld [vmem:[%s210 + $0x13c] sm:$0xf]
      %v277 = vld [vmem:[%s215] sm:$0xf]
      %v278 = vld [vmem:[%s215 + $0x4] sm:$0xf]
      %v279 = vld [vmem:[%s215 + $0x8] sm:$0xf]
      %v280 = vld [vmem:[%s215 + $0xc] sm:$0xf]
      %v281 = vld [vmem:[%s215 + $0x10] sm:$0xf]
      %v282 = vld [vmem:[%s215 + $0x14] sm:$0xf]
      %v283 = vld [vmem:[%s215 + $0x18] sm:$0xf]
      %v284 = vld [vmem:[%s215 + $0x1c] sm:$0xf]
      %v285 = vld [vmem:[%s215 + $0x20] sm:$0xf]
      %v286 = vld [vmem:[%s215 + $0x24] sm:$0xf]
      %v287 = vld [vmem:[%s215 + $0x28] sm:$0xf]
      %v288 = vld [vmem:[%s215 + $0x2c] sm:$0xf]
      %v289 = vld [vmem:[%s215 + $0x30] sm:$0xf]
      %v290 = vld [vmem:[%s215 + $0x34] sm:$0xf]
      %v291 = vld [vmem:[%s215 + $0x38] sm:$0xf]
      %v292 = vld [vmem:[%s215 + $0x3c] sm:$0xf]
      %v293 = vld [vmem:[%s215 + $0x40] sm:$0xf]
      %v294 = vld [vmem:[%s215 + $0x44] sm:$0xf]
      %v295 = vld [vmem:[%s215 + $0x48] sm:$0xf]
      %v296 = vld [vmem:[%s215 + $0x4c] sm:$0xf]
      %v297 = vld [vmem:[%s215 + $0x50] sm:$0xf]
      %v298 = vld [vmem:[%s215 + $0x54] sm:$0xf]
      %v299 = vld [vmem:[%s215 + $0x58] sm:$0xf]
      %v300 = vld [vmem:[%s215 + $0x5c] sm:$0xf]
      %v301 = vld [vmem:[%s215 + $0x60] sm:$0xf]
      %v302 = vld [vmem:[%s215 + $0x64] sm:$0xf]
      %v303 = vld [vmem:[%s215 + $0x68] sm:$0xf]
      %v304 = vld [vmem:[%s215 + $0x6c] sm:$0xf]
      %v305 = vld [vmem:[%s215 + $0x70] sm:$0xf]
      %v306 = vld [vmem:[%s215 + $0x74] sm:$0xf]
      %v307 = vld [vmem:[%s215 + $0x78] sm:$0xf]
      %v308 = vld [vmem:[%s215 + $0x7c] sm:$0xf]
      %v309 = vld [vmem:[%s215 + $0x80] sm:$0xf]
      %v310 = vld [vmem:[%s215 + $0x84] sm:$0xf]
      %v311 = vld [vmem:[%s215 + $0x88] sm:$0xf]
      %v312 = vld [vmem:[%s215 + $0x8c] sm:$0xf]
      %v313 = vld [vmem:[%s215 + $0x90] sm:$0xf]
      %v314 = vld [vmem:[%s215 + $0x94] sm:$0xf]
      %v315 = vld [vmem:[%s215 + $0x98] sm:$0xf]
      %v316 = vld [vmem:[%s215 + $0x9c] sm:$0xf]
      %v317 = vld [vmem:[%s215 + $0xa0] sm:$0xf]
      %v318 = vld [vmem:[%s215 + $0xa4] sm:$0xf]
      %v319 = vld [vmem:[%s215 + $0xa8] sm:$0xf]
      %v320 = vld [vmem:[%s215 + $0xac] sm:$0xf]
      %v321 = vld [vmem:[%s215 + $0xb0] sm:$0xf]
      %v322 = vld [vmem:[%s215 + $0xb4] sm:$0xf]
      %v323 = vld [vmem:[%s215 + $0xb8] sm:$0xf]
      %v324 = vld [vmem:[%s215 + $0xbc] sm:$0xf]
      %v325 = vld [vmem:[%s215 + $0xc0] sm:$0xf]
      %v326 = vld [vmem:[%s215 + $0xc4] sm:$0xf]
      %v327 = vld [vmem:[%s215 + $0xc8] sm:$0xf]
      %v328 = vld [vmem:[%s215 + $0xcc] sm:$0xf]
      %v329 = vld [vmem:[%s215 + $0xd0] sm:$0xf]
      %v330 = vld [vmem:[%s215 + $0xd4] sm:$0xf]
      %v331 = vld [vmem:[%s215 + $0xd8] sm:$0xf]
      %v332 = vld [vmem:[%s215 + $0xdc] sm:$0xf]
      %v333 = vld [vmem:[%s215 + $0xe0] sm:$0xf]
      %v334 = vld [vmem:[%s215 + $0xe4] sm:$0xf]
      %v335 = vld [vmem:[%s215 + $0xe8] sm:$0xf]
      %v336 = vld [vmem:[%s215 + $0xec] sm:$0xf]
      %v337 = vld [vmem:[%s215 + $0xf0] sm:$0xf]
      %v338 = vld [vmem:[%s215 + $0xf4] sm:$0xf]
      %v339 = vld [vmem:[%s215 + $0xf8] sm:$0xf]
      %v340 = vld [vmem:[%s215 + $0xfc] sm:$0xf]
      %v341 = vld [vmem:[%s215 + $0x100] sm:$0xf]
      %v342 = vld [vmem:[%s215 + $0x104] sm:$0xf]
      %v343 = vld [vmem:[%s215 + $0x108] sm:$0xf]
      %v344 = vld [vmem:[%s215 + $0x10c] sm:$0xf]
      %v345 = vld [vmem:[%s215 + $0x110] sm:$0xf]
      %v346 = vld [vmem:[%s215 + $0x114] sm:$0xf]
      %v347 = vld [vmem:[%s215 + $0x118] sm:$0xf]
      %v348 = vld [vmem:[%s215 + $0x11c] sm:$0xf]
      %v349 = vld [vmem:[%s215 + $0x120] sm:$0xf]
      %v350 = vld [vmem:[%s215 + $0x124] sm:$0xf]
      %v351 = vld [vmem:[%s215 + $0x128] sm:$0xf]
      %v352 = vld [vmem:[%s215 + $0x12c] sm:$0xf]
      %v353 = vld [vmem:[%s215 + $0x130] sm:$0xf]
      %v354 = vld [vmem:[%s215 + $0x134] sm:$0xf]
      %v355 = vld [vmem:[%s215 + $0x138] sm:$0xf]
      %v356 = vld [vmem:[%s215 + $0x13c] sm:$0xf]
      %v357 = vld [vmem:[%s218] sm:$0x1]
      %v359 = vlaneseq
      %v360 = vshrl.u32 %v359, 7
      %v361 = vsub.s32 0, %v360
      %v362 = vrot.slane %v357, %v361
      %v412 = vunpack.c.l.b16 %v229
      %v413 = vunpack.c.h.b16 %v229
      %v414 = vunpack.c.l.b16 %v230
      %v415 = vunpack.c.h.b16 %v230
      %v416 = vunpack.c.l.b16 %v231
      %v417 = vunpack.c.l.b16 %v232
      %v418 = vunpack.c.h.b16 %v232
      %v419 = vunpack.c.l.b16 %v233
      %v420 = vunpack.c.h.b16 %v233
      %v421 = vunpack.c.l.b16 %v234
      %v422 = vunpack.c.l.b16 %v235
      %v423 = vunpack.c.h.b16 %v235
      %v424 = vunpack.c.l.b16 %v236
      %v425 = vunpack.c.h.b16 %v236
      %v426 = vunpack.c.l.b16 %v237
      %v427 = vunpack.c.l.b16 %v238
      %v428 = vunpack.c.h.b16 %v238
      %v429 = vunpack.c.l.b16 %v239
      %v430 = vunpack.c.h.b16 %v239
      %v431 = vunpack.c.l.b16 %v240
      %v432 = vunpack.c.l.b16 %v241
      %v433 = vunpack.c.h.b16 %v241
      %v434 = vunpack.c.l.b16 %v242
      %v435 = vunpack.c.h.b16 %v242
      %v436 = vunpack.c.l.b16 %v243
      %v437 = vunpack.c.l.b16 %v244
      %v438 = vunpack.c.h.b16 %v244
      %v439 = vunpack.c.l.b16 %v245
      %v440 = vunpack.c.h.b16 %v245
      %v441 = vunpack.c.l.b16 %v246
      %v442 = vunpack.c.l.b16 %v247
      %v443 = vunpack.c.h.b16 %v247
      %v444 = vunpack.c.l.b16 %v248
      %v445 = vunpack.c.h.b16 %v248
      %v446 = vunpack.c.l.b16 %v249
      %v447 = vunpack.c.l.b16 %v250
      %v448 = vunpack.c.h.b16 %v250
      %v449 = vunpack.c.l.b16 %v251
      %v450 = vunpack.c.h.b16 %v251
      %v451 = vunpack.c.l.b16 %v252
      %v452 = vunpack.c.l.b16 %v253
      %v453 = vunpack.c.h.b16 %v253
      %v454 = vunpack.c.l.b16 %v254
      %v455 = vunpack.c.h.b16 %v254
      %v456 = vunpack.c.l.b16 %v255
      %v457 = vunpack.c.l.b16 %v256
      %v458 = vunpack.c.h.b16 %v256
      %v459 = vunpack.c.l.b16 %v257
      %v460 = vunpack.c.h.b16 %v257
      %v461 = vunpack.c.l.b16 %v258
      %v462 = vunpack.c.l.b16 %v259
      %v463 = vunpack.c.h.b16 %v259
      %v464 = vunpack.c.l.b16 %v260
      %v465 = vunpack.c.h.b16 %v260
      %v466 = vunpack.c.l.b16 %v261
      %v467 = vunpack.c.l.b16 %v262
      %v468 = vunpack.c.h.b16 %v262
      %v469 = vunpack.c.l.b16 %v263
      %v470 = vunpack.c.h.b16 %v263
      %v471 = vunpack.c.l.b16 %v264
      %v472 = vunpack.c.l.b16 %v265
      %v473 = vunpack.c.h.b16 %v265
      %v474 = vunpack.c.l.b16 %v266
      %v475 = vunpack.c.h.b16 %v266
      %v476 = vunpack.c.l.b16 %v267
      %v477 = vunpack.c.l.b16 %v268
      %v478 = vunpack.c.h.b16 %v268
      %v479 = vunpack.c.l.b16 %v269
      %v480 = vunpack.c.h.b16 %v269
      %v481 = vunpack.c.l.b16 %v270
      %v482 = vunpack.c.l.b16 %v271
      %v483 = vunpack.c.h.b16 %v271
      %v484 = vunpack.c.l.b16 %v272
      %v485 = vunpack.c.h.b16 %v272
      %v486 = vunpack.c.l.b16 %v273
      %v487 = vunpack.c.l.b16 %v274
      %v488 = vunpack.c.h.b16 %v274
      %v489 = vunpack.c.l.b16 %v275
      %v490 = vunpack.c.h.b16 %v275
      %v491 = vunpack.c.l.b16 %v276
      %v492 = vpack.c.b16 %v417, %v412
      %v493 = vpack.c.b16 %v418, %v413
      %v494 = vpack.c.b16 %v419, %v414
      %v495 = vpack.c.b16 %v420, %v415
      %v496 = vpack.c.b16 %v421, %v416
      %v497 = vpack.c.b16 %v427, %v422
      %v498 = vpack.c.b16 %v428, %v423
      %v499 = vpack.c.b16 %v429, %v424
      %v500 = vpack.c.b16 %v430, %v425
      %v501 = vpack.c.b16 %v431, %v426
      %v502 = vpack.c.b16 %v437, %v432
      %v503 = vpack.c.b16 %v438, %v433
      %v504 = vpack.c.b16 %v439, %v434
      %v505 = vpack.c.b16 %v440, %v435
      %v506 = vpack.c.b16 %v441, %v436
      %v507 = vpack.c.b16 %v447, %v442
      %v508 = vpack.c.b16 %v448, %v443
      %v509 = vpack.c.b16 %v449, %v444
      %v510 = vpack.c.b16 %v450, %v445
      %v511 = vpack.c.b16 %v451, %v446
      %v512 = vpack.c.b16 %v457, %v452
      %v513 = vpack.c.b16 %v458, %v453
      %v514 = vpack.c.b16 %v459, %v454
      %v515 = vpack.c.b16 %v460, %v455
      %v516 = vpack.c.b16 %v461, %v456
      %v517 = vpack.c.b16 %v467, %v462
      %v518 = vpack.c.b16 %v468, %v463
      %v519 = vpack.c.b16 %v469, %v464
      %v520 = vpack.c.b16 %v470, %v465
      %v521 = vpack.c.b16 %v471, %v466
      %v522 = vpack.c.b16 %v477, %v472
      %v523 = vpack.c.b16 %v478, %v473
      %v524 = vpack.c.b16 %v479, %v474
      %v525 = vpack.c.b16 %v480, %v475
      %v526 = vpack.c.b16 %v481, %v476
      %v527 = vpack.c.b16 %v487, %v482
      %v528 = vpack.c.b16 %v488, %v483
      %v529 = vpack.c.b16 %v489, %v484
      %v530 = vpack.c.b16 %v490, %v485
      %v531 = vpack.c.b16 %v491, %v486
      %v652 = vunpack.c.l.b16 %v277
      %v653 = vunpack.c.l.b16 %v278
      %v654 = vunpack.c.l.b16 %v279
      %v655 = vunpack.c.l.b16 %v280
      %v656 = vunpack.c.l.b16 %v281
      %v657 = vunpack.c.l.b16 %v282
      %v658 = vunpack.c.l.b16 %v283
      %v659 = vunpack.c.l.b16 %v284
      %v660 = vunpack.c.l.b16 %v285
      %v661 = vunpack.c.l.b16 %v286
      %v662 = vunpack.c.l.b16 %v287
      %v663 = vunpack.c.l.b16 %v288
      %v664 = vunpack.c.l.b16 %v289
      %v665 = vunpack.c.l.b16 %v290
      %v666 = vunpack.c.l.b16 %v291
      %v667 = vunpack.c.l.b16 %v292
      %v668 = vunpack.c.l.b16 %v293
      %v669 = vunpack.c.l.b16 %v294
      %v670 = vunpack.c.l.b16 %v295
      %v671 = vunpack.c.l.b16 %v296
      %v672 = vunpack.c.l.b16 %v297
      %v673 = vunpack.c.l.b16 %v298
      %v674 = vunpack.c.l.b16 %v299
      %v675 = vunpack.c.l.b16 %v300
      %v676 = vunpack.c.l.b16 %v301
      %v677 = vunpack.c.l.b16 %v302
      %v678 = vunpack.c.l.b16 %v303
      %v679 = vunpack.c.l.b16 %v304
      %v680 = vunpack.c.l.b16 %v305
      %v681 = vunpack.c.l.b16 %v306
      %v682 = vunpack.c.l.b16 %v307
      %v683 = vunpack.c.l.b16 %v308
      %v684 = vunpack.c.l.b16 %v309
      %v685 = vunpack.c.l.b16 %v310
      %v686 = vunpack.c.l.b16 %v311
      %v687 = vunpack.c.l.b16 %v312
      %v688 = vunpack.c.l.b16 %v313
      %v689 = vunpack.c.l.b16 %v314
      %v690 = vunpack.c.l.b16 %v315
      %v691 = vunpack.c.l.b16 %v316
      %v692 = vunpack.c.l.b16 %v317
      %v693 = vunpack.c.l.b16 %v318
      %v694 = vunpack.c.l.b16 %v319
      %v695 = vunpack.c.l.b16 %v320
      %v696 = vunpack.c.l.b16 %v321
      %v697 = vunpack.c.l.b16 %v322
      %v698 = vunpack.c.l.b16 %v323
      %v699 = vunpack.c.l.b16 %v324
      %v700 = vunpack.c.l.b16 %v325
      %v701 = vunpack.c.l.b16 %v326
      %v702 = vunpack.c.l.b16 %v327
      %v703 = vunpack.c.l.b16 %v328
      %v704 = vunpack.c.l.b16 %v329
      %v705 = vunpack.c.l.b16 %v330
      %v706 = vunpack.c.l.b16 %v331
      %v707 = vunpack.c.l.b16 %v332
      %v708 = vunpack.c.l.b16 %v333
      %v709 = vunpack.c.l.b16 %v334
      %v710 = vunpack.c.l.b16 %v335
      %v711 = vunpack.c.l.b16 %v336
      %v712 = vunpack.c.l.b16 %v337
      %v713 = vunpack.c.l.b16 %v338
      %v714 = vunpack.c.l.b16 %v339
      %v715 = vunpack.c.l.b16 %v340
      %v716 = vunpack.c.l.b16 %v341
      %v717 = vunpack.c.l.b16 %v342
      %v718 = vunpack.c.l.b16 %v343
      %v719 = vunpack.c.l.b16 %v344
      %v720 = vunpack.c.l.b16 %v345
      %v721 = vunpack.c.l.b16 %v346
      %v722 = vunpack.c.l.b16 %v347
      %v723 = vunpack.c.l.b16 %v348
      %v724 = vunpack.c.l.b16 %v349
      %v725 = vunpack.c.l.b16 %v350
      %v726 = vunpack.c.l.b16 %v351
      %v727 = vunpack.c.l.b16 %v352
      %v728 = vunpack.c.l.b16 %v353
      %v729 = vunpack.c.l.b16 %v354
      %v730 = vunpack.c.l.b16 %v355
      %v731 = vunpack.c.l.b16 %v356
      %v732 = vpack.c.b16 %v653, %v652
      %v733 = vpack.c.b16 %v655, %v654
      %v734 = vpack.c.b16 %v657, %v656
      %v735 = vpack.c.b16 %v659, %v658
      %v736 = vpack.c.b16 %v661, %v660
      %v737 = vpack.c.b16 %v663, %v662
      %v738 = vpack.c.b16 %v665, %v664
      %v739 = vpack.c.b16 %v667, %v666
      %v740 = vpack.c.b16 %v669, %v668
      %v741 = vpack.c.b16 %v671, %v670
      %v742 = vpack.c.b16 %v673, %v672
      %v743 = vpack.c.b16 %v675, %v674
      %v744 = vpack.c.b16 %v677, %v676
      %v745 = vpack.c.b16 %v679, %v678
      %v746 = vpack.c.b16 %v681, %v680
      %v747 = vpack.c.b16 %v683, %v682
      %v748 = vpack.c.b16 %v685, %v684
      %v749 = vpack.c.b16 %v687, %v686
      %v750 = vpack.c.b16 %v689, %v688
      %v751 = vpack.c.b16 %v691, %v690
      %v752 = vpack.c.b16 %v693, %v692
      %v753 = vpack.c.b16 %v695, %v694
      %v754 = vpack.c.b16 %v697, %v696
      %v755 = vpack.c.b16 %v699, %v698
      %v756 = vpack.c.b16 %v701, %v700
      %v757 = vpack.c.b16 %v703, %v702
      %v758 = vpack.c.b16 %v705, %v704
      %v759 = vpack.c.b16 %v707, %v706
      %v760 = vpack.c.b16 %v709, %v708
      %v761 = vpack.c.b16 %v711, %v710
      %v762 = vpack.c.b16 %v713, %v712
      %v763 = vpack.c.b16 %v715, %v714
      %v764 = vpack.c.b16 %v717, %v716
      %v765 = vpack.c.b16 %v719, %v718
      %v766 = vpack.c.b16 %v721, %v720
      %v767 = vpack.c.b16 %v723, %v722
      %v768 = vpack.c.b16 %v725, %v724
      %v769 = vpack.c.b16 %v727, %v726
      %v770 = vpack.c.b16 %v729, %v728
      %v771 = vpack.c.b16 %v731, %v730
      %812 = vmatprep.subr.bf16.mxu0 0
      %813 = vmatpush1.bf16.msra.mxu0 %v739
      %814 = vmatprep.subr.bf16.mxu0 0
      %815 = vmatpush1.bf16.msra.mxu0 %v738
      %816 = vmatprep.subr.bf16.mxu0 0
      %817 = vmatpush1.bf16.msra.mxu0 %v737
      %818 = vmatprep.subr.bf16.mxu0 0
      %819 = vmatpush1.bf16.msra.mxu0 %v736
      %820 = vmatprep.subr.bf16.mxu0 0
      %821 = vmatpush1.bf16.msra.mxu0 %v735
      %822 = vmatprep.subr.bf16.mxu0 0
      %823 = vmatpush1.bf16.msra.mxu0 %v734
      %824 = vmatprep.subr.bf16.mxu0 0
      %825 = vmatpush1.bf16.msra.mxu0 %v733
      %826 = vmatprep.subr.bf16.mxu0 0
      %827 = vmatpush1.bf16.msra.mxu0 %v732
      %828 = vmatprep.subr.bf16.mxu0 0
      %829 = vmatpush2.bf16.msra.mxu0 %v747
      %830 = vmatprep.subr.bf16.mxu0 0
      %831 = vmatpush2.bf16.msra.mxu0 %v746
      %832 = vmatprep.subr.bf16.mxu0 0
      %833 = vmatpush2.bf16.msra.mxu0 %v745
      %834 = vmatprep.subr.bf16.mxu0 0
      %835 = vmatpush2.bf16.msra.mxu0 %v744
      %836 = vmatprep.subr.bf16.mxu0 0
      %837 = vmatpush2.bf16.msra.mxu0 %v743
      %838 = vmatprep.subr.bf16.mxu0 0
      %839 = vmatpush2.bf16.msra.mxu0 %v742
      %840 = vmatprep.subr.bf16.mxu0 0
      %841 = vmatpush2.bf16.msra.mxu0 %v741
      %842 = vmatprep.subr.bf16.mxu0 0
      %843 = vmatpush2.bf16.msra.mxu0 %v740
      %844 = vmatprep.mubr.bf16.mxu0 %v493
      %845 = vmatmul.mubr.bf16.gmra.mxu0 %v492
      %v846 = vpop.f32.mrf.mxu0
      %v847 = vadd.f32 %v362, %v846
      %v848 = vpop.f32.mrf.mxu0
      %v849 = vpop.f32.mrf.mxu0
      %v850 = vadd.f32 %v362, %v849
      %v851 = vpop.f32.mrf.mxu0
      %852 = vmatprep.mubr.bf16.mxu0 %v498
      %853 = vmatmul.mubr.bf16.gmra.mxu0 %v497
      %v854 = vpop.f32.mrf.mxu0
      %v855 = vadd.f32 %v362, %v854
      %v856 = vpop.f32.mrf.mxu0
      %v857 = vpop.f32.mrf.mxu0
      %v858 = vadd.f32 %v362, %v857
      %v859 = vpop.f32.mrf.mxu0
      %860 = vmatprep.mubr.bf16.mxu0 %v503
      %861 = vmatmul.mubr.bf16.gmra.mxu0 %v502
      %v862 = vpop.f32.mrf.mxu0
      %v863 = vadd.f32 %v362, %v862
      %v864 = vpop.f32.mrf.mxu0
      %v865 = vpop.f32.mrf.mxu0
      %v866 = vadd.f32 %v362, %v865
      %v867 = vpop.f32.mrf.mxu0
      %868 = vmatprep.mubr.bf16.mxu0 %v508
      %869 = vmatmul.mubr.bf16.gmra.mxu0 %v507
      %v870 = vpop.f32.mrf.mxu0
      %v871 = vadd.f32 %v362, %v870
      %v872 = vpop.f32.mrf.mxu0
      %v873 = vpop.f32.mrf.mxu0
      %v874 = vadd.f32 %v362, %v873
      %v875 = vpop.f32.mrf.mxu0
      %876 = vmatprep.mubr.bf16.mxu0 %v513
      %877 = vmatmul.mubr.bf16.gmra.mxu0 %v512
      %v878 = vpop.f32.mrf.mxu0
      %v879 = vadd.f32 %v362, %v878
      %v880 = vpop.f32.mrf.mxu0
      %v881 = vpop.f32.mrf.mxu0
      %v882 = vadd.f32 %v362, %v881
      %v883 = vpop.f32.mrf.mxu0
      %884 = vmatprep.mubr.bf16.mxu0 %v518
      %885 = vmatmul.mubr.bf16.gmra.mxu0 %v517
      %v886 = vpop.f32.mrf.mxu0
      %v887 = vadd.f32 %v362, %v886
      %v888 = vpop.f32.mrf.mxu0
      %v889 = vpop.f32.mrf.mxu0
      %v890 = vadd.f32 %v362, %v889
      %v891 = vpop.f32.mrf.mxu0
      %892 = vmatprep.mubr.bf16.mxu0 %v523
      %893 = vmatmul.mubr.bf16.gmra.mxu0 %v522
      %v894 = vpop.f32.mrf.mxu0
      %v895 = vadd.f32 %v362, %v894
      %v896 = vpop.f32.mrf.mxu0
      %v897 = vpop.f32.mrf.mxu0
      %v898 = vadd.f32 %v362, %v897
      %v899 = vpop.f32.mrf.mxu0
      %900 = vmatprep.mubr.bf16.mxu0 %v528
      %901 = vmatmul.mubr.bf16.gmra.mxu0 %v527
      %v902 = vpop.f32.mrf.mxu0
      %v903 = vadd.f32 %v362, %v902
      %v904 = vpop.f32.mrf.mxu0
      %v905 = vpop.f32.mrf.mxu0
      %v906 = vadd.f32 %v362, %v905
      %v907 = vpop.f32.mrf.mxu0
      %908 = vdwg.mxu0
      %909 = vmatprep.subr.bf16.mxu0 0
      %910 = vmatpush1.bf16.msra.mxu0 %v755
      %911 = vmatprep.subr.bf16.mxu0 0
      %912 = vmatpush1.bf16.msra.mxu0 %v754
      %913 = vmatprep.subr.bf16.mxu0 0
      %914 = vmatpush1.bf16.msra.mxu0 %v753
      %915 = vmatprep.subr.bf16.mxu0 0
      %916 = vmatpush1.bf16.msra.mxu0 %v752
      %917 = vmatprep.subr.bf16.mxu0 0
      %918 = vmatpush1.bf16.msra.mxu0 %v751
      %919 = vmatprep.subr.bf16.mxu0 0
      %920 = vmatpush1.bf16.msra.mxu0 %v750
      %921 = vmatprep.subr.bf16.mxu0 0
      %922 = vmatpush1.bf16.msra.mxu0 %v749
      %923 = vmatprep.subr.bf16.mxu0 0
      %924 = vmatpush1.bf16.msra.mxu0 %v748
      %925 = vmatprep.subr.bf16.mxu0 0
      %926 = vmatpush2.bf16.msra.mxu0 %v763
      %927 = vmatprep.subr.bf16.mxu0 0
      %928 = vmatpush2.bf16.msra.mxu0 %v762
      %929 = vmatprep.subr.bf16.mxu0 0
      %930 = vmatpush2.bf16.msra.mxu0 %v761
      %931 = vmatprep.subr.bf16.mxu0 0
      %932 = vmatpush2.bf16.msra.mxu0 %v760
      %933 = vmatprep.subr.bf16.mxu0 0
      %934 = vmatpush2.bf16.msra.mxu0 %v759
      %935 = vmatprep.subr.bf16.mxu0 0
      %936 = vmatpush2.bf16.msra.mxu0 %v758
      %937 = vmatprep.subr.bf16.mxu0 0
      %938 = vmatpush2.bf16.msra.mxu0 %v757
      %939 = vmatprep.subr.bf16.mxu0 0
      %940 = vmatpush2.bf16.msra.mxu0 %v756
      %941 = vmatprep.mubr.bf16.mxu0 %v495
      %942 = vmatmul.mubr.bf16.gmra.mxu0 %v494
      %v943 = vpop.f32.mrf.mxu0
      %v944 = vadd.f32 %v847, %v943
      %v945 = vpop.f32.mrf.mxu0
      %v946 = vpop.f32.mrf.mxu0
      %v947 = vadd.f32 %v850, %v946
      %v948 = vpop.f32.mrf.mxu0
      %949 = vmatprep.mubr.bf16.mxu0 %v500
      %950 = vmatmul.mubr.bf16.gmra.mxu0 %v499
      %v951 = vpop.f32.mrf.mxu0
      %v952 = vadd.f32 %v855, %v951
      %v953 = vpop.f32.mrf.mxu0
      %v954 = vpop.f32.mrf.mxu0
      %v955 = vadd.f32 %v858, %v954
      %v956 = vpop.f32.mrf.mxu0
      %957 = vmatprep.mubr.bf16.mxu0 %v505
      %958 = vmatmul.mubr.bf16.gmra.mxu0 %v504
      %v959 = vpop.f32.mrf.mxu0
      %v960 = vadd.f32 %v863, %v959
      %v961 = vpop.f32.mrf.mxu0
      %v962 = vpop.f32.mrf.mxu0
      %v963 = vadd.f32 %v866, %v962
      %v964 = vpop.f32.mrf.mxu0
      %965 = vmatprep.mubr.bf16.mxu0 %v510
      %966 = vmatmul.mubr.bf16.gmra.mxu0 %v509
      %v967 = vpop.f32.mrf.mxu0
      %v968 = vadd.f32 %v871, %v967
      %v969 = vpop.f32.mrf.mxu0
      %v970 = vpop.f32.mrf.mxu0
      %v971 = vadd.f32 %v874, %v970
      %v972 = vpop.f32.mrf.mxu0
      %973 = vmatprep.mubr.bf16.mxu0 %v515
      %974 = vmatmul.mubr.bf16.gmra.mxu0 %v514
      %v975 = vpop.f32.mrf.mxu0
      %v976 = vadd.f32 %v879, %v975
      %v977 = vpop.f32.mrf.mxu0
      %v978 = vpop.f32.mrf.mxu0
      %v979 = vadd.f32 %v882, %v978
      %v980 = vpop.f32.mrf.mxu0
      %981 = vmatprep.mubr.bf16.mxu0 %v520
      %982 = vmatmul.mubr.bf16.gmra.mxu0 %v519
      %v983 = vpop.f32.mrf.mxu0
      %v984 = vadd.f32 %v887, %v983
      %v985 = vpop.f32.mrf.mxu0
      %v986 = vpop.f32.mrf.mxu0
      %v987 = vadd.f32 %v890, %v986
      %v988 = vpop.f32.mrf.mxu0
      %989 = vmatprep.mubr.bf16.mxu0 %v525
      %990 = vmatmul.mubr.bf16.gmra.mxu0 %v524
      %v991 = vpop.f32.mrf.mxu0
      %v992 = vadd.f32 %v895, %v991
      %v993 = vpop.f32.mrf.mxu0
      %v994 = vpop.f32.mrf.mxu0
      %v995 = vadd.f32 %v898, %v994
      %v996 = vpop.f32.mrf.mxu0
      %997 = vmatprep.mubr.bf16.mxu0 %v530
      %998 = vmatmul.mubr.bf16.gmra.mxu0 %v529
      %v999 = vpop.f32.mrf.mxu0
      %v1000 = vadd.f32 %v903, %v999
      %v1001 = vpop.f32.mrf.mxu0
      %v1002 = vpop.f32.mrf.mxu0
      %v1003 = vadd.f32 %v906, %v1002
      %v1004 = vpop.f32.mrf.mxu0
      %1005 = vdwg.mxu0
      %1006 = vmatprep.subr.bf16.mxu0 0
      %1007 = vmatpush1.bf16.msra.mxu0 %v771
      %1008 = vmatprep.subr.bf16.mxu0 0
      %1009 = vmatpush1.bf16.msra.mxu0 %v770
      %1010 = vmatprep.subr.bf16.mxu0 0
      %1011 = vmatpush1.bf16.msra.mxu0 %v769
      %1012 = vmatprep.subr.bf16.mxu0 0
      %1013 = vmatpush1.bf16.msra.mxu0 %v768
      %1014 = vmatprep.subr.bf16.mxu0 0
      %1015 = vmatpush1.bf16.msra.mxu0 %v767
      %1016 = vmatprep.subr.bf16.mxu0 0
      %1017 = vmatpush1.bf16.msra.mxu0 %v766
      %1018 = vmatprep.subr.bf16.mxu0 0
      %1019 = vmatpush1.bf16.msra.mxu0 %v765
      %1020 = vmatprep.subr.bf16.mxu0 0
      %1021 = vmatpush1.bf16.msra.mxu0 %v764
      %1022 = vmatprep.subr.bf16.mxu0 0
      %1023 = vmatpush2.bf16.msra.mxu0 0
      %1024 = vmatprep.subr.bf16.mxu0 0
      %1025 = vmatpush2.bf16.msra.mxu0 0
      %1026 = vmatprep.subr.bf16.mxu0 0
      %1027 = vmatpush2.bf16.msra.mxu0 0
      %1028 = vmatprep.subr.bf16.mxu0 0
      %1029 = vmatpush2.bf16.msra.mxu0 0
      %1030 = vmatprep.subr.bf16.mxu0 0
      %1031 = vmatpush2.bf16.msra.mxu0 0
      %1032 = vmatprep.subr.bf16.mxu0 0
      %1033 = vmatpush2.bf16.msra.mxu0 0
      %1034 = vmatprep.subr.bf16.mxu0 0
      %1035 = vmatpush2.bf16.msra.mxu0 0
      %1036 = vmatprep.subr.bf16.mxu0 0
      %1037 = vmatpush2.bf16.msra.mxu0 0
      %1038 = vmatprep.mubr.bf16.mxu0 0
      %1039 = vmatmul.mubr.bf16.gmra.mxu0 %v496
      %v1040 = vpop.f32.mrf.mxu0
      %v1041 = vadd.f32 %v944, %v1040
      %v1042 = vpop.f32.mrf.mxu0
      %v1043 = vpop.f32.mrf.mxu0
      %v1044 = vadd.f32 %v947, %v1043
      %v1045 = vpop.f32.mrf.mxu0
      %1046 = vmatprep.mubr.bf16.mxu0 0
      %1047 = vmatmul.mubr.bf16.gmra.mxu0 %v501
      %v1048 = vpop.f32.mrf.mxu0
      %v1049 = vadd.f32 %v952, %v1048
      %v1050 = vpop.f32.mrf.mxu0
      %v1051 = vpop.f32.mrf.mxu0
      %v1052 = vadd.f32 %v955, %v1051
      %v1053 = vpop.f32.mrf.mxu0
      %1054 = vmatprep.mubr.bf16.mxu0 0
      %1055 = vmatmul.mubr.bf16.gmra.mxu0 %v506
      %v1056 = vpop.f32.mrf.mxu0
      %v1057 = vadd.f32 %v960, %v1056
      %v1058 = vpop.f32.mrf.mxu0
      %v1059 = vpop.f32.mrf.mxu0
      %v1060 = vadd.f32 %v963, %v1059
      %v1061 = vpop.f32.mrf.mxu0
      %1062 = vmatprep.mubr.bf16.mxu0 0
      %1063 = vmatmul.mubr.bf16.gmra.mxu0 %v511
      %v1064 = vpop.f32.mrf.mxu0
      %v1065 = vadd.f32 %v968, %v1064
      %v1066 = vpop.f32.mrf.mxu0
      %v1067 = vpop.f32.mrf.mxu0
      %v1068 = vadd.f32 %v971, %v1067
      %v1069 = vpop.f32.mrf.mxu0
      %1070 = vmatprep.mubr.bf16.mxu0 0
      %1071 = vmatmul.mubr.bf16.gmra.mxu0 %v516
      %v1072 = vpop.f32.mrf.mxu0
      %v1073 = vadd.f32 %v976, %v1072
      %v1074 = vpop.f32.mrf.mxu0
      %v1075 = vpop.f32.mrf.mxu0
      %v1076 = vadd.f32 %v979, %v1075
      %v1077 = vpop.f32.mrf.mxu0
      %1078 = vmatprep.mubr.bf16.mxu0 0
      %1079 = vmatmul.mubr.bf16.gmra.mxu0 %v521
      %v1080 = vpop.f32.mrf.mxu0
      %v1081 = vadd.f32 %v984, %v1080
      %v1082 = vpop.f32.mrf.mxu0
      %v1083 = vpop.f32.mrf.mxu0
      %v1084 = vadd.f32 %v987, %v1083
      %v1085 = vpop.f32.mrf.mxu0
      %1086 = vmatprep.mubr.bf16.mxu0 0
      %1087 = vmatmul.mubr.bf16.gmra.mxu0 %v526
      %v1088 = vpop.f32.mrf.mxu0
      %v1089 = vadd.f32 %v992, %v1088
      %v1090 = vpop.f32.mrf.mxu0
      %v1091 = vpop.f32.mrf.mxu0
      %v1092 = vadd.f32 %v995, %v1091
      %v1093 = vpop.f32.mrf.mxu0
      %1094 = vmatprep.mubr.bf16.mxu0 0
      %1095 = vmatmul.mubr.bf16.gmra.mxu0 %v531
      %v1096 = vpop.f32.mrf.mxu0
      %v1097 = vadd.f32 %v1000, %v1096
      %v1098 = vpop.f32.mrf.mxu0
      %v1099 = vpop.f32.mrf.mxu0
      %v1100 = vadd.f32 %v1003, %v1099
      %v1101 = vpop.f32.mrf.mxu0
      %1102 = vdwg.mxu0
      %v1103 = vmax.f32 %v1041, 0.0
      %v1104 = vmax.f32 %v1044, 0.0
      %v1105 = vmax.f32 %v1049, 0.0
      %v1106 = vmax.f32 %v1052, 0.0
      %v1107 = vmax.f32 %v1057, 0.0
      %v1108 = vmax.f32 %v1060, 0.0
      %v1109 = vmax.f32 %v1065, 0.0
      %v1110 = vmax.f32 %v1068, 0.0
      %v1111 = vmax.f32 %v1073, 0.0
      %v1112 = vmax.f32 %v1076, 0.0
      %v1113 = vmax.f32 %v1081, 0.0
      %v1114 = vmax.f32 %v1084, 0.0
      %v1115 = vmax.f32 %v1089, 0.0
      %v1116 = vmax.f32 %v1092, 0.0
      %v1117 = vmax.f32 %v1097, 0.0
      %v1118 = vmax.f32 %v1100, 0.0
      %v1119 = vpack.c.bf16 %v1104, %v1103
      %v1120 = vpack.c.bf16 %v1106, %v1105
      %v1121 = vpack.c.bf16 %v1108, %v1107
      %v1122 = vpack.c.bf16 %v1110, %v1109
      %v1123 = vpack.c.bf16 %v1112, %v1111
      %v1124 = vpack.c.bf16 %v1114, %v1113
      %v1125 = vpack.c.bf16 %v1116, %v1115
      %v1126 = vpack.c.bf16 %v1118, %v1117
      %v1135 = vunpack.c.l.b16 %v1119
      %v1136 = vunpack.c.h.b16 %v1119
      %v1137 = vunpack.c.l.b16 %v1120
      %v1138 = vunpack.c.h.b16 %v1120
      %v1139 = vunpack.c.l.b16 %v1121
      %v1140 = vunpack.c.h.b16 %v1121
      %v1141 = vunpack.c.l.b16 %v1122
      %v1142 = vunpack.c.h.b16 %v1122
      %v1143 = vunpack.c.l.b16 %v1123
      %v1144 = vunpack.c.h.b16 %v1123
      %v1145 = vunpack.c.l.b16 %v1124
      %v1146 = vunpack.c.h.b16 %v1124
      %v1147 = vunpack.c.l.b16 %v1125
      %v1148 = vunpack.c.h.b16 %v1125
      %v1149 = vunpack.c.l.b16 %v1126
      %v1150 = vunpack.c.h.b16 %v1126
      %v1151 = vpack.c.b16 %v1135, %v1135
      %v1152 = vpack.c.b16 %v1136, %v1136
      %v1153 = vpack.c.b16 %v1137, %v1137
      %v1154 = vpack.c.b16 %v1138, %v1138
      %v1155 = vpack.c.b16 %v1139, %v1139
      %v1156 = vpack.c.b16 %v1140, %v1140
      %v1157 = vpack.c.b16 %v1141, %v1141
      %v1158 = vpack.c.b16 %v1142, %v1142
      %v1159 = vpack.c.b16 %v1143, %v1143
      %v1160 = vpack.c.b16 %v1144, %v1144
      %v1161 = vpack.c.b16 %v1145, %v1145
      %v1162 = vpack.c.b16 %v1146, %v1146
      %v1163 = vpack.c.b16 %v1147, %v1147
      %v1164 = vpack.c.b16 %v1148, %v1148
      %v1165 = vpack.c.b16 %v1149, %v1149
      %v1166 = vpack.c.b16 %v1150, %v1150
      %1183 = vst [vmem:[%s226] sm:$0xf] %v1151
      %1184 = vst [vmem:[%s226 + $0x4] sm:$0xf] %v1152
      %1185 = vst [vmem:[%s226 + $0x8] sm:$0xf] %v1153
      %1186 = vst [vmem:[%s226 + $0xc] sm:$0xf] %v1154
      %1187 = vst [vmem:[%s226 + $0x10] sm:$0xf] %v1155
      %1188 = vst [vmem:[%s226 + $0x14] sm:$0xf] %v1156
      %1189 = vst [vmem:[%s226 + $0x18] sm:$0xf] %v1157
      %1190 = vst [vmem:[%s226 + $0x1c] sm:$0xf] %v1158
      %1191 = vst [vmem:[%s226 + $0x20] sm:$0xf] %v1159
      %1192 = vst [vmem:[%s226 + $0x24] sm:$0xf] %v1160
      %1193 = vst [vmem:[%s226 + $0x28] sm:$0xf] %v1161
      %1194 = vst [vmem:[%s226 + $0x2c] sm:$0xf] %v1162
      %1195 = vst [vmem:[%s226 + $0x30] sm:$0xf] %v1163
      %1196 = vst [vmem:[%s226 + $0x34] sm:$0xf] %v1164
      %1197 = vst [vmem:[%s226 + $0x38] sm:$0xf] %v1165
      %1198 = vst [vmem:[%s226 + $0x3c] sm:$0xf] %v1166
      %s1199 = smul.u32 16, %s18
      %p1200 = scmp.lt.s32.totalorder %s1199, 783
      %s1201 = scalar_select %p1200, %s1199, 783
      %p1202 = scmp.lt.s32.totalorder %s19, 0
      %s1203 = scalar_select %p1202, %s19, 0
      %s1204 = sadd.s32 %s1203, %s1201
      %s1205 = smul.addr %s1204, 4
      %s1206 = scalar_lea.vmem %s3, %s1205
      // Predicated region
      $region33: #{vgg19ca_forward.5} parent=31 // pred_check
        %p1207 = pneg %p124
      $region34: #{vgg19ca_forward.5} parent=31 // pred_check_branch
        %1209 = sbr.rel (%p1207) target = $region36
      $region35: #{vgg19ca_forward.5} parent=31 // pred_region
        %s1210 = smul.u32 16, %s18
      $region36: #{vgg19ca_forward.5} parent=31 // pred_fallthru
        _
    $region32: #{vgg19ca_forward.5} parent=5 // pred_fallthru
      _
    %p1211 = scmp.le.s32.totalorder 2, %s9
    // Predicated region
    $region37: #{vgg19ca_forward.5} parent=5 // pred_check
      %p1212 = pneg %p1211
    $region38: #{vgg19ca_forward.5} parent=5 // pred_check_branch
      %1214 = sbr.rel (%p1212) target = $region40
    $region39: #{vgg19ca_forward.5} parent=5 // pred_region
      %s1215 = ssub.s32 %s9, 2
      // Predicated region
      $region41: #{vgg19ca_forward.5} parent=39 // pred_check
        %p1216 = pneg %p130
      $region42: #{vgg19ca_forward.5} parent=39 // pred_check_branch
        %1218 = sbr.rel (%p1216) target = $region44
      $region43: #{vgg19ca_forward.5} parent=39 // pred_region
        %s1219 = smul.u32 16, %s20
        %p1220 = scmp.lt.s32.totalorder %s1219, 783
        %s1221 = scalar_select %p1220, %s1219, 783
        %p1222 = scmp.lt.s32.totalorder %s21, 0
        %s1223 = scalar_select %p1222, %s21, 0
        %s1224 = sadd.s32 %s1223, %s1221
        %s1225 = smul.addr %s1224, 4
        %s1226 = scalar_lea.vmem %s3, %s1225
      $region44: #{vgg19ca_forward.5} parent=39 // pred_fallthru
        _
    $region40: #{vgg19ca_forward.5} parent=5 // pred_fallthru
      _
  $region6: #{vgg19ca_forward.5} parent=0 // loop_footer
    %s13 = sadd.s32 1, %s9
  $region7: #{vgg19ca_forward.5} parent=0 // loop_footer_branch
    %8 = sbr.rel target = $region3
  $region8: #{vgg19ca_forward.5} parent=0 // loop_exit
    _

// kernel: vgg19ca_forward.7
$region0: #{vgg19ca_forward.7}
  #allocation0 [shape = 'u32[]', space=smem, size = 0x4, offset = 0x4, fixed_abs, tag = 'smem constant byte address 0x4 - core index']
  #allocation1 [shape = 'u32[144,128]{1,0:T(1,128)}', space=vmem, size = 0x12000, scoped, tag = 'internal scratch']
  %s0 = inlined_call_operand.vmem [shape: bf16[16,512], index: 0, kind: input, shape index: {}]
  %s1 = inlined_call_operand.vmem [shape: bf16[512,128], index: 1, kind: input, shape index: {}]
  %s2 = inlined_call_operand.vmem [shape: f32[1,128], index: 2, kind: input, shape index: {}]
  %s3 = inlined_call_operand.vmem [shape: f32[16,128], index: 3, kind: output, shape index: {}]
  %s4 = sld [smem:[#allocation0]]
  $region22: #{vgg19ca_forward.7} parent=0
    _
  %s6 = ssub.s32 1, %s4
  %s7 = scalar_select 0, %s6, %s4
  // Predicated region
  $region2: #{vgg19ca_forward.7} parent=0 // pred_check
    _
  $region3: #{vgg19ca_forward.7} parent=0 // pred_check_branch
    %9 = sbr.rel (0) target = $region5
  $region4: #{vgg19ca_forward.7} parent=0 // pred_region
    _
  $region5: #{vgg19ca_forward.7} parent=0 // pred_fallthru
    _
  // Predicated region
  $region6: #{vgg19ca_forward.7} parent=0 // pred_check
    _
  $region7: #{vgg19ca_forward.7} parent=0 // pred_check_branch
    %11 = sbr.rel (0) target = $region9
  $region8: #{vgg19ca_forward.7} parent=0 // pred_region
    _
  $region9: #{vgg19ca_forward.7} parent=0 // pred_fallthru
    _
  // Predicated region
  $region10: #{vgg19ca_forward.7} parent=0 // pred_check
    _
  $region11: #{vgg19ca_forward.7} parent=0 // pred_check_branch
    %13 = sbr.rel (0) target = $region13
  $region12: #{vgg19ca_forward.7} parent=0 // pred_region
    _
  $region13: #{vgg19ca_forward.7} parent=0 // pred_fallthru
    _
  %v15 = vld [vmem:[%s0] sm:$0xff]
  %v16 = vld [vmem:[%s0 + $0x8] sm:$0xff]
  %v17 = vld [vmem:[%s0 + $0x10] sm:$0xff]
  %v18 = vld [vmem:[%s0 + $0x18] sm:$0xff]
  %v19 = vld [vmem:[%s1] sm:$0xf]
  %v20 = vld [vmem:[%s1 + $0x4] sm:$0xf]
  %v21 = vld [vmem:[%s1 + $0x8] sm:$0xf]
  %v22 = vld [vmem:[%s1 + $0xc] sm:$0xf]
  %v23 = vld [vmem:[%s1 + $0x10] sm:$0xf]
  %v24 = vld [vmem:[%s1 + $0x14] sm:$0xf]
  %v25 = vld [vmem:[%s1 + $0x18] sm:$0xf]
  %v26 = vld [vmem:[%s1 + $0x1c] sm:$0xf]
  %v27 = vld [vmem:[%s1 + $0x20] sm:$0xf]
  %v28 = vld [vmem:[%s1 + $0x24] sm:$0xf]
  %v29 = vld [vmem:[%s1 + $0x28] sm:$0xf]
  %v30 = vld [vmem:[%s1 + $0x2c] sm:$0xf]
  %v31 = vld [vmem:[%s1 + $0x30] sm:$0xf]
  %v32 = vld [vmem:[%s1 + $0x34] sm:$0xf]
  %v33 = vld [vmem:[%s1 + $0x38] sm:$0xf]
  %v34 = vld [vmem:[%s1 + $0x3c] sm:$0xf]
  %v35 = vld [vmem:[%s1 + $0x40] sm:$0xf]
  %v36 = vld [vmem:[%s1 + $0x44] sm:$0xf]
  %v37 = vld [vmem:[%s1 + $0x48] sm:$0xf]
  %v38 = vld [vmem:[%s1 + $0x4c] sm:$0xf]
  %v39 = vld [vmem:[%s1 + $0x50] sm:$0xf]
  %v40 = vld [vmem:[%s1 + $0x54] sm:$0xf]
  %v41 = vld [vmem:[%s1 + $0x58] sm:$0xf]
  %v42 = vld [vmem:[%s1 + $0x5c] sm:$0xf]
  %v43 = vld [vmem:[%s1 + $0x60] sm:$0xf]
  %v44 = vld [vmem:[%s1 + $0x64] sm:$0xf]
  %v45 = vld [vmem:[%s1 + $0x68] sm:$0xf]
  %v46 = vld [vmem:[%s1 + $0x6c] sm:$0xf]
  %v47 = vld [vmem:[%s1 + $0x70] sm:$0xf]
  %v48 = vld [vmem:[%s1 + $0x74] sm:$0xf]
  %v49 = vld [vmem:[%s1 + $0x78] sm:$0xf]
  %v50 = vld [vmem:[%s1 + $0x7c] sm:$0xf]
  %v51 = vld [vmem:[%s1 + $0x80] sm:$0xf]
  %v52 = vld [vmem:[%s1 + $0x84] sm:$0xf]
  %v53 = vld [vmem:[%s1 + $0x88] sm:$0xf]
  %v54 = vld [vmem:[%s1 + $0x8c] sm:$0xf]
  %v55 = vld [vmem:[%s1 + $0x90] sm:$0xf]
  %v56 = vld [vmem:[%s1 + $0x94] sm:$0xf]
  %v57 = vld [vmem:[%s1 + $0x98] sm:$0xf]
  %v58 = vld [vmem:[%s1 + $0x9c] sm:$0xf]
  %v59 = vld [vmem:[%s1 + $0xa0] sm:$0xf]
  %v60 = vld [vmem:[%s1 + $0xa4] sm:$0xf]
  %v61 = vld [vmem:[%s1 + $0xa8] sm:$0xf]
  %v62 = vld [vmem:[%s1 + $0xac] sm:$0xf]
  %v63 = vld [vmem:[%s1 + $0xb0] sm:$0xf]
  %v64 = vld [vmem:[%s1 + $0xb4] sm:$0xf]
  %v65 = vld [vmem:[%s1 + $0xb8] sm:$0xf]
  %v66 = vld [vmem:[%s1 + $0xbc] sm:$0xf]
  %v67 = vld [vmem:[%s1 + $0xc0] sm:$0xf]
  %v68 = vld [vmem:[%s1 + $0xc4] sm:$0xf]
  %v69 = vld [vmem:[%s1 + $0xc8] sm:$0xf]
  %v70 = vld [vmem:[%s1 + $0xcc] sm:$0xf]
  %v71 = vld [vmem:[%s1 + $0xd0] sm:$0xf]
  %v72 = vld [vmem:[%s1 + $0xd4] sm:$0xf]
  %v73 = vld [vmem:[%s1 + $0xd8] sm:$0xf]
  %v74 = vld [vmem:[%s1 + $0xdc] sm:$0xf]
  %v75 = vld [vmem:[%s1 + $0xe0] sm:$0xf]
  %v76 = vld [vmem:[%s1 + $0xe4] sm:$0xf]
  %v77 = vld [vmem:[%s1 + $0xe8] sm:$0xf]
  %v78 = vld [vmem:[%s1 + $0xec] sm:$0xf]
  %v79 = vld [vmem:[%s1 + $0xf0] sm:$0xf]
  %v80 = vld [vmem:[%s1 + $0xf4] sm:$0xf]
  %v81 = vld [vmem:[%s1 + $0xf8] sm:$0xf]
  %v82 = vld [vmem:[%s1 + $0xfc] sm:$0xf]
  %v83 = vld [vmem:[%s2] sm:$0x1]
  %v85 = vlaneseq
  %v86 = vshrl.u32 %v85, 7
  %v87 = vsub.s32 0, %v86
  %v88 = vrot.slane %v83, %v87
  %v94 = vunpack.c.l.b16 %v15
  %v95 = vunpack.c.h.b16 %v15
  %v96 = vunpack.c.l.b16 %v16
  %v97 = vunpack.c.h.b16 %v16
  %v98 = vunpack.c.l.b16 %v17
  %v99 = vunpack.c.h.b16 %v17
  %v100 = vunpack.c.l.b16 %v18
  %v101 = vunpack.c.h.b16 %v18
  %v102 = vpack.c.b16 %v98, %v94
  %v103 = vpack.c.b16 %v99, %v95
  %v104 = vpack.c.b16 %v100, %v96
  %v105 = vpack.c.b16 %v101, %v97
  %v174 = vunpack.c.l.b16 %v19
  %v175 = vunpack.c.l.b16 %v20
  %v176 = vunpack.c.l.b16 %v21
  %v177 = vunpack.c.l.b16 %v22
  %v178 = vunpack.c.l.b16 %v23
  %v179 = vunpack.c.l.b16 %v24
  %v180 = vunpack.c.l.b16 %v25
  %v181 = vunpack.c.l.b16 %v26
  %v182 = vunpack.c.l.b16 %v27
  %v183 = vunpack.c.l.b16 %v28
  %v184 = vunpack.c.l.b16 %v29
  %v185 = vunpack.c.l.b16 %v30
  %v186 = vunpack.c.l.b16 %v31
  %v187 = vunpack.c.l.b16 %v32
  %v188 = vunpack.c.l.b16 %v33
  %v189 = vunpack.c.l.b16 %v34
  %v190 = vunpack.c.l.b16 %v35
  %v191 = vunpack.c.l.b16 %v36
  %v192 = vunpack.c.l.b16 %v37
  %v193 = vunpack.c.l.b16 %v38
  %v194 = vunpack.c.l.b16 %v39
  %v195 = vunpack.c.l.b16 %v40
  %v196 = vunpack.c.l.b16 %v41
  %v197 = vunpack.c.l.b16 %v42
  %v198 = vunpack.c.l.b16 %v43
  %v199 = vunpack.c.l.b16 %v44
  %v200 = vunpack.c.l.b16 %v45
  %v201 = vunpack.c.l.b16 %v46
  %v202 = vunpack.c.l.b16 %v47
  %v203 = vunpack.c.l.b16 %v48
  %v204 = vunpack.c.l.b16 %v49
  %v205 = vunpack.c.l.b16 %v50
  %v206 = vunpack.c.l.b16 %v51
  %v207 = vunpack.c.l.b16 %v52
  %v208 = vunpack.c.l.b16 %v53
  %v209 = vunpack.c.l.b16 %v54
  %v210 = vunpack.c.l.b16 %v55
  %v211 = vunpack.c.l.b16 %v56
  %v212 = vunpack.c.l.b16 %v57
  %v213 = vunpack.c.l.b16 %v58
  %v214 = vunpack.c.l.b16 %v59
  %v215 = vunpack.c.l.b16 %v60
  %v216 = vunpack.c.l.b16 %v61
  %v217 = vunpack.c.l.b16 %v62
  %v218 = vunpack.c.l.b16 %v63
  %v219 = vunpack.c.l.b16 %v64
  %v220 = vunpack.c.l.b16 %v65
  %v221 = vunpack.c.l.b16 %v66
  %v222 = vunpack.c.l.b16 %v67
  %v223 = vunpack.c.l.b16 %v68
  %v224 = vunpack.c.l.b16 %v69
  %v225 = vunpack.c.l.b16 %v70
  %v226 = vunpack.c.l.b16 %v71
  %v227 = vunpack.c.l.b16 %v72
  %v228 = vunpack.c.l.b16 %v73
  %v229 = vunpack.c.l.b16 %v74
  %v230 = vunpack.c.l.b16 %v75
  %v231 = vunpack.c.l.b16 %v76
  %v232 = vunpack.c.l.b16 %v77
  %v233 = vunpack.c.l.b16 %v78
  %v234 = vunpack.c.l.b16 %v79
  %v235 = vunpack.c.l.b16 %v80
  %v236 = vunpack.c.l.b16 %v81
  %v237 = vunpack.c.l.b16 %v82
  %v238 = vpack.c.b16 %v175, %v174
  %v239 = vpack.c.b16 %v177, %v176
  %v240 = vpack.c.b16 %v179, %v178
  %v241 = vpack.c.b16 %v181, %v180
  %v242 = vpack.c.b16 %v183, %v182
  %v243 = vpack.c.b16 %v185, %v184
  %v244 = vpack.c.b16 %v187, %v186
  %v245 = vpack.c.b16 %v189, %v188
  %v246 = vpack.c.b16 %v191, %v190
  %v247 = vpack.c.b16 %v193, %v192
  %v248 = vpack.c.b16 %v195, %v194
  %v249 = vpack.c.b16 %v197, %v196
  %v250 = vpack.c.b16 %v199, %v198
  %v251 = vpack.c.b16 %v201, %v200
  %v252 = vpack.c.b16 %v203, %v202
  %v253 = vpack.c.b16 %v205, %v204
  %v254 = vpack.c.b16 %v207, %v206
  %v255 = vpack.c.b16 %v209, %v208
  %v256 = vpack.c.b16 %v211, %v210
  %v257 = vpack.c.b16 %v213, %v212
  %v258 = vpack.c.b16 %v215, %v214
  %v259 = vpack.c.b16 %v217, %v216
  %v260 = vpack.c.b16 %v219, %v218
  %v261 = vpack.c.b16 %v221, %v220
  %v262 = vpack.c.b16 %v223, %v222
  %v263 = vpack.c.b16 %v225, %v224
  %v264 = vpack.c.b16 %v227, %v226
  %v265 = vpack.c.b16 %v229, %v228
  %v266 = vpack.c.b16 %v231, %v230
  %v267 = vpack.c.b16 %v233, %v232
  %v268 = vpack.c.b16 %v235, %v234
  %v269 = vpack.c.b16 %v237, %v236
  %302 = vmatprep.subr.bf16.mxu0 0
  %303 = vmatpush1.bf16.msra.mxu0 %v245
  %304 = vmatprep.subr.bf16.mxu0 0
  %305 = vmatpush1.bf16.msra.mxu0 %v244
  %306 = vmatprep.subr.bf16.mxu0 0
  %307 = vmatpush1.bf16.msra.mxu0 %v243
  %308 = vmatprep.subr.bf16.mxu0 0
  %309 = vmatpush1.bf16.msra.mxu0 %v242
  %310 = vmatprep.subr.bf16.mxu0 0
  %311 = vmatpush1.bf16.msra.mxu0 %v241
  %312 = vmatprep.subr.bf16.mxu0 0
  %313 = vmatpush1.bf16.msra.mxu0 %v240
  %314 = vmatprep.subr.bf16.mxu0 0
  %315 = vmatpush1.bf16.msra.mxu0 %v239
  %316 = vmatprep.subr.bf16.mxu0 0
  %317 = vmatpush1.bf16.msra.mxu0 %v238
  %318 = vmatprep.subr.bf16.mxu0 0
  %319 = vmatpush2.bf16.msra.mxu0 %v253
  %320 = vmatprep.subr.bf16.mxu0 0
  %321 = vmatpush2.bf16.msra.mxu0 %v252
  %322 = vmatprep.subr.bf16.mxu0 0
  %323 = vmatpush2.bf16.msra.mxu0 %v251
  %324 = vmatprep.subr.bf16.mxu0 0
  %325 = vmatpush2.bf16.msra.mxu0 %v250
  %326 = vmatprep.subr.bf16.mxu0 0
  %327 = vmatpush2.bf16.msra.mxu0 %v249
  %328 = vmatprep.subr.bf16.mxu0 0
  %329 = vmatpush2.bf16.msra.mxu0 %v248
  %330 = vmatprep.subr.bf16.mxu0 0
  %331 = vmatpush2.bf16.msra.mxu0 %v247
  %332 = vmatprep.subr.bf16.mxu0 0
  %333 = vmatpush2.bf16.msra.mxu0 %v246
  %334 = vmatprep.mubr.bf16.mxu0 %v103
  %335 = vmatmul.mubr.bf16.gmra.mxu0 %v102
  %v336 = vpop.f32.mrf.mxu0
  %v337 = vadd.f32 %v88, %v336
  %v338 = vpop.f32.mrf.mxu0
  %v339 = vpop.f32.mrf.mxu0
  %v340 = vadd.f32 %v88, %v339
  %v341 = vpop.f32.mrf.mxu0
  %342 = vdwg.mxu0
  %343 = vmatprep.subr.bf16.mxu0 0
  %344 = vmatpush1.bf16.msra.mxu0 %v261
  %345 = vmatprep.subr.bf16.mxu0 0
  %346 = vmatpush1.bf16.msra.mxu0 %v260
  %347 = vmatprep.subr.bf16.mxu0 0
  %348 = vmatpush1.bf16.msra.mxu0 %v259
  %349 = vmatprep.subr.bf16.mxu0 0
  %350 = vmatpush1.bf16.msra.mxu0 %v258
  %351 = vmatprep.subr.bf16.mxu0 0
  %352 = vmatpush1.bf16.msra.mxu0 %v257
  %353 = vmatprep.subr.bf16.mxu0 0
  %354 = vmatpush1.bf16.msra.mxu0 %v256
  %355 = vmatprep.subr.bf16.mxu0 0
  %356 = vmatpush1.bf16.msra.mxu0 %v255
  %357 = vmatprep.subr.bf16.mxu0 0
  %358 = vmatpush1.bf16.msra.mxu0 %v254
  %359 = vmatprep.subr.bf16.mxu0 0
  %360 = vmatpush2.bf16.msra.mxu0 %v269
  %361 = vmatprep.subr.bf16.mxu0 0
  %362 = vmatpush2.bf16.msra.mxu0 %v268
  %363 = vmatprep.subr.bf16.mxu0 0
  %364 = vmatpush2.bf16.msra.mxu0 %v267
  %365 = vmatprep.subr.bf16.mxu0 0
  %366 = vmatpush2.bf16.msra.mxu0 %v266
  %367 = vmatprep.subr.bf16.mxu0 0
  %368 = vmatpush2.bf16.msra.mxu0 %v265
  %369 = vmatprep.subr.bf16.mxu0 0
  %370 = vmatpush2.bf16.msra.mxu0 %v264
  %371 = vmatprep.subr.bf16.mxu0 0
  %372 = vmatpush2.bf16.msra.mxu0 %v263
  %373 = vmatprep.subr.bf16.mxu0 0
  %374 = vmatpush2.bf16.msra.mxu0 %v262
  %375 = vmatprep.mubr.bf16.mxu0 %v105
  %376 = vmatmul.mubr.bf16.gmra.mxu0 %v104
  %v377 = vpop.f32.mrf.mxu0
  %v378 = vadd.f32 %v337, %v377
  %v379 = vpop.f32.mrf.mxu0
  %v380 = vpop.f32.mrf.mxu0
  %v381 = vadd.f32 %v340, %v380
  %v382 = vpop.f32.mrf.mxu0
  %383 = vdwg.mxu0
  %384 = vst [vmem:[%s3] sm:$0xff] %v378
  %385 = vst [vmem:[%s3 + $0x8] sm:$0xff] %v381
  // Predicated region
  $region14: #{vgg19ca_forward.7} parent=0 // pred_check
    _
  $region15: #{vgg19ca_forward.7} parent=0 // pred_check_branch
    %387 = sbr.rel (0) target = $region17
  $region16: #{vgg19ca_forward.7} parent=0 // pred_region
    _
  $region17: #{vgg19ca_forward.7} parent=0 // pred_fallthru
    _
  // Predicated region
  $region18: #{vgg19ca_forward.7} parent=0 // pred_check
    _
  $region19: #{vgg19ca_forward.7} parent=0 // pred_check_branch
    %389 = sbr.rel (0) target = $region21
  $region20: #{vgg19ca_forward.7} parent=0 // pred_region
    _
  $region21: #{vgg19ca_forward.7} parent=0 // pred_fallthru
    _

// kernel: vgg19ca_forward.6
$region0: #{vgg19ca_forward.6}
  #allocation0 [shape = 'u32[]', space=smem, size = 0x4, offset = 0x4, fixed_abs, tag = 'smem constant byte address 0x4 - core index']
  #allocation1 [shape = 'u32[144,128]{1,0:T(1,128)}', space=vmem, size = 0x12000, scoped, tag = 'internal scratch']
  %s0 = inlined_call_operand.vmem [shape: bf16[16,1536], index: 0, kind: input, shape index: {}]
  %s1 = inlined_call_operand.vmem [shape: bf16[1536,512], index: 1, kind: input, shape index: {}]
  %s2 = inlined_call_operand.vmem [shape: f32[1,512], index: 2, kind: input, shape index: {}]
  %s3 = inlined_call_operand.vmem [shape: bf16[16,512], index: 3, kind: output, shape index: {}]
  %s4 = sld [smem:[#allocation0]]
  $region117: #{vgg19ca_forward.6} parent=0
    _
  %s6 = ssub.s32 1, %s4
  %s7 = scalar_select 0, %s6, %s4
  $region1: #{vgg19ca_forward.6} parent=0
    #allocation2 [shape = 'u8[1572864]{0}', space=vmem, size = 0x180000, scoped, tag = 'input window, operand 1']
    #allocation3 [shape = 'u8[16384]{0}', space=vmem, size = 0x4000, scoped, tag = 'output window, operand 0']
    loop: start=0, step=1, limit=4
    $region2: #{vgg19ca_forward.6} parent=1 // loop_pre_header
      _
    $region3: #{vgg19ca_forward.6} parent=1 // loop_header
      %s9 = sphi 0, %s13
      %p10 = scmp.ge.s32.totalorder %s9, 4
      %s16 = sphi 0, %s28
      %s17 = sphi 0, %s24
      %s18 = sphi 0, %s16
      %s19 = sphi 0, %s17
      %s20 = sphi 0, %s18
      %s21 = sphi 0, %s19
      %s31 = sphi 0, %s33
      %s34 = sphi 0, %s31
      %s35 = sphi 0, %s34
      %s51 = sphi 0, %s35
      %s57 = sphi 0, %s59
      %s60 = sphi 0, %s57
      %s61 = sphi 0, %s60
      %s77 = sphi 0, %s61
      %s83 = sphi 0, %s85
      %s86 = sphi 0, %s83
      %s87 = sphi 0, %s86
      %s103 = sphi 0, %s87
      %s111 = sphi 0, %s113
      %s114 = sphi 0, %s111
      %s115 = sphi 0, %s114
      %s131 = sphi 0, %s115
    $region4: #{vgg19ca_forward.6} parent=1 // loop_header_branch
      %12 = sbr.rel (%p10) target = $region8
    $region5: #{vgg19ca_forward.6} parent=1 // loop_body
      %s14 = ssub.s32 %s9, 1
      %s15 = ssub.s32 %s9, 2
      %s22 = sadd.s32 1, %s17
      %p23 = scmp.ge.s32.totalorder %s22, 2
      %s24 = scalar_select %p23, 0, %s22
      %s25 = sadd.s32 1, %s16
      %s26 = scalar_select %p23, %s25, %s16
      %p27 = scmp.ge.s32.totalorder %s26, 1
      %s28 = scalar_select %p27, 0, %s26
      %s29 = ssub.s32 %s16, %s28
      %p30 = scmp.eq.s32.totalorder %s29, 0
      %s32 = sadd.s32 %s31, 1
      %s33 = scalar_select %p30, %s31, %s32
      %p36 = pneg %p30
      %p37 = scmp.eq.s32.totalorder %s9, 1
      %p38 = por %p36, %p37
      %p39 = scmp.ne.s32.totalorder %s31, %s34
      %p40 = scmp.eq.s32.totalorder %s9, 0
      %p41 = por %p39, %p40
      %p42 = scmp.ne.s32.totalorder %s31, %s34
      %p43 = scmp.eq.s32.totalorder %s14, 1
      %p44 = por %p42, %p43
      %p45 = scmp.ne.s32.totalorder %s34, %s35
      %p46 = scmp.eq.s32.totalorder %s14, 0
      %p47 = por %p45, %p46
      %p48 = scmp.ne.s32.totalorder %s34, %s35
      %p49 = scmp.eq.s32.totalorder %s15, 1
      %p50 = por %p48, %p49
      %p52 = scmp.ne.s32.totalorder %s35, %s51
      %p53 = scmp.eq.s32.totalorder %s15, 0
      %p54 = por %p52, %p53
      %s55 = ssub.s32 %s17, %s24
      %p56 = scmp.eq.s32.totalorder %s55, 0
      %s58 = sadd.s32 %s57, 1
      %s59 = scalar_select %p56, %s57, %s58
      %p62 = pneg %p56
      %p63 = scmp.eq.s32.totalorder %s9, 1
      %p64 = por %p62, %p63
      %p65 = scmp.ne.s32.totalorder %s57, %s60
      %p66 = scmp.eq.s32.totalorder %s9, 0
      %p67 = por %p65, %p66
      %p68 = scmp.ne.s32.totalorder %s57, %s60
      %p69 = scmp.eq.s32.totalorder %s14, 1
      %p70 = por %p68, %p69
      %p71 = scmp.ne.s32.totalorder %s60, %s61
      %p72 = scmp.eq.s32.totalorder %s14, 0
      %p73 = por %p71, %p72
      %p74 = scmp.ne.s32.totalorder %s60, %s61
      %p75 = scmp.eq.s32.totalorder %s15, 1
      %p76 = por %p74, %p75
      %p78 = scmp.ne.s32.totalorder %s61, %s77
      %p79 = scmp.eq.s32.totalorder %s15, 0
      %p80 = por %p78, %p79
      %s81 = ssub.s32 %s17, %s24
      %p82 = scmp.eq.s32.totalorder %s81, 0
      %s84 = sadd.s32 %s83, 1
      %s85 = scalar_select %p82, %s83, %s84
      %p88 = pneg %p82
      %p89 = scmp.eq.s32.totalorder %s9, 1
      %p90 = por %p88, %p89
      %p91 = scmp.ne.s32.totalorder %s83, %s86
      %p92 = scmp.eq.s32.totalorder %s9, 0
      %p93 = por %p91, %p92
      %p94 = scmp.ne.s32.totalorder %s83, %s86
      %p95 = scmp.eq.s32.totalorder %s14, 1
      %p96 = por %p94, %p95
      %p97 = scmp.ne.s32.totalorder %s86, %s87
      %p98 = scmp.eq.s32.totalorder %s14, 0
      %p99 = por %p97, %p98
      %p100 = scmp.ne.s32.totalorder %s86, %s87
      %p101 = scmp.eq.s32.totalorder %s15, 1
      %p102 = por %p100, %p101
      %p104 = scmp.ne.s32.totalorder %s87, %s103
      %p105 = scmp.eq.s32.totalorder %s15, 0
      %p106 = por %p104, %p105
      %s107 = ssub.s32 %s16, %s28
      %s108 = ssub.s32 %s17, %s24
      %s109 = sor.u32 %s107, %s108
      %p110 = scmp.eq.s32.totalorder %s109, 0
      %s112 = sadd.s32 %s111, 1
      %s113 = scalar_select %p110, %s111, %s112
      %p116 = pneg %p110
      %p117 = scmp.eq.s32.totalorder %s9, 1
      %p118 = por %p116, %p117
      %p119 = scmp.ne.s32.totalorder %s111, %s114
      %p120 = scmp.eq.s32.totalorder %s9, 0
      %p121 = por %p119, %p120
      %p122 = scmp.ne.s32.totalorder %s111, %s114
      %p123 = scmp.eq.s32.totalorder %s14, 1
      %p124 = por %p122, %p123
      %p125 = scmp.ne.s32.totalorder %s114, %s115
      %p126 = scmp.eq.s32.totalorder %s14, 0
      %p127 = por %p125, %p126
      %p128 = scmp.ne.s32.totalorder %s114, %s115
      %p129 = scmp.eq.s32.totalorder %s15, 1
      %p130 = por %p128, %p129
      %p132 = scmp.ne.s32.totalorder %s115, %s131
      %p133 = scmp.eq.s32.totalorder %s15, 0
      %p134 = por %p132, %p133
      %p135 = scmp.le.s32.totalorder 1, %s9
      %p136 = scmp.lt.s32.totalorder %s9, 3
      %p137 = pnand %p135, %p136
      %p138 = pneg %p137
      // Predicated region
      $region9: #{vgg19ca_forward.6} parent=5 // pred_check
        _
      $region10: #{vgg19ca_forward.6} parent=5 // pred_check_branch
        %140 = sbr.rel (%p137) target = $region12
      $region11: #{vgg19ca_forward.6} parent=5 // pred_region
        %s141 = ssub.s32 %s9, 1
        // Predicated region
        $region13: #{vgg19ca_forward.6} parent=11 // pred_check
          %p142 = pneg %p47
        $region14: #{vgg19ca_forward.6} parent=11 // pred_check_branch
          %144 = sbr.rel (%p142) target = $region16
        $region15: #{vgg19ca_forward.6} parent=11 // pred_region
          %s145 = smul.u32 2, %s18
          %p146 = scmp.lt.s32.totalorder %s145, 1
          %s147 = scalar_select %p146, %s145, 1
          %s148 = smul.addr %s147, 12
          %s149 = smul.addr %s148, 4
          %s150 = scalar_lea.vmem %s0, %s149
          %s151 = smul.u32 2, %s18
        $region16: #{vgg19ca_forward.6} parent=11 // pred_fallthru
          _
      $region12: #{vgg19ca_forward.6} parent=5 // pred_fallthru
        _
      %p152 = scmp.lt.s32.totalorder %s9, 2
      // Predicated region
      $region17: #{vgg19ca_forward.6} parent=5 // pred_check
        %p153 = pneg %p152
      $region18: #{vgg19ca_forward.6} parent=5 // pred_check_branch
        %155 = sbr.rel (%p153) target = $region20
      $region19: #{vgg19ca_forward.6} parent=5 // pred_region
        // Predicated region
        $region21: #{vgg19ca_forward.6} parent=19 // pred_check
          %p156 = pneg %p67
        $region22: #{vgg19ca_forward.6} parent=19 // pred_check_branch
          %158 = sbr.rel (%p156) target = $region24
        $region23: #{vgg19ca_forward.6} parent=19 // pred_region
          %s159 = sand.u32 %s57, 1
          %s160 = sand.u32 %s57, 1
          %s161 = smul.addr %s160, 1536
          %s162 = scalar_lea.vmem [#allocation2], %s161
          %s163 = smul.u32 2, %s17
          %s164 = smul.addr %s163, 4
          %s165 = scalar_lea.vmem %s1, %s164
          // Predicated region
          $region25: #{vgg19ca_forward.6} parent=23 // pred_check
            _
          $region26: #{vgg19ca_forward.6} parent=23 // pred_check_branch
            %167 = sbr.rel (0) target = $region28
          $region27: #{vgg19ca_forward.6} parent=23 // pred_region
            // Predicated region
            $region29: #{vgg19ca_forward.6} parent=27 // pred_check
              _
            $region30: #{vgg19ca_forward.6} parent=27 // pred_check_branch
              %169 = sbr.rel (0) target = $region32
            $region31: #{vgg19ca_forward.6} parent=27 // pred_region
              // Predicated region
              $region44: #{vgg19ca_forward.6} parent=31 // pred_check
                _
              $region45: #{vgg19ca_forward.6} parent=31 // pred_check_branch
                %567 = sbr.rel (0) target = $region47
              $region46: #{vgg19ca_forward.6} parent=31 // pred_region
                loop: start=0, step=1, limit=1
                $region48: #{vgg19ca_forward.6} parent=46 // loop_pre_header
                  _
                $region49: #{vgg19ca_forward.6} parent=46 // loop_header
                  %s569 = sphi 0, %s573
                  %p570 = scmp.ge.s32.totalorder %s569, 1
                  %s574 = sphi %s165, %s165
                  %s575 = sphi %s162, %s162
                $region50: #{vgg19ca_forward.6} parent=46 // loop_header_branch
                  %572 = sbr.rel (%p570) target = $region54
                $region51: #{vgg19ca_forward.6} parent=46 // loop_body
                  %v576 = vld [vmem:[%s574] sm:$0xff]
                  %577 = vst [vmem:[%s575] sm:$0xff] %v576
                  %v578 = vld [vmem:[%s574 + $0x10] sm:$0xff]
                  %579 = vst [vmem:[%s575 + $0x8] sm:$0xff] %v578
                  %v580 = vld [vmem:[%s574 + $0x20] sm:$0xff]
                  %581 = vst [vmem:[%s575 + $0x10] sm:$0xff] %v580
                  %v582 = vld [vmem:[%s574 + $0x30] sm:$0xff]
                  %583 = vst [vmem:[%s575 + $0x18] sm:$0xff] %v582
                  %v584 = vld [vmem:[%s574 + $0x40] sm:$0xff]
                  %585 = vst [vmem:[%s575 + $0x20] sm:$0xff] %v584
                  %v586 = vld [vmem:[%s574 + $0x50] sm:$0xff]
                  %587 = vst [vmem:[%s575 + $0x28] sm:$0xff] %v586
                  %v588 = vld [vmem:[%s574 + $0x60] sm:$0xff]
                  %589 = vst [vmem:[%s575 + $0x30] sm:$0xff] %v588
                  %v590 = vld [vmem:[%s574 + $0x70] sm:$0xff]
                  %591 = vst [vmem:[%s575 + $0x38] sm:$0xff] %v590
                  %v592 = vld [vmem:[%s574 + $0x80] sm:$0xff]
                  %593 = vst [vmem:[%s575 + $0x40] sm:$0xff] %v592
                  %v594 = vld [vmem:[%s574 + $0x90] sm:$0xff]
                  %595 = vst [vmem:[%s575 + $0x48] sm:$0xff] %v594
                  %v596 = vld [vmem:[%s574 + $0xa0] sm:$0xff]
                  %597 = vst [vmem:[%s575 + $0x50] sm:$0xff] %v596
                  %v598 = vld [vmem:[%s574 + $0xb0] sm:$0xff]
                  %599 = vst [vmem:[%s575 + $0x58] sm:$0xff] %v598
                  %v600 = vld [vmem:[%s574 + $0xc0] sm:$0xff]
                  %601 = vst [vmem:[%s575 + $0x60] sm:$0xff] %v600
                  %v602 = vld [vmem:[%s574 + $0xd0] sm:$0xff]
                  %603 = vst [vmem:[%s575 + $0x68] sm:$0xff] %v602
                  %v604 = vld [vmem:[%s574 + $0xe0] sm:$0xff]
                  %605 = vst [vmem:[%s575 + $0x70] sm:$0xff] %v604
                  %v606 = vld [vmem:[%s574 + $0xf0] sm:$0xff]
                  %607 = vst [vmem:[%s575 + $0x78] sm:$0xff] %v606
                  %v608 = vld [vmem:[%s574 + $0x100] sm:$0xff]
                  %609 = vst [vmem:[%s575 + $0x80] sm:$0xff] %v608
                  %v610 = vld [vmem:[%s574 + $0x110] sm:$0xff]
                  %611 = vst [vmem:[%s575 + $0x88] sm:$0xff] %v610
                  %v612 = vld [vmem:[%s574 + $0x120] sm:$0xff]
                  %613 = vst [vmem:[%s575 + $0x90] sm:$0xff] %v612
                  %v614 = vld [vmem:[%s574 + $0x130] sm:$0xff]
                  %615 = vst [vmem:[%s575 + $0x98] sm:$0xff] %v614
                  %v616 = vld [vmem:[%s574 + $0x140] sm:$0xff]
                  %617 = vst [vmem:[%s575 + $0xa0] sm:$0xff] %v616
                  %v618 = vld [vmem:[%s574 + $0x150] sm:$0xff]
                  %619 = vst [vmem:[%s575 + $0xa8] sm:$0xff] %v618
                  %v620 = vld [vmem:[%s574 + $0x160] sm:$0xff]
                  %621 = vst [vmem:[%s575 + $0xb0] sm:$0xff] %v620
                  %v622 = vld [vmem:[%s574 + $0x170] sm:$0xff]
                  %623 = vst [vmem:[%s575 + $0xb8] sm:$0xff] %v622
                  %v624 = vld [vmem:[%s574 + $0x180] sm:$0xff]
                  %625 = vst [vmem:[%s575 + $0xc0] sm:$0xff] %v624
                  %v626 = vld [vmem:[%s574 + $0x190] sm:$0xff]
                  %627 = vst [vmem:[%s575 + $0xc8] sm:$0xff] %v626
                  %v628 = vld [vmem:[%s574 + $0x1a0] sm:$0xff]
                  %629 = vst [vmem:[%s575 + $0xd0] sm:$0xff] %v628
                  %v630 = vld [vmem:[%s574 + $0x1b0] sm:$0xff]
                  %631 = vst [vmem:[%s575 + $0xd8] sm:$0xff] %v630
                  %v632 = vld [vmem:[%s574 + $0x1c0] sm:$0xff]
                  %633 = vst [vmem:[%s575 + $0xe0] sm:$0xff] %v632
                  %v634 = vld [vmem:[%s574 + $0x1d0] sm:$0xff]
                  %635 = vst [vmem:[%s575 + $0xe8] sm:$0xff] %v634
                  %v636 = vld [vmem:[%s574 + $0x1e0] sm:$0xff]
                  %637 = vst [vmem:[%s575 + $0xf0] sm:$0xff] %v636
                  %v638 = vld [vmem:[%s574 + $0x1f0] sm:$0xff]
                  %639 = vst [vmem:[%s575 + $0xf8] sm:$0xff] %v638
                  %v640 = vld [vmem:[%s574 + $0x200] sm:$0xff]
                  %641 = vst [vmem:[%s575 + $0x100] sm:$0xff] %v640
                  %v642 = vld [vmem:[%s574 + $0x210] sm:$0xff]
                  %643 = vst [vmem:[%s575 + $0x108] sm:$0xff] %v642
                  %v644 = vld [vmem:[%s574 + $0x220] sm:$0xff]
                  %645 = vst [vmem:[%s575 + $0x110] sm:$0xff] %v644
                  %v646 = vld [vmem:[%s574 + $0x230] sm:$0xff]
                  %647 = vst [vmem:[%s575 + $0x118] sm:$0xff] %v646
                  %v648 = vld [vmem:[%s574 + $0x240] sm:$0xff]
                  %649 = vst [vmem:[%s575 + $0x120] sm:$0xff] %v648
                  %v650 = vld [vmem:[%s574 + $0x250] sm:$0xff]
                  %651 = vst [vmem:[%s575 + $0x128] sm:$0xff] %v650
                  %v652 = vld [vmem:[%s574 + $0x260] sm:$0xff]
                  %653 = vst [vmem:[%s575 + $0x130] sm:$0xff] %v652
                  %v654 = vld [vmem:[%s574 + $0x270] sm:$0xff]
                  %655 = vst [vmem:[%s575 + $0x138] sm:$0xff] %v654
                  %v656 = vld [vmem:[%s574 + $0x280] sm:$0xff]
                  %657 = vst [vmem:[%s575 + $0x140] sm:$0xff] %v656
                  %v658 = vld [vmem:[%s574 + $0x290] sm:$0xff]
                  %659 = vst [vmem:[%s575 + $0x148] sm:$0xff] %v658
                  %v660 = vld [vmem:[%s574 + $0x2a0] sm:$0xff]
                  %661 = vst [vmem:[%s575 + $0x150] sm:$0xff] %v660
                  %v662 = vld [vmem:[%s574 + $0x2b0] sm:$0xff]
                  %663 = vst [vmem:[%s575 + $0x158] sm:$0xff] %v662
                  %v664 = vld [vmem:[%s574 + $0x2c0] sm:$0xff]
                  %665 = vst [vmem:[%s575 + $0x160] sm:$0xff] %v664
                  %v666 = vld [vmem:[%s574 + $0x2d0] sm:$0xff]
                  %667 = vst [vmem:[%s575 + $0x168] sm:$0xff] %v666
                  %v668 = vld [vmem:[%s574 + $0x2e0] sm:$0xff]
                  %669 = vst [vmem:[%s575 + $0x170] sm:$0xff] %v668
                  %v670 = vld [vmem:[%s574 + $0x2f0] sm:$0xff]
                  %671 = vst [vmem:[%s575 + $0x178] sm:$0xff] %v670
                  %v672 = vld [vmem:[%s574 + $0x300] sm:$0xff]
                  %673 = vst [vmem:[%s575 + $0x180] sm:$0xff] %v672
                  %v674 = vld [vmem:[%s574 + $0x310] sm:$0xff]
                  %675 = vst [vmem:[%s575 + $0x188] sm:$0xff] %v674
                  %v676 = vld [vmem:[%s574 + $0x320] sm:$0xff]
                  %677 = vst [vmem:[%s575 + $0x190] sm:$0xff] %v676
                  %v678 = vld [vmem:[%s574 + $0x330] sm:$0xff]
                  %679 = vst [vmem:[%s575 + $0x198] sm:$0xff] %v678
                  %v680 = vld [vmem:[%s574 + $0x340] sm:$0xff]
                  %681 = vst [vmem:[%s575 + $0x1a0] sm:$0xff] %v680
                  %v682 = vld [vmem:[%s574 + $0x350] sm:$0xff]
                  %683 = vst [vmem:[%s575 + $0x1a8] sm:$0xff] %v682
                  %v684 = vld [vmem:[%s574 + $0x360] sm:$0xff]
                  %685 = vst [vmem:[%s575 + $0x1b0] sm:$0xff] %v684
                  %v686 = vld [vmem:[%s574 + $0x370] sm:$0xff]
                  %687 = vst [vmem:[%s575 + $0x1b8] sm:$0xff] %v686
                  %v688 = vld [vmem:[%s574 + $0x380] sm:$0xff]
                  %689 = vst [vmem:[%s575 + $0x1c0] sm:$0xff] %v688
                  %v690 = vld [vmem:[%s574 + $0x390] sm:$0xff]
                  %691 = vst [vmem:[%s575 + $0x1c8] sm:$0xff] %v690
                  %v692 = vld [vmem:[%s574 + $0x3a0] sm:$0xff]
                  %693 = vst [vmem:[%s575 + $0x1d0] sm:$0xff] %v692
                  %v694 = vld [vmem:[%s574 + $0x3b0] sm:$0xff]
                  %695 = vst [vmem:[%s575 + $0x1d8] sm:$0xff] %v694
                  %v696 = vld [vmem:[%s574 + $0x3c0] sm:$0xff]
                  %697 = vst [vmem:[%s575 + $0x1e0] sm:$0xff] %v696
                  %v698 = vld [vmem:[%s574 + $0x3d0] sm:$0xff]
                  %699 = vst [vmem:[%s575 + $0x1e8] sm:$0xff] %v698
                  %v700 = vld [vmem:[%s574 + $0x3e0] sm:$0xff]
                  %701 = vst [vmem:[%s575 + $0x1f0] sm:$0xff] %v700
                  %v702 = vld [vmem:[%s574 + $0x3f0] sm:$0xff]
                  %703 = vst [vmem:[%s575 + $0x1f8] sm:$0xff] %v702
                  %v704 = vld [vmem:[%s574 + $0x400] sm:$0xff]
                  %705 = vst [vmem:[%s575 + $0x200] sm:$0xff] %v704
                  %v706 = vld [vmem:[%s574 + $0x410] sm:$0xff]
                  %707 = vst [vmem:[%s575 + $0x208] sm:$0xff] %v706
                  %v708 = vld [vmem:[%s574 + $0x420] sm:$0xff]
                  %709 = vst [vmem:[%s575 + $0x210] sm:$0xff] %v708
                  %v710 = vld [vmem:[%s574 + $0x430] sm:$0xff]
                  %711 = vst [vmem:[%s575 + $0x218] sm:$0xff] %v710
                  %v712 = vld [vmem:[%s574 + $0x440] sm:$0xff]
                  %713 = vst [vmem:[%s575 + $0x220] sm:$0xff] %v712
                  %v714 = vld [vmem:[%s574 + $0x450] sm:$0xff]
                  %715 = vst [vmem:[%s575 + $0x228] sm:$0xff] %v714
                  %v716 = vld [vmem:[%s574 + $0x460] sm:$0xff]
                  %717 = vst [vmem:[%s575 + $0x230] sm:$0xff] %v716
                  %v718 = vld [vmem:[%s574 + $0x470] sm:$0xff]
                  %719 = vst [vmem:[%s575 + $0x238] sm:$0xff] %v718
                  %v720 = vld [vmem:[%s574 + $0x480] sm:$0xff]
                  %721 = vst [vmem:[%s575 + $0x240] sm:$0xff] %v720
                  %v722 = vld [vmem:[%s574 + $0x490] sm:$0xff]
                  %723 = vst [vmem:[%s575 + $0x248] sm:$0xff] %v722
                  %v724 = vld [vmem:[%s574 + $0x4a0] sm:$0xff]
                  %725 = vst [vmem:[%s575 + $0x250] sm:$0xff] %v724
                  %v726 = vld [vmem:[%s574 + $0x4b0] sm:$0xff]
                  %727 = vst [vmem:[%s575 + $0x258] sm:$0xff] %v726
                  %v728 = vld [vmem:[%s574 + $0x4c0] sm:$0xff]
                  %729 = vst [vmem:[%s575 + $0x260] sm:$0xff] %v728
                  %v730 = vld [vmem:[%s574 + $0x4d0] sm:$0xff]
                  %731 = vst [vmem:[%s575 + $0x268] sm:$0xff] %v730
                  %v732 = vld [vmem:[%s574 + $0x4e0] sm:$0xff]
                  %733 = vst [vmem:[%s575 + $0x270] sm:$0xff] %v732
                  %v734 = vld [vmem:[%s574 + $0x4f0] sm:$0xff]
                  %735 = vst [vmem:[%s575 + $0x278] sm:$0xff] %v734
                  %v736 = vld [vmem:[%s574 + $0x500] sm:$0xff]
                  %737 = vst [vmem:[%s575 + $0x280] sm:$0xff] %v736
                  %v738 = vld [vmem:[%s574 + $0x510] sm:$0xff]
                  %739 = vst [vmem:[%s575 + $0x288] sm:$0xff] %v738
                  %v740 = vld [vmem:[%s574 + $0x520] sm:$0xff]
                  %741 = vst [vmem:[%s575 + $0x290] sm:$0xff] %v740
                  %v742 = vld [vmem:[%s574 + $0x530] sm:$0xff]
                  %743 = vst [vmem:[%s575 + $0x298] sm:$0xff] %v742
                  %v744 = vld [vmem:[%s574 + $0x540] sm:$0xff]
                  %745 = vst [vmem:[%s575 + $0x2a0] sm:$0xff] %v744
                  %v746 = vld [vmem:[%s574 + $0x550] sm:$0xff]
                  %747 = vst [vmem:[%s575 + $0x2a8] sm:$0xff] %v746
                  %v748 = vld [vmem:[%s574 + $0x560] sm:$0xff]
                  %749 = vst [vmem:[%s575 + $0x2b0] sm:$0xff] %v748
                  %v750 = vld [vmem:[%s574 + $0x570] sm:$0xff]
                  %751 = vst [vmem:[%s575 + $0x2b8] sm:$0xff] %v750
                  %v752 = vld [vmem:[%s574 + $0x580] sm:$0xff]
                  %753 = vst [vmem:[%s575 + $0x2c0] sm:$0xff] %v752
                  %v754 = vld [vmem:[%s574 + $0x590] sm:$0xff]
                  %755 = vst [vmem:[%s575 + $0x2c8] sm:$0xff] %v754
                  %v756 = vld [vmem:[%s574 + $0x5a0] sm:$0xff]
                  %757 = vst [vmem:[%s575 + $0x2d0] sm:$0xff] %v756
                  %v758 = vld [vmem:[%s574 + $0x5b0] sm:$0xff]
                  %759 = vst [vmem:[%s575 + $0x2d8] sm:$0xff] %v758
                  %v760 = vld [vmem:[%s574 + $0x5c0] sm:$0xff]
                  %761 = vst [vmem:[%s575 + $0x2e0] sm:$0xff] %v760
                  %v762 = vld [vmem:[%s574 + $0x5d0] sm:$0xff]
                  %763 = vst [vmem:[%s575 + $0x2e8] sm:$0xff] %v762
                  %v764 = vld [vmem:[%s574 + $0x5e0] sm:$0xff]
                  %765 = vst [vmem:[%s575 + $0x2f0] sm:$0xff] %v764
                  %v766 = vld [vmem:[%s574 + $0x5f0] sm:$0xff]
                  %767 = vst [vmem:[%s575 + $0x2f8] sm:$0xff] %v766
                  %v768 = vld [vmem:[%s574 + $0x600] sm:$0xff]
                  %769 = vst [vmem:[%s575 + $0x300] sm:$0xff] %v768
                  %v770 = vld [vmem:[%s574 + $0x610] sm:$0xff]
                  %771 = vst [vmem:[%s575 + $0x308] sm:$0xff] %v770
                  %v772 = vld [vmem:[%s574 + $0x620] sm:$0xff]
                  %773 = vst [vmem:[%s575 + $0x310] sm:$0xff] %v772
                  %v774 = vld [vmem:[%s574 + $0x630] sm:$0xff]
                  %775 = vst [vmem:[%s575 + $0x318] sm:$0xff] %v774
                  %v776 = vld [vmem:[%s574 + $0x640] sm:$0xff]
                  %777 = vst [vmem:[%s575 + $0x320] sm:$0xff] %v776
                  %v778 = vld [vmem:[%s574 + $0x650] sm:$0xff]
                  %779 = vst [vmem:[%s575 + $0x328] sm:$0xff] %v778
                  %v780 = vld [vmem:[%s574 + $0x660] sm:$0xff]
                  %781 = vst [vmem:[%s575 + $0x330] sm:$0xff] %v780
                  %v782 = vld [vmem:[%s574 + $0x670] sm:$0xff]
                  %783 = vst [vmem:[%s575 + $0x338] sm:$0xff] %v782
                  %v784 = vld [vmem:[%s574 + $0x680] sm:$0xff]
                  %785 = vst [vmem:[%s575 + $0x340] sm:$0xff] %v784
                  %v786 = vld [vmem:[%s574 + $0x690] sm:$0xff]
                  %787 = vst [vmem:[%s575 + $0x348] sm:$0xff] %v786
                  %v788 = vld [vmem:[%s574 + $0x6a0] sm:$0xff]
                  %789 = vst [vmem:[%s575 + $0x350] sm:$0xff] %v788
                  %v790 = vld [vmem:[%s574 + $0x6b0] sm:$0xff]
                  %791 = vst [vmem:[%s575 + $0x358] sm:$0xff] %v790
                  %v792 = vld [vmem:[%s574 + $0x6c0] sm:$0xff]
                  %793 = vst [vmem:[%s575 + $0x360] sm:$0xff] %v792
                  %v794 = vld [vmem:[%s574 + $0x6d0] sm:$0xff]
                  %795 = vst [vmem:[%s575 + $0x368] sm:$0xff] %v794
                  %v796 = vld [vmem:[%s574 + $0x6e0] sm:$0xff]
                  %797 = vst [vmem:[%s575 + $0x370] sm:$0xff] %v796
                  %v798 = vld [vmem:[%s574 + $0x6f0] sm:$0xff]
                  %799 = vst [vmem:[%s575 + $0x378] sm:$0xff] %v798
                  %v800 = vld [vmem:[%s574 + $0x700] sm:$0xff]
                  %801 = vst [vmem:[%s575 + $0x380] sm:$0xff] %v800
                  %v802 = vld [vmem:[%s574 + $0x710] sm:$0xff]
                  %803 = vst [vmem:[%s575 + $0x388] sm:$0xff] %v802
                  %v804 = vld [vmem:[%s574 + $0x720] sm:$0xff]
                  %805 = vst [vmem:[%s575 + $0x390] sm:$0xff] %v804
                  %v806 = vld [vmem:[%s574 + $0x730] sm:$0xff]
                  %807 = vst [vmem:[%s575 + $0x398] sm:$0xff] %v806
                  %v808 = vld [vmem:[%s574 + $0x740] sm:$0xff]
                  %809 = vst [vmem:[%s575 + $0x3a0] sm:$0xff] %v808
                  %v810 = vld [vmem:[%s574 + $0x750] sm:$0xff]
                  %811 = vst [vmem:[%s575 + $0x3a8] sm:$0xff] %v810
                  %v812 = vld [vmem:[%s574 + $0x760] sm:$0xff]
                  %813 = vst [vmem:[%s575 + $0x3b0] sm:$0xff] %v812
                  %v814 = vld [vmem:[%s574 + $0x770] sm:$0xff]
                  %815 = vst [vmem:[%s575 + $0x3b8] sm:$0xff] %v814
                  %v816 = vld [vmem:[%s574 + $0x780] sm:$0xff]
                  %817 = vst [vmem:[%s575 + $0x3c0] sm:$0xff] %v816
                  %v818 = vld [vmem:[%s574 + $0x790] sm:$0xff]
                  %819 = vst [vmem:[%s575 + $0x3c8] sm:$0xff] %v818
                  %v820 = vld [vmem:[%s574 + $0x7a0] sm:$0xff]
                  %821 = vst [vmem:[%s575 + $0x3d0] sm:$0xff] %v820
                  %v822 = vld [vmem:[%s574 + $0x7b0] sm:$0xff]
                  %823 = vst [vmem:[%s575 + $0x3d8] sm:$0xff] %v822
                  %v824 = vld [vmem:[%s574 + $0x7c0] sm:$0xff]
                  %825 = vst [vmem:[%s575 + $0x3e0] sm:$0xff] %v824
                  %v826 = vld [vmem:[%s574 + $0x7d0] sm:$0xff]
                  %827 = vst [vmem:[%s575 + $0x3e8] sm:$0xff] %v826
                  %v828 = vld [vmem:[%s574 + $0x7e0] sm:$0xff]
                  %829 = vst [vmem:[%s575 + $0x3f0] sm:$0xff] %v828
                  %v830 = vld [vmem:[%s574 + $0x7f0] sm:$0xff]
                  %831 = vst [vmem:[%s575 + $0x3f8] sm:$0xff] %v830
                  %v832 = vld [vmem:[%s574 + $0x800] sm:$0xff]
                  %833 = vst [vmem:[%s575 + $0x400] sm:$0xff] %v832
                  %v834 = vld [vmem:[%s574 + $0x810] sm:$0xff]
                  %835 = vst [vmem:[%s575 + $0x408] sm:$0xff] %v834
                  %v836 = vld [vmem:[%s574 + $0x820] sm:$0xff]
                  %837 = vst [vmem:[%s575 + $0x410] sm:$0xff] %v836
                  %v838 = vld [vmem:[%s574 + $0x830] sm:$0xff]
                  %839 = vst [vmem:[%s575 + $0x418] sm:$0xff] %v838
                  %v840 = vld [vmem:[%s574 + $0x840] sm:$0xff]
                  %841 = vst [vmem:[%s575 + $0x420] sm:$0xff] %v840
                  %v842 = vld [vmem:[%s574 + $0x850] sm:$0xff]
                  %843 = vst [vmem:[%s575 + $0x428] sm:$0xff] %v842
                  %v844 = vld [vmem:[%s574 + $0x860] sm:$0xff]
                  %845 = vst [vmem:[%s575 + $0x430] sm:$0xff] %v844
                  %v846 = vld [vmem:[%s574 + $0x870] sm:$0xff]
                  %847 = vst [vmem:[%s575 + $0x438] sm:$0xff] %v846
                  %v848 = vld [vmem:[%s574 + $0x880] sm:$0xff]
                  %849 = vst [vmem:[%s575 + $0x440] sm:$0xff] %v848
                  %v850 = vld [vmem:[%s574 + $0x890] sm:$0xff]
                  %851 = vst [vmem:[%s575 + $0x448] sm:$0xff] %v850
                  %v852 = vld [vmem:[%s574 + $0x8a0] sm:$0xff]
                  %853 = vst [vmem:[%s575 + $0x450] sm:$0xff] %v852
                  %v854 = vld [vmem:[%s574 + $0x8b0] sm:$0xff]
                  %855 = vst [vmem:[%s575 + $0x458] sm:$0xff] %v854
                  %v856 = vld [vmem:[%s574 + $0x8c0] sm:$0xff]
                  %857 = vst [vmem:[%s575 + $0x460] sm:$0xff] %v856
                  %v858 = vld [vmem:[%s574 + $0x8d0] sm:$0xff]
                  %859 = vst [vmem:[%s575 + $0x468] sm:$0xff] %v858
                  %v860 = vld [vmem:[%s574 + $0x8e0] sm:$0xff]
                  %861 = vst [vmem:[%s575 + $0x470] sm:$0xff] %v860
                  %v862 = vld [vmem:[%s574 + $0x8f0] sm:$0xff]
                  %863 = vst [vmem:[%s575 + $0x478] sm:$0xff] %v862
                  %v864 = vld [vmem:[%s574 + $0x900] sm:$0xff]
                  %865 = vst [vmem:[%s575 + $0x480] sm:$0xff] %v864
                  %v866 = vld [vmem:[%s574 + $0x910] sm:$0xff]
                  %867 = vst [vmem:[%s575 + $0x488] sm:$0xff] %v866
                  %v868 = vld [vmem:[%s574 + $0x920] sm:$0xff]
                  %869 = vst [vmem:[%s575 + $0x490] sm:$0xff] %v868
                  %v870 = vld [vmem:[%s574 + $0x930] sm:$0xff]
                  %871 = vst [vmem:[%s575 + $0x498] sm:$0xff] %v870
                  %v872 = vld [vmem:[%s574 + $0x940] sm:$0xff]
                  %873 = vst [vmem:[%s575 + $0x4a0] sm:$0xff] %v872
                  %v874 = vld [vmem:[%s574 + $0x950] sm:$0xff]
                  %875 = vst [vmem:[%s575 + $0x4a8] sm:$0xff] %v874
                  %v876 = vld [vmem:[%s574 + $0x960] sm:$0xff]
                  %877 = vst [vmem:[%s575 + $0x4b0] sm:$0xff] %v876
                  %v878 = vld [vmem:[%s574 + $0x970] sm:$0xff]
                  %879 = vst [vmem:[%s575 + $0x4b8] sm:$0xff] %v878
                  %v880 = vld [vmem:[%s574 + $0x980] sm:$0xff]
                  %881 = vst [vmem:[%s575 + $0x4c0] sm:$0xff] %v880
                  %v882 = vld [vmem:[%s574 + $0x990] sm:$0xff]
                  %883 = vst [vmem:[%s575 + $0x4c8] sm:$0xff] %v882
                  %v884 = vld [vmem:[%s574 + $0x9a0] sm:$0xff]
                  %885 = vst [vmem:[%s575 + $0x4d0] sm:$0xff] %v884
                  %v886 = vld [vmem:[%s574 + $0x9b0] sm:$0xff]
                  %887 = vst [vmem:[%s575 + $0x4d8] sm:$0xff] %v886
                  %v888 = vld [vmem:[%s574 + $0x9c0] sm:$0xff]
                  %889 = vst [vmem:[%s575 + $0x4e0] sm:$0xff] %v888
                  %v890 = vld [vmem:[%s574 + $0x9d0] sm:$0xff]
                  %891 = vst [vmem:[%s575 + $0x4e8] sm:$0xff] %v890
                  %v892 = vld [vmem:[%s574 + $0x9e0] sm:$0xff]
                  %893 = vst [vmem:[%s575 + $0x4f0] sm:$0xff] %v892
                  %v894 = vld [vmem:[%s574 + $0x9f0] sm:$0xff]
                  %895 = vst [vmem:[%s575 + $0x4f8] sm:$0xff] %v894
                  %v896 = vld [vmem:[%s574 + $0xa00] sm:$0xff]
                  %897 = vst [vmem:[%s575 + $0x500] sm:$0xff] %v896
                  %v898 = vld [vmem:[%s574 + $0xa10] sm:$0xff]
                  %899 = vst [vmem:[%s575 + $0x508] sm:$0xff] %v898
                  %v900 = vld [vmem:[%s574 + $0xa20] sm:$0xff]
                  %901 = vst [vmem:[%s575 + $0x510] sm:$0xff] %v900
                  %v902 = vld [vmem:[%s574 + $0xa30] sm:$0xff]
                  %903 = vst [vmem:[%s575 + $0x518] sm:$0xff] %v902
                  %v904 = vld [vmem:[%s574 + $0xa40] sm:$0xff]
                  %905 = vst [vmem:[%s575 + $0x520] sm:$0xff] %v904
                  %v906 = vld [vmem:[%s574 + $0xa50] sm:$0xff]
                  %907 = vst [vmem:[%s575 + $0x528] sm:$0xff] %v906
                  %v908 = vld [vmem:[%s574 + $0xa60] sm:$0xff]
                  %909 = vst [vmem:[%s575 + $0x530] sm:$0xff] %v908
                  %v910 = vld [vmem:[%s574 + $0xa70] sm:$0xff]
                  %911 = vst [vmem:[%s575 + $0x538] sm:$0xff] %v910
                  %v912 = vld [vmem:[%s574 + $0xa80] sm:$0xff]
                  %913 = vst [vmem:[%s575 + $0x540] sm:$0xff] %v912
                  %v914 = vld [vmem:[%s574 + $0xa90] sm:$0xff]
                  %915 = vst [vmem:[%s575 + $0x548] sm:$0xff] %v914
                  %v916 = vld [vmem:[%s574 + $0xaa0] sm:$0xff]
                  %917 = vst [vmem:[%s575 + $0x550] sm:$0xff] %v916
                  %v918 = vld [vmem:[%s574 + $0xab0] sm:$0xff]
                  %919 = vst [vmem:[%s575 + $0x558] sm:$0xff] %v918
                  %v920 = vld [vmem:[%s574 + $0xac0] sm:$0xff]
                  %921 = vst [vmem:[%s575 + $0x560] sm:$0xff] %v920
                  %v922 = vld [vmem:[%s574 + $0xad0] sm:$0xff]
                  %923 = vst [vmem:[%s575 + $0x568] sm:$0xff] %v922
                  %v924 = vld [vmem:[%s574 + $0xae0] sm:$0xff]
                  %925 = vst [vmem:[%s575 + $0x570] sm:$0xff] %v924
                  %v926 = vld [vmem:[%s574 + $0xaf0] sm:$0xff]
                  %927 = vst [vmem:[%s575 + $0x578] sm:$0xff] %v926
                  %v928 = vld [vmem:[%s574 + $0xb00] sm:$0xff]
                  %929 = vst [vmem:[%s575 + $0x580] sm:$0xff] %v928
                  %v930 = vld [vmem:[%s574 + $0xb10] sm:$0xff]
                  %931 = vst [vmem:[%s575 + $0x588] sm:$0xff] %v930
                  %v932 = vld [vmem:[%s574 + $0xb20] sm:$0xff]
                  %933 = vst [vmem:[%s575 + $0x590] sm:$0xff] %v932
                  %v934 = vld [vmem:[%s574 + $0xb30] sm:$0xff]
                  %935 = vst [vmem:[%s575 + $0x598] sm:$0xff] %v934
                  %v936 = vld [vmem:[%s574 + $0xb40] sm:$0xff]
                  %937 = vst [vmem:[%s575 + $0x5a0] sm:$0xff] %v936
                  %v938 = vld [vmem:[%s574 + $0xb50] sm:$0xff]
                  %939 = vst [vmem:[%s575 + $0x5a8] sm:$0xff] %v938
                  %v940 = vld [vmem:[%s574 + $0xb60] sm:$0xff]
                  %941 = vst [vmem:[%s575 + $0x5b0] sm:$0xff] %v940
                  %v942 = vld [vmem:[%s574 + $0xb70] sm:$0xff]
                  %943 = vst [vmem:[%s575 + $0x5b8] sm:$0xff] %v942
                  %v944 = vld [vmem:[%s574 + $0xb80] sm:$0xff]
                  %945 = vst [vmem:[%s575 + $0x5c0] sm:$0xff] %v944
                  %v946 = vld [vmem:[%s574 + $0xb90] sm:$0xff]
                  %947 = vst [vmem:[%s575 + $0x5c8] sm:$0xff] %v946
                  %v948 = vld [vmem:[%s574 + $0xba0] sm:$0xff]
                  %949 = vst [vmem:[%s575 + $0x5d0] sm:$0xff] %v948
                  %v950 = vld [vmem:[%s574 + $0xbb0] sm:$0xff]
                  %951 = vst [vmem:[%s575 + $0x5d8] sm:$0xff] %v950
                  %v952 = vld [vmem:[%s574 + $0xbc0] sm:$0xff]
                  %953 = vst [vmem:[%s575 + $0x5e0] sm:$0xff] %v952
                  %v954 = vld [vmem:[%s574 + $0xbd0] sm:$0xff]
                  %955 = vst [vmem:[%s575 + $0x5e8] sm:$0xff] %v954
                  %v956 = vld [vmem:[%s574 + $0xbe0] sm:$0xff]
                  %957 = vst [vmem:[%s575 + $0x5f0] sm:$0xff] %v956
                  %v958 = vld [vmem:[%s574 + $0xbf0] sm:$0xff]
                  %959 = vst [vmem:[%s575 + $0x5f8] sm:$0xff] %v958
                $region52: #{vgg19ca_forward.6} parent=46 // loop_footer
                  %s573 = sadd.s32 1, %s569
                $region53: #{vgg19ca_forward.6} parent=46 // loop_footer_branch
                  %568 = sbr.rel target = $region49
                $region54: #{vgg19ca_forward.6} parent=46 // loop_exit
                  _
              $region47: #{vgg19ca_forward.6} parent=31 // pred_fallthru
                _
              // Predicated region
              $region55: #{vgg19ca_forward.6} parent=31 // pred_check
                _
              $region56: #{vgg19ca_forward.6} parent=31 // pred_check_branch
                %961 = sbr.rel target = $region58
              $region57: #{vgg19ca_forward.6} parent=31 // pred_region
                _
              $region58: #{vgg19ca_forward.6} parent=31 // pred_fallthru
                _
            $region32: #{vgg19ca_forward.6} parent=27 // pred_fallthru
              _
            // Predicated region
            $region33: #{vgg19ca_forward.6} parent=27 // pred_check
              _
            $region34: #{vgg19ca_forward.6} parent=27 // pred_check_branch
              %171 = sbr.rel target = $region36
            $region35: #{vgg19ca_forward.6} parent=27 // pred_region
              %s173 = ssub.s32 256, 1
              loop: start=0, step=1, limit=1
              $region37: #{vgg19ca_forward.6} parent=35 // loop_pre_header
                _
              $region38: #{vgg19ca_forward.6} parent=35 // loop_header
                %s175 = sphi 0, %s179
                %p176 = scmp.ge.s32.totalorder %s175, 1
                %s180 = sphi %s165, %s165
                %s181 = sphi %s162, %s162
              $region39: #{vgg19ca_forward.6} parent=35 // loop_header_branch
                %178 = sbr.rel (%p176) target = $region43
              $region40: #{vgg19ca_forward.6} parent=35 // loop_body
                %v182 = vld [vmem:[%s180] sm:%s173]
                %183 = vst [vmem:[%s181] sm:%s173] %v182
                %v184 = vld [vmem:[%s180 + $0x10] sm:%s173]
                %185 = vst [vmem:[%s181 + $0x8] sm:%s173] %v184
                %v186 = vld [vmem:[%s180 + $0x20] sm:%s173]
                %187 = vst [vmem:[%s181 + $0x10] sm:%s173] %v186
                %v188 = vld [vmem:[%s180 + $0x30] sm:%s173]
                %189 = vst [vmem:[%s181 + $0x18] sm:%s173] %v188
                %v190 = vld [vmem:[%s180 + $0x40] sm:%s173]
                %191 = vst [vmem:[%s181 + $0x20] sm:%s173] %v190
                %v192 = vld [vmem:[%s180 + $0x50] sm:%s173]
                %193 = vst [vmem:[%s181 + $0x28] sm:%s173] %v192
                %v194 = vld [vmem:[%s180 + $0x60] sm:%s173]
                %195 = vst [vmem:[%s181 + $0x30] sm:%s173] %v194
                %v196 = vld [vmem:[%s180 + $0x70] sm:%s173]
                %197 = vst [vmem:[%s181 + $0x38] sm:%s173] %v196
                %v198 = vld [vmem:[%s180 + $0x80] sm:%s173]
                %199 = vst [vmem:[%s181 + $0x40] sm:%s173] %v198
                %v200 = vld [vmem:[%s180 + $0x90] sm:%s173]
                %201 = vst [vmem:[%s181 + $0x48] sm:%s173] %v200
                %v202 = vld [vmem:[%s180 + $0xa0] sm:%s173]
                %203 = vst [vmem:[%s181 + $0x50] sm:%s173] %v202
                %v204 = vld [vmem:[%s180 + $0xb0] sm:%s173]
                %205 = vst [vmem:[%s181 + $0x58] sm:%s173] %v204
                %v206 = vld [vmem:[%s180 + $0xc0] sm:%s173]
                %207 = vst [vmem:[%s181 + $0x60] sm:%s173] %v206
                %v208 = vld [vmem:[%s180 + $0xd0] sm:%s173]
                %209 = vst [vmem:[%s181 + $0x68] sm:%s173] %v208
                %v210 = vld [vmem:[%s180 + $0xe0] sm:%s173]
                %211 = vst [vmem:[%s181 + $0x70] sm:%s173] %v210
                %v212 = vld [vmem:[%s180 + $0xf0] sm:%s173]
                %213 = vst [vmem:[%s181 + $0x78] sm:%s173] %v212
                %v214 = vld [vmem:[%s180 + $0x100] sm:%s173]
                %215 = vst [vmem:[%s181 + $0x80] sm:%s173] %v214
                %v216 = vld [vmem:[%s180 + $0x110] sm:%s173]
                %217 = vst [vmem:[%s181 + $0x88] sm:%s173] %v216
                %v218 = vld [vmem:[%s180 + $0x120] sm:%s173]
                %219 = vst [vmem:[%s181 + $0x90] sm:%s173] %v218
                %v220 = vld [vmem:[%s180 + $0x130] sm:%s173]
                %221 = vst [vmem:[%s181 + $0x98] sm:%s173] %v220
                %v222 = vld [vmem:[%s180 + $0x140] sm:%s173]
                %223 = vst [vmem:[%s181 + $0xa0] sm:%s173] %v222
                %v224 = vld [vmem:[%s180 + $0x150] sm:%s173]
                %225 = vst [vmem:[%s181 + $0xa8] sm:%s173] %v224
                %v226 = vld [vmem:[%s180 + $0x160] sm:%s173]
                %227 = vst [vmem:[%s181 + $0xb0] sm:%s173] %v226
                %v228 = vld [vmem:[%s180 + $0x170] sm:%s173]
                %229 = vst [vmem:[%s181 + $0xb8] sm:%s173] %v228
                %v230 = vld [vmem:[%s180 + $0x180] sm:%s173]
                %231 = vst [vmem:[%s181 + $0xc0] sm:%s173] %v230
                %v232 = vld [vmem:[%s180 + $0x190] sm:%s173]
                %233 = vst [vmem:[%s181 + $0xc8] sm:%s173] %v232
                %v234 = vld [vmem:[%s180 + $0x1a0] sm:%s173]
                %235 = vst [vmem:[%s181 + $0xd0] sm:%s173] %v234
                %v236 = vld [vmem:[%s180 + $0x1b0] sm:%s173]
                %237 = vst [vmem:[%s181 + $0xd8] sm:%s173] %v236
                %v238 = vld [vmem:[%s180 + $0x1c0] sm:%s173]
                %239 = vst [vmem:[%s181 + $0xe0] sm:%s173] %v238
                %v240 = vld [vmem:[%s180 + $0x1d0] sm:%s173]
                %241 = vst [vmem:[%s181 + $0xe8] sm:%s173] %v240
                %v242 = vld [vmem:[%s180 + $0x1e0] sm:%s173]
                %243 = vst [vmem:[%s181 + $0xf0] sm:%s173] %v242
                %v244 = vld [vmem:[%s180 + $0x1f0] sm:%s173]
                %245 = vst [vmem:[%s181 + $0xf8] sm:%s173] %v244
                %v246 = vld [vmem:[%s180 + $0x200] sm:%s173]
                %247 = vst [vmem:[%s181 + $0x100] sm:%s173] %v246
                %v248 = vld [vmem:[%s180 + $0x210] sm:%s173]
                %249 = vst [vmem:[%s181 + $0x108] sm:%s173] %v248
                %v250 = vld [vmem:[%s180 + $0x220] sm:%s173]
                %251 = vst [vmem:[%s181 + $0x110] sm:%s173] %v250
                %v252 = vld [vmem:[%s180 + $0x230] sm:%s173]
                %253 = vst [vmem:[%s181 + $0x118] sm:%s173] %v252
                %v254 = vld [vmem:[%s180 + $0x240] sm:%s173]
                %255 = vst [vmem:[%s181 + $0x120] sm:%s173] %v254
                %v256 = vld [vmem:[%s180 + $0x250] sm:%s173]
                %257 = vst [vmem:[%s181 + $0x128] sm:%s173] %v256
                %v258 = vld [vmem:[%s180 + $0x260] sm:%s173]
                %259 = vst [vmem:[%s181 + $0x130] sm:%s173] %v258
                %v260 = vld [vmem:[%s180 + $0x270] sm:%s173]
                %261 = vst [vmem:[%s181 + $0x138] sm:%s173] %v260
                %v262 = vld [vmem:[%s180 + $0x280] sm:%s173]
                %263 = vst [vmem:[%s181 + $0x140] sm:%s173] %v262
                %v264 = vld [vmem:[%s180 + $0x290] sm:%s173]
                %265 = vst [vmem:[%s181 + $0x148] sm:%s173] %v264
                %v266 = vld [vmem:[%s180 + $0x2a0] sm:%s173]
                %267 = vst [vmem:[%s181 + $0x150] sm:%s173] %v266
                %v268 = vld [vmem:[%s180 + $0x2b0] sm:%s173]
                %269 = vst [vmem:[%s181 + $0x158] sm:%s173] %v268
                %v270 = vld [vmem:[%s180 + $0x2c0] sm:%s173]
                %271 = vst [vmem:[%s181 + $0x160] sm:%s173] %v270
                %v272 = vld [vmem:[%s180 + $0x2d0] sm:%s173]
                %273 = vst [vmem:[%s181 + $0x168] sm:%s173] %v272
                %v274 = vld [vmem:[%s180 + $0x2e0] sm:%s173]
                %275 = vst [vmem:[%s181 + $0x170] sm:%s173] %v274
                %v276 = vld [vmem:[%s180 + $0x2f0] sm:%s173]
                %277 = vst [vmem:[%s181 + $0x178] sm:%s173] %v276
                %v278 = vld [vmem:[%s180 + $0x300] sm:%s173]
                %279 = vst [vmem:[%s181 + $0x180] sm:%s173] %v278
                %v280 = vld [vmem:[%s180 + $0x310] sm:%s173]
                %281 = vst [vmem:[%s181 + $0x188] sm:%s173] %v280
                %v282 = vld [vmem:[%s180 + $0x320] sm:%s173]
                %283 = vst [vmem:[%s181 + $0x190] sm:%s173] %v282
                %v284 = vld [vmem:[%s180 + $0x330] sm:%s173]
                %285 = vst [vmem:[%s181 + $0x198] sm:%s173] %v284
                %v286 = vld [vmem:[%s180 + $0x340] sm:%s173]
                %287 = vst [vmem:[%s181 + $0x1a0] sm:%s173] %v286
                %v288 = vld [vmem:[%s180 + $0x350] sm:%s173]
                %289 = vst [vmem:[%s181 + $0x1a8] sm:%s173] %v288
                %v290 = vld [vmem:[%s180 + $0x360] sm:%s173]
                %291 = vst [vmem:[%s181 + $0x1b0] sm:%s173] %v290
                %v292 = vld [vmem:[%s180 + $0x370] sm:%s173]
                %293 = vst [vmem:[%s181 + $0x1b8] sm:%s173] %v292
                %v294 = vld [vmem:[%s180 + $0x380] sm:%s173]
                %295 = vst [vmem:[%s181 + $0x1c0] sm:%s173] %v294
                %v296 = vld [vmem:[%s180 + $0x390] sm:%s173]
                %297 = vst [vmem:[%s181 + $0x1c8] sm:%s173] %v296
                %v298 = vld [vmem:[%s180 + $0x3a0] sm:%s173]
                %299 = vst [vmem:[%s181 + $0x1d0] sm:%s173] %v298
                %v300 = vld [vmem:[%s180 + $0x3b0] sm:%s173]
                %301 = vst [vmem:[%s181 + $0x1d8] sm:%s173] %v300
                %v302 = vld [vmem:[%s180 + $0x3c0] sm:%s173]
                %303 = vst [vmem:[%s181 + $0x1e0] sm:%s173] %v302
                %v304 = vld [vmem:[%s180 + $0x3d0] sm:%s173]
                %305 = vst [vmem:[%s181 + $0x1e8] sm:%s173] %v304
                %v306 = vld [vmem:[%s180 + $0x3e0] sm:%s173]
                %307 = vst [vmem:[%s181 + $0x1f0] sm:%s173] %v306
                %v308 = vld [vmem:[%s180 + $0x3f0] sm:%s173]
                %309 = vst [vmem:[%s181 + $0x1f8] sm:%s173] %v308
                %v310 = vld [vmem:[%s180 + $0x400] sm:%s173]
                %311 = vst [vmem:[%s181 + $0x200] sm:%s173] %v310
                %v312 = vld [vmem:[%s180 + $0x410] sm:%s173]
                %313 = vst [vmem:[%s181 + $0x208] sm:%s173] %v312
                %v314 = vld [vmem:[%s180 + $0x420] sm:%s173]
                %315 = vst [vmem:[%s181 + $0x210] sm:%s173] %v314
                %v316 = vld [vmem:[%s180 + $0x430] sm:%s173]
                %317 = vst [vmem:[%s181 + $0x218] sm:%s173] %v316
                %v318 = vld [vmem:[%s180 + $0x440] sm:%s173]
                %319 = vst [vmem:[%s181 + $0x220] sm:%s173] %v318
                %v320 = vld [vmem:[%s180 + $0x450] sm:%s173]
                %321 = vst [vmem:[%s181 + $0x228] sm:%s173] %v320
                %v322 = vld [vmem:[%s180 + $0x460] sm:%s173]
                %323 = vst [vmem:[%s181 + $0x230] sm:%s173] %v322
                %v324 = vld [vmem:[%s180 + $0x470] sm:%s173]
                %325 = vst [vmem:[%s181 + $0x238] sm:%s173] %v324
                %v326 = vld [vmem:[%s180 + $0x480] sm:%s173]
                %327 = vst [vmem:[%s181 + $0x240] sm:%s173] %v326
                %v328 = vld [vmem:[%s180 + $0x490] sm:%s173]
                %329 = vst [vmem:[%s181 + $0x248] sm:%s173] %v328
                %v330 = vld [vmem:[%s180 + $0x4a0] sm:%s173]
                %331 = vst [vmem:[%s181 + $0x250] sm:%s173] %v330
                %v332 = vld [vmem:[%s180 + $0x4b0] sm:%s173]
                %333 = vst [vmem:[%s181 + $0x258] sm:%s173] %v332
                %v334 = vld [vmem:[%s180 + $0x4c0] sm:%s173]
                %335 = vst [vmem:[%s181 + $0x260] sm:%s173] %v334
                %v336 = vld [vmem:[%s180 + $0x4d0] sm:%s173]
                %337 = vst [vmem:[%s181 + $0x268] sm:%s173] %v336
                %v338 = vld [vmem:[%s180 + $0x4e0] sm:%s173]
                %339 = vst [vmem:[%s181 + $0x270] sm:%s173] %v338
                %v340 = vld [vmem:[%s180 + $0x4f0] sm:%s173]
                %341 = vst [vmem:[%s181 + $0x278] sm:%s173] %v340
                %v342 = vld [vmem:[%s180 + $0x500] sm:%s173]
                %343 = vst [vmem:[%s181 + $0x280] sm:%s173] %v342
                %v344 = vld [vmem:[%s180 + $0x510] sm:%s173]
                %345 = vst [vmem:[%s181 + $0x288] sm:%s173] %v344
                %v346 = vld [vmem:[%s180 + $0x520] sm:%s173]
                %347 = vst [vmem:[%s181 + $0x290] sm:%s173] %v346
                %v348 = vld [vmem:[%s180 + $0x530] sm:%s173]
                %349 = vst [vmem:[%s181 + $0x298] sm:%s173] %v348
                %v350 = vld [vmem:[%s180 + $0x540] sm:%s173]
                %351 = vst [vmem:[%s181 + $0x2a0] sm:%s173] %v350
                %v352 = vld [vmem:[%s180 + $0x550] sm:%s173]
                %353 = vst [vmem:[%s181 + $0x2a8] sm:%s173] %v352
                %v354 = vld [vmem:[%s180 + $0x560] sm:%s173]
                %355 = vst [vmem:[%s181 + $0x2b0] sm:%s173] %v354
                %v356 = vld [vmem:[%s180 + $0x570] sm:%s173]
                %357 = vst [vmem:[%s181 + $0x2b8] sm:%s173] %v356
                %v358 = vld [vmem:[%s180 + $0x580] sm:%s173]
                %359 = vst [vmem:[%s181 + $0x2c0] sm:%s173] %v358
                %v360 = vld [vmem:[%s180 + $0x590] sm:%s173]
                %361 = vst [vmem:[%s181 + $0x2c8] sm:%s173] %v360
                %v362 = vld [vmem:[%s180 + $0x5a0] sm:%s173]
                %363 = vst [vmem:[%s181 + $0x2d0] sm:%s173] %v362
                %v364 = vld [vmem:[%s180 + $0x5b0] sm:%s173]
                %365 = vst [vmem:[%s181 + $0x2d8] sm:%s173] %v364
                %v366 = vld [vmem:[%s180 + $0x5c0] sm:%s173]
                %367 = vst [vmem:[%s181 + $0x2e0] sm:%s173] %v366
                %v368 = vld [vmem:[%s180 + $0x5d0] sm:%s173]
                %369 = vst [vmem:[%s181 + $0x2e8] sm:%s173] %v368
                %v370 = vld [vmem:[%s180 + $0x5e0] sm:%s173]
                %371 = vst [vmem:[%s181 + $0x2f0] sm:%s173] %v370
                %v372 = vld [vmem:[%s180 + $0x5f0] sm:%s173]
                %373 = vst [vmem:[%s181 + $0x2f8] sm:%s173] %v372
                %v374 = vld [vmem:[%s180 + $0x600] sm:%s173]
                %375 = vst [vmem:[%s181 + $0x300] sm:%s173] %v374
                %v376 = vld [vmem:[%s180 + $0x610] sm:%s173]
                %377 = vst [vmem:[%s181 + $0x308] sm:%s173] %v376
                %v378 = vld [vmem:[%s180 + $0x620] sm:%s173]
                %379 = vst [vmem:[%s181 + $0x310] sm:%s173] %v378
                %v380 = vld [vmem:[%s180 + $0x630] sm:%s173]
                %381 = vst [vmem:[%s181 + $0x318] sm:%s173] %v380
                %v382 = vld [vmem:[%s180 + $0x640] sm:%s173]
                %383 = vst [vmem:[%s181 + $0x320] sm:%s173] %v382
                %v384 = vld [vmem:[%s180 + $0x650] sm:%s173]
                %385 = vst [vmem:[%s181 + $0x328] sm:%s173] %v384
                %v386 = vld [vmem:[%s180 + $0x660] sm:%s173]
                %387 = vst [vmem:[%s181 + $0x330] sm:%s173] %v386
                %v388 = vld [vmem:[%s180 + $0x670] sm:%s173]
                %389 = vst [vmem:[%s181 + $0x338] sm:%s173] %v388
                %v390 = vld [vmem:[%s180 + $0x680] sm:%s173]
                %391 = vst [vmem:[%s181 + $0x340] sm:%s173] %v390
                %v392 = vld [vmem:[%s180 + $0x690] sm:%s173]
                %393 = vst [vmem:[%s181 + $0x348] sm:%s173] %v392
                %v394 = vld [vmem:[%s180 + $0x6a0] sm:%s173]
                %395 = vst [vmem:[%s181 + $0x350] sm:%s173] %v394
                %v396 = vld [vmem:[%s180 + $0x6b0] sm:%s173]
                %397 = vst [vmem:[%s181 + $0x358] sm:%s173] %v396
                %v398 = vld [vmem:[%s180 + $0x6c0] sm:%s173]
                %399 = vst [vmem:[%s181 + $0x360] sm:%s173] %v398
                %v400 = vld [vmem:[%s180 + $0x6d0] sm:%s173]
                %401 = vst [vmem:[%s181 + $0x368] sm:%s173] %v400
                %v402 = vld [vmem:[%s180 + $0x6e0] sm:%s173]
                %403 = vst [vmem:[%s181 + $0x370] sm:%s173] %v402
                %v404 = vld [vmem:[%s180 + $0x6f0] sm:%s173]
                %405 = vst [vmem:[%s181 + $0x378] sm:%s173] %v404
                %v406 = vld [vmem:[%s180 + $0x700] sm:%s173]
                %407 = vst [vmem:[%s181 + $0x380] sm:%s173] %v406
                %v408 = vld [vmem:[%s180 + $0x710] sm:%s173]
                %409 = vst [vmem:[%s181 + $0x388] sm:%s173] %v408
                %v410 = vld [vmem:[%s180 + $0x720] sm:%s173]
                %411 = vst [vmem:[%s181 + $0x390] sm:%s173] %v410
                %v412 = vld [vmem:[%s180 + $0x730] sm:%s173]
                %413 = vst [vmem:[%s181 + $0x398] sm:%s173] %v412
                %v414 = vld [vmem:[%s180 + $0x740] sm:%s173]
                %415 = vst [vmem:[%s181 + $0x3a0] sm:%s173] %v414
                %v416 = vld [vmem:[%s180 + $0x750] sm:%s173]
                %417 = vst [vmem:[%s181 + $0x3a8] sm:%s173] %v416
                %v418 = vld [vmem:[%s180 + $0x760] sm:%s173]
                %419 = vst [vmem:[%s181 + $0x3b0] sm:%s173] %v418
                %v420 = vld [vmem:[%s180 + $0x770] sm:%s173]
                %421 = vst [vmem:[%s181 + $0x3b8] sm:%s173] %v420
                %v422 = vld [vmem:[%s180 + $0x780] sm:%s173]
                %423 = vst [vmem:[%s181 + $0x3c0] sm:%s173] %v422
                %v424 = vld [vmem:[%s180 + $0x790] sm:%s173]
                %425 = vst [vmem:[%s181 + $0x3c8] sm:%s173] %v424
                %v426 = vld [vmem:[%s180 + $0x7a0] sm:%s173]
                %427 = vst [vmem:[%s181 + $0x3d0] sm:%s173] %v426
                %v428 = vld [vmem:[%s180 + $0x7b0] sm:%s173]
                %429 = vst [vmem:[%s181 + $0x3d8] sm:%s173] %v428
                %v430 = vld [vmem:[%s180 + $0x7c0] sm:%s173]
                %431 = vst [vmem:[%s181 + $0x3e0] sm:%s173] %v430
                %v432 = vld [vmem:[%s180 + $0x7d0] sm:%s173]
                %433 = vst [vmem:[%s181 + $0x3e8] sm:%s173] %v432
                %v434 = vld [vmem:[%s180 + $0x7e0] sm:%s173]
                %435 = vst [vmem:[%s181 + $0x3f0] sm:%s173] %v434
                %v436 = vld [vmem:[%s180 + $0x7f0] sm:%s173]
                %437 = vst [vmem:[%s181 + $0x3f8] sm:%s173] %v436
                %v438 = vld [vmem:[%s180 + $0x800] sm:%s173]
                %439 = vst [vmem:[%s181 + $0x400] sm:%s173] %v438
                %v440 = vld [vmem:[%s180 + $0x810] sm:%s173]
                %441 = vst [vmem:[%s181 + $0x408] sm:%s173] %v440
                %v442 = vld [vmem:[%s180 + $0x820] sm:%s173]
                %443 = vst [vmem:[%s181 + $0x410] sm:%s173] %v442
                %v444 = vld [vmem:[%s180 + $0x830] sm:%s173]
                %445 = vst [vmem:[%s181 + $0x418] sm:%s173] %v444
                %v446 = vld [vmem:[%s180 + $0x840] sm:%s173]
                %447 = vst [vmem:[%s181 + $0x420] sm:%s173] %v446
                %v448 = vld [vmem:[%s180 + $0x850] sm:%s173]
                %449 = vst [vmem:[%s181 + $0x428] sm:%s173] %v448
                %v450 = vld [vmem:[%s180 + $0x860] sm:%s173]
                %451 = vst [vmem:[%s181 + $0x430] sm:%s173] %v450
                %v452 = vld [vmem:[%s180 + $0x870] sm:%s173]
                %453 = vst [vmem:[%s181 + $0x438] sm:%s173] %v452
                %v454 = vld [vmem:[%s180 + $0x880] sm:%s173]
                %455 = vst [vmem:[%s181 + $0x440] sm:%s173] %v454
                %v456 = vld [vmem:[%s180 + $0x890] sm:%s173]
                %457 = vst [vmem:[%s181 + $0x448] sm:%s173] %v456
                %v458 = vld [vmem:[%s180 + $0x8a0] sm:%s173]
                %459 = vst [vmem:[%s181 + $0x450] sm:%s173] %v458
                %v460 = vld [vmem:[%s180 + $0x8b0] sm:%s173]
                %461 = vst [vmem:[%s181 + $0x458] sm:%s173] %v460
                %v462 = vld [vmem:[%s180 + $0x8c0] sm:%s173]
                %463 = vst [vmem:[%s181 + $0x460] sm:%s173] %v462
                %v464 = vld [vmem:[%s180 + $0x8d0] sm:%s173]
                %465 = vst [vmem:[%s181 + $0x468] sm:%s173] %v464
                %v466 = vld [vmem:[%s180 + $0x8e0] sm:%s173]
                %467 = vst [vmem:[%s181 + $0x470] sm:%s173] %v466
                %v468 = vld [vmem:[%s180 + $0x8f0] sm:%s173]
                %469 = vst [vmem:[%s181 + $0x478] sm:%s173] %v468
                %v470 = vld [vmem:[%s180 + $0x900] sm:%s173]
                %471 = vst [vmem:[%s181 + $0x480] sm:%s173] %v470
                %v472 = vld [vmem:[%s180 + $0x910] sm:%s173]
                %473 = vst [vmem:[%s181 + $0x488] sm:%s173] %v472
                %v474 = vld [vmem:[%s180 + $0x920] sm:%s173]
                %475 = vst [vmem:[%s181 + $0x490] sm:%s173] %v474
                %v476 = vld [vmem:[%s180 + $0x930] sm:%s173]
                %477 = vst [vmem:[%s181 + $0x498] sm:%s173] %v476
                %v478 = vld [vmem:[%s180 + $0x940] sm:%s173]
                %479 = vst [vmem:[%s181 + $0x4a0] sm:%s173] %v478
                %v480 = vld [vmem:[%s180 + $0x950] sm:%s173]
                %481 = vst [vmem:[%s181 + $0x4a8] sm:%s173] %v480
                %v482 = vld [vmem:[%s180 + $0x960] sm:%s173]
                %483 = vst [vmem:[%s181 + $0x4b0] sm:%s173] %v482
                %v484 = vld [vmem:[%s180 + $0x970] sm:%s173]
                %485 = vst [vmem:[%s181 + $0x4b8] sm:%s173] %v484
                %v486 = vld [vmem:[%s180 + $0x980] sm:%s173]
                %487 = vst [vmem:[%s181 + $0x4c0] sm:%s173] %v486
                %v488 = vld [vmem:[%s180 + $0x990] sm:%s173]
                %489 = vst [vmem:[%s181 + $0x4c8] sm:%s173] %v488
                %v490 = vld [vmem:[%s180 + $0x9a0] sm:%s173]
                %491 = vst [vmem:[%s181 + $0x4d0] sm:%s173] %v490
                %v492 = vld [vmem:[%s180 + $0x9b0] sm:%s173]
                %493 = vst [vmem:[%s181 + $0x4d8] sm:%s173] %v492
                %v494 = vld [vmem:[%s180 + $0x9c0] sm:%s173]
                %495 = vst [vmem:[%s181 + $0x4e0] sm:%s173] %v494
                %v496 = vld [vmem:[%s180 + $0x9d0] sm:%s173]
                %497 = vst [vmem:[%s181 + $0x4e8] sm:%s173] %v496
                %v498 = vld [vmem:[%s180 + $0x9e0] sm:%s173]
                %499 = vst [vmem:[%s181 + $0x4f0] sm:%s173] %v498
                %v500 = vld [vmem:[%s180 + $0x9f0] sm:%s173]
                %501 = vst [vmem:[%s181 + $0x4f8] sm:%s173] %v500
                %v502 = vld [vmem:[%s180 + $0xa00] sm:%s173]
                %503 = vst [vmem:[%s181 + $0x500] sm:%s173] %v502
                %v504 = vld [vmem:[%s180 + $0xa10] sm:%s173]
                %505 = vst [vmem:[%s181 + $0x508] sm:%s173] %v504
                %v506 = vld [vmem:[%s180 + $0xa20] sm:%s173]
                %507 = vst [vmem:[%s181 + $0x510] sm:%s173] %v506
                %v508 = vld [vmem:[%s180 + $0xa30] sm:%s173]
                %509 = vst [vmem:[%s181 + $0x518] sm:%s173] %v508
                %v510 = vld [vmem:[%s180 + $0xa40] sm:%s173]
                %511 = vst [vmem:[%s181 + $0x520] sm:%s173] %v510
                %v512 = vld [vmem:[%s180 + $0xa50] sm:%s173]
                %513 = vst [vmem:[%s181 + $0x528] sm:%s173] %v512
                %v514 = vld [vmem:[%s180 + $0xa60] sm:%s173]
                %515 = vst [vmem:[%s181 + $0x530] sm:%s173] %v514
                %v516 = vld [vmem:[%s180 + $0xa70] sm:%s173]
                %517 = vst [vmem:[%s181 + $0x538] sm:%s173] %v516
                %v518 = vld [vmem:[%s180 + $0xa80] sm:%s173]
                %519 = vst [vmem:[%s181 + $0x540] sm:%s173] %v518
                %v520 = vld [vmem:[%s180 + $0xa90] sm:%s173]
                %521 = vst [vmem:[%s181 + $0x548] sm:%s173] %v520
                %v522 = vld [vmem:[%s180 + $0xaa0] sm:%s173]
                %523 = vst [vmem:[%s181 + $0x550] sm:%s173] %v522
                %v524 = vld [vmem:[%s180 + $0xab0] sm:%s173]
                %525 = vst [vmem:[%s181 + $0x558] sm:%s173] %v524
                %v526 = vld [vmem:[%s180 + $0xac0] sm:%s173]
                %527 = vst [vmem:[%s181 + $0x560] sm:%s173] %v526
                %v528 = vld [vmem:[%s180 + $0xad0] sm:%s173]
                %529 = vst [vmem:[%s181 + $0x568] sm:%s173] %v528
                %v530 = vld [vmem:[%s180 + $0xae0] sm:%s173]
                %531 = vst [vmem:[%s181 + $0x570] sm:%s173] %v530
                %v532 = vld [vmem:[%s180 + $0xaf0] sm:%s173]
                %533 = vst [vmem:[%s181 + $0x578] sm:%s173] %v532
                %v534 = vld [vmem:[%s180 + $0xb00] sm:%s173]
                %535 = vst [vmem:[%s181 + $0x580] sm:%s173] %v534
                %v536 = vld [vmem:[%s180 + $0xb10] sm:%s173]
                %537 = vst [vmem:[%s181 + $0x588] sm:%s173] %v536
                %v538 = vld [vmem:[%s180 + $0xb20] sm:%s173]
                %539 = vst [vmem:[%s181 + $0x590] sm:%s173] %v538
                %v540 = vld [vmem:[%s180 + $0xb30] sm:%s173]
                %541 = vst [vmem:[%s181 + $0x598] sm:%s173] %v540
                %v542 = vld [vmem:[%s180 + $0xb40] sm:%s173]
                %543 = vst [vmem:[%s181 + $0x5a0] sm:%s173] %v542
                %v544 = vld [vmem:[%s180 + $0xb50] sm:%s173]
                %545 = vst [vmem:[%s181 + $0x5a8] sm:%s173] %v544
                %v546 = vld [vmem:[%s180 + $0xb60] sm:%s173]
                %547 = vst [vmem:[%s181 + $0x5b0] sm:%s173] %v546
                %v548 = vld [vmem:[%s180 + $0xb70] sm:%s173]
                %549 = vst [vmem:[%s181 + $0x5b8] sm:%s173] %v548
                %v550 = vld [vmem:[%s180 + $0xb80] sm:%s173]
                %551 = vst [vmem:[%s181 + $0x5c0] sm:%s173] %v550
                %v552 = vld [vmem:[%s180 + $0xb90] sm:%s173]
                %553 = vst [vmem:[%s181 + $0x5c8] sm:%s173] %v552
                %v554 = vld [vmem:[%s180 + $0xba0] sm:%s173]
                %555 = vst [vmem:[%s181 + $0x5d0] sm:%s173] %v554
                %v556 = vld [vmem:[%s180 + $0xbb0] sm:%s173]
                %557 = vst [vmem:[%s181 + $0x5d8] sm:%s173] %v556
                %v558 = vld [vmem:[%s180 + $0xbc0] sm:%s173]
                %559 = vst [vmem:[%s181 + $0x5e0] sm:%s173] %v558
                %v560 = vld [vmem:[%s180 + $0xbd0] sm:%s173]
                %561 = vst [vmem:[%s181 + $0x5e8] sm:%s173] %v560
                %v562 = vld [vmem:[%s180 + $0xbe0] sm:%s173]
                %563 = vst [vmem:[%s181 + $0x5f0] sm:%s173] %v562
                %v564 = vld [vmem:[%s180 + $0xbf0] sm:%s173]
                %565 = vst [vmem:[%s181 + $0x5f8] sm:%s173] %v564
              $region41: #{vgg19ca_forward.6} parent=35 // loop_footer
                %s179 = sadd.s32 1, %s175
              $region42: #{vgg19ca_forward.6} parent=35 // loop_footer_branch
                %174 = sbr.rel target = $region38
              $region43: #{vgg19ca_forward.6} parent=35 // loop_exit
                _
            $region36: #{vgg19ca_forward.6} parent=27 // pred_fallthru
              _
          $region28: #{vgg19ca_forward.6} parent=23 // pred_fallthru
            _
          %962 = vnop
        $region24: #{vgg19ca_forward.6} parent=19 // pred_fallthru
          _
        // Predicated region
        $region59: #{vgg19ca_forward.6} parent=19 // pred_check
          %p963 = pneg %p93
        $region60: #{vgg19ca_forward.6} parent=19 // pred_check_branch
          %965 = sbr.rel (%p963) target = $region62
        $region61: #{vgg19ca_forward.6} parent=19 // pred_region
          %s966 = smul.u32 2, %s17
          %p967 = scmp.lt.s32.totalorder %s966, 3
          %s968 = scalar_select %p967, %s966, 3
          %s969 = scalar_lea.vmem %s2, %s968
          %s970 = smul.u32 2, %s17
        $region62: #{vgg19ca_forward.6} parent=19 // pred_fallthru
          _
      $region20: #{vgg19ca_forward.6} parent=5 // pred_fallthru
        _
      %p971 = scmp.le.s32.totalorder 1, %s9
      %p972 = scmp.lt.s32.totalorder %s9, 3
      %p973 = pnand %p971, %p972
      %p974 = pneg %p973
      // Predicated region
      $region63: #{vgg19ca_forward.6} parent=5 // pred_check
        _
      $region64: #{vgg19ca_forward.6} parent=5 // pred_check_branch
        %976 = sbr.rel (%p973) target = $region66
      $region65: #{vgg19ca_forward.6} parent=5 // pred_region
        %s977 = ssub.s32 %s9, 1
        %s978 = sand.u32 %s60, 1
        %s979 = sand.u32 %s60, 1
        %s980 = smul.addr %s979, 1536
        %s981 = scalar_lea.vmem [#allocation2], %s980
        // Predicated region
        $region67: #{vgg19ca_forward.6} parent=65 // pred_check
          %p982 = pneg %p73
        $region68: #{vgg19ca_forward.6} parent=65 // pred_check_branch
          %984 = sbr.rel (%p982) target = $region70
        $region69: #{vgg19ca_forward.6} parent=65 // pred_region
          _
        $region70: #{vgg19ca_forward.6} parent=65 // pred_fallthru
          _
        %s985 = smul.u32 2, %s18
        %p986 = scmp.lt.s32.totalorder %s985, 1
        %s987 = scalar_select %p986, %s985, 1
        %s988 = smul.addr %s987, 12
        %s989 = smul.addr %s988, 4
        %s990 = scalar_lea.vmem %s0, %s989
        %p991 = pneg %p47
        %p992 = pneg %p44
        %s993 = sand.u32 %s60, 1
        %s994 = sand.u32 %s60, 1
        %s995 = smul.addr %s994, 1536
        %s996 = scalar_lea.vmem [#allocation2], %s995
        %p997 = pneg %p73
        %p998 = pneg %p70
        %s999 = smul.u32 2, %s19
        %p1000 = scmp.lt.s32.totalorder %s999, 3
        %s1001 = scalar_select %p1000, %s999, 3
        %s1002 = scalar_lea.vmem %s2, %s1001
        %p1003 = pneg %p99
        %p1004 = pneg %p96
        %p1005 = pneg %p127
        %p1006 = pneg %p124
        %s1007 = sand.u32 %s114, 1
        %s1008 = sand.u32 %s114, 1
        %s1009 = smul.addr %s1008, 16
        %s1010 = scalar_lea.vmem [#allocation3], %s1009
        %s1011 = smul.u32 2, %s18
        %p1012 = scmp.lt.s32.totalorder %s1011, 1
        %s1013 = scalar_select %p1012, %s1011, 1
        %s1014 = smul.addr %s1013, 12
        %s1015 = smul.addr %s1014, 4
        %s1016 = scalar_lea.vmem %s0, %s1015
        %s1017 = smul.u32 2, %s18
        %s1018 = smul.u32 2, %s19
        %s1019 = smul.u32 2, %s19
        %p1020 = scmp.lt.s32.totalorder %s1019, 3
        %s1021 = scalar_select %p1020, %s1019, 3
        %s1022 = scalar_lea.vmem %s2, %s1021
        %s1023 = smul.u32 2, %s19
        %s1024 = smul.u32 2, %s18
        %s1025 = smul.u32 2, %s19
        %v1026 = vld [vmem:[%s1016] sm:$0xff]
        %v1027 = vld [vmem:[%s1016 + $0x8] sm:$0xff]
        %v1028 = vld [vmem:[%s1016 + $0x10] sm:$0xff]
        %v1029 = vld [vmem:[%s1016 + $0x18] sm:$0xff]
        %v1030 = vld [vmem:[%s1016 + $0x20] sm:$0xff]
        %v1031 = vld [vmem:[%s1016 + $0x28] sm:$0xff]
        %v1032 = vld [vmem:[%s1016 + $0x30] sm:$0xff]
        %v1033 = vld [vmem:[%s1016 + $0x38] sm:$0xff]
        %v1034 = vld [vmem:[%s1016 + $0x40] sm:$0xff]
        %v1035 = vld [vmem:[%s1016 + $0x48] sm:$0xff]
        %v1036 = vld [vmem:[%s1016 + $0x50] sm:$0xff]
        %v1037 = vld [vmem:[%s1016 + $0x58] sm:$0xff]
        %v1038 = vld [vmem:[%s981] sm:$0xff]
        %v1039 = vld [vmem:[%s981 + $0x8] sm:$0xff]
        %v1040 = vld [vmem:[%s981 + $0x10] sm:$0xff]
        %v1041 = vld [vmem:[%s981 + $0x18] sm:$0xff]
        %v1042 = vld [vmem:[%s981 + $0x20] sm:$0xff]
        %v1043 = vld [vmem:[%s981 + $0x28] sm:$0xff]
        %v1044 = vld [vmem:[%s981 + $0x30] sm:$0xff]
        %v1045 = vld [vmem:[%s981 + $0x38] sm:$0xff]
        %v1046 = vld [vmem:[%s981 + $0x40] sm:$0xff]
        %v1047 = vld [vmem:[%s981 + $0x48] sm:$0xff]
        %v1048 = vld [vmem:[%s981 + $0x50] sm:$0xff]
        %v1049 = vld [vmem:[%s981 + $0x58] sm:$0xff]
        %v1050 = vld [vmem:[%s981 + $0x60] sm:$0xff]
        %v1051 = vld [vmem:[%s981 + $0x68] sm:$0xff]
        %v1052 = vld [vmem:[%s981 + $0x70] sm:$0xff]
        %v1053 = vld [vmem:[%s981 + $0x78] sm:$0xff]
        %v1054 = vld [vmem:[%s981 + $0x80] sm:$0xff]
        %v1055 = vld [vmem:[%s981 + $0x88] sm:$0xff]
        %v1056 = vld [vmem:[%s981 + $0x90] sm:$0xff]
        %v1057 = vld [vmem:[%s981 + $0x98] sm:$0xff]
        %v1058 = vld [vmem:[%s981 + $0xa0] sm:$0xff]
        %v1059 = vld [vmem:[%s981 + $0xa8] sm:$0xff]
        %v1060 = vld [vmem:[%s981 + $0xb0] sm:$0xff]
        %v1061 = vld [vmem:[%s981 + $0xb8] sm:$0xff]
        %v1062 = vld [vmem:[%s981 + $0xc0] sm:$0xff]
        %v1063 = vld [vmem:[%s981 + $0xc8] sm:$0xff]
        %v1064 = vld [vmem:[%s981 + $0xd0] sm:$0xff]
        %v1065 = vld [vmem:[%s981 + $0xd8] sm:$0xff]
        %v1066 = vld [vmem:[%s981 + $0xe0] sm:$0xff]
        %v1067 = vld [vmem:[%s981 + $0xe8] sm:$0xff]
        %v1068 = vld [vmem:[%s981 + $0xf0] sm:$0xff]
        %v1069 = vld [vmem:[%s981 + $0xf8] sm:$0xff]
        %v1070 = vld [vmem:[%s981 + $0x100] sm:$0xff]
        %v1071 = vld [vmem:[%s981 + $0x108] sm:$0xff]
        %v1072 = vld [vmem:[%s981 + $0x110] sm:$0xff]
        %v1073 = vld [vmem:[%s981 + $0x118] sm:$0xff]
        %v1074 = vld [vmem:[%s981 + $0x120] sm:$0xff]
        %v1075 = vld [vmem:[%s981 + $0x128] sm:$0xff]
        %v1076 = vld [vmem:[%s981 + $0x130] sm:$0xff]
        %v1077 = vld [vmem:[%s981 + $0x138] sm:$0xff]
        %v1078 = vld [vmem:[%s981 + $0x140] sm:$0xff]
        %v1079 = vld [vmem:[%s981 + $0x148] sm:$0xff]
        %v1080 = vld [vmem:[%s981 + $0x150] sm:$0xff]
        %v1081 = vld [vmem:[%s981 + $0x158] sm:$0xff]
        %v1082 = vld [vmem:[%s981 + $0x160] sm:$0xff]
        %v1083 = vld [vmem:[%s981 + $0x168] sm:$0xff]
        %v1084 = vld [vmem:[%s981 + $0x170] sm:$0xff]
        %v1085 = vld [vmem:[%s981 + $0x178] sm:$0xff]
        %v1086 = vld [vmem:[%s981 + $0x180] sm:$0xff]
        %v1087 = vld [vmem:[%s981 + $0x188] sm:$0xff]
        %v1088 = vld [vmem:[%s981 + $0x190] sm:$0xff]
        %v1089 = vld [vmem:[%s981 + $0x198] sm:$0xff]
        %v1090 = vld [vmem:[%s981 + $0x1a0] sm:$0xff]
        %v1091 = vld [vmem:[%s981 + $0x1a8] sm:$0xff]
        %v1092 = vld [vmem:[%s981 + $0x1b0] sm:$0xff]
        %v1093 = vld [vmem:[%s981 + $0x1b8] sm:$0xff]
        %v1094 = vld [vmem:[%s981 + $0x1c0] sm:$0xff]
        %v1095 = vld [vmem:[%s981 + $0x1c8] sm:$0xff]
        %v1096 = vld [vmem:[%s981 + $0x1d0] sm:$0xff]
        %v1097 = vld [vmem:[%s981 + $0x1d8] sm:$0xff]
        %v1098 = vld [vmem:[%s981 + $0x1e0] sm:$0xff]
        %v1099 = vld [vmem:[%s981 + $0x1e8] sm:$0xff]
        %v1100 = vld [vmem:[%s981 + $0x1f0] sm:$0xff]
        %v1101 = vld [vmem:[%s981 + $0x1f8] sm:$0xff]
        %v1102 = vld [vmem:[%s981 + $0x200] sm:$0xff]
        %v1103 = vld [vmem:[%s981 + $0x208] sm:$0xff]
        %v1104 = vld [vmem:[%s981 + $0x210] sm:$0xff]
        %v1105 = vld [vmem:[%s981 + $0x218] sm:$0xff]
        %v1106 = vld [vmem:[%s981 + $0x220] sm:$0xff]
        %v1107 = vld [vmem:[%s981 + $0x228] sm:$0xff]
        %v1108 = vld [vmem:[%s981 + $0x230] sm:$0xff]
        %v1109 = vld [vmem:[%s981 + $0x238] sm:$0xff]
        %v1110 = vld [vmem:[%s981 + $0x240] sm:$0xff]
        %v1111 = vld [vmem:[%s981 + $0x248] sm:$0xff]
        %v1112 = vld [vmem:[%s981 + $0x250] sm:$0xff]
        %v1113 = vld [vmem:[%s981 + $0x258] sm:$0xff]
        %v1114 = vld [vmem:[%s981 + $0x260] sm:$0xff]
        %v1115 = vld [vmem:[%s981 + $0x268] sm:$0xff]
        %v1116 = vld [vmem:[%s981 + $0x270] sm:$0xff]
        %v1117 = vld [vmem:[%s981 + $0x278] sm:$0xff]
        %v1118 = vld [vmem:[%s981 + $0x280] sm:$0xff]
        %v1119 = vld [vmem:[%s981 + $0x288] sm:$0xff]
        %v1120 = vld [vmem:[%s981 + $0x290] sm:$0xff]
        %v1121 = vld [vmem:[%s981 + $0x298] sm:$0xff]
        %v1122 = vld [vmem:[%s981 + $0x2a0] sm:$0xff]
        %v1123 = vld [vmem:[%s981 + $0x2a8] sm:$0xff]
        %v1124 = vld [vmem:[%s981 + $0x2b0] sm:$0xff]
        %v1125 = vld [vmem:[%s981 + $0x2b8] sm:$0xff]
        %v1126 = vld [vmem:[%s981 + $0x2c0] sm:$0xff]
        %v1127 = vld [vmem:[%s981 + $0x2c8] sm:$0xff]
        %v1128 = vld [vmem:[%s981 + $0x2d0] sm:$0xff]
        %v1129 = vld [vmem:[%s981 + $0x2d8] sm:$0xff]
        %v1130 = vld [vmem:[%s981 + $0x2e0] sm:$0xff]
        %v1131 = vld [vmem:[%s981 + $0x2e8] sm:$0xff]
        %v1132 = vld [vmem:[%s981 + $0x2f0] sm:$0xff]
        %v1133 = vld [vmem:[%s981 + $0x2f8] sm:$0xff]
        %v1134 = vld [vmem:[%s981 + $0x300] sm:$0xff]
        %v1135 = vld [vmem:[%s981 + $0x308] sm:$0xff]
        %v1136 = vld [vmem:[%s981 + $0x310] sm:$0xff]
        %v1137 = vld [vmem:[%s981 + $0x318] sm:$0xff]
        %v1138 = vld [vmem:[%s981 + $0x320] sm:$0xff]
        %v1139 = vld [vmem:[%s981 + $0x328] sm:$0xff]
        %v1140 = vld [vmem:[%s981 + $0x330] sm:$0xff]
        %v1141 = vld [vmem:[%s981 + $0x338] sm:$0xff]
        %v1142 = vld [vmem:[%s981 + $0x340] sm:$0xff]
        %v1143 = vld [vmem:[%s981 + $0x348] sm:$0xff]
        %v1144 = vld [vmem:[%s981 + $0x350] sm:$0xff]
        %v1145 = vld [vmem:[%s981 + $0x358] sm:$0xff]
        %v1146 = vld [vmem:[%s981 + $0x360] sm:$0xff]
        %v1147 = vld [vmem:[%s981 + $0x368] sm:$0xff]
        %v1148 = vld [vmem:[%s981 + $0x370] sm:$0xff]
        %v1149 = vld [vmem:[%s981 + $0x378] sm:$0xff]
        %v1150 = vld [vmem:[%s981 + $0x380] sm:$0xff]
        %v1151 = vld [vmem:[%s981 + $0x388] sm:$0xff]
        %v1152 = vld [vmem:[%s981 + $0x390] sm:$0xff]
        %v1153 = vld [vmem:[%s981 + $0x398] sm:$0xff]
        %v1154 = vld [vmem:[%s981 + $0x3a0] sm:$0xff]
        %v1155 = vld [vmem:[%s981 + $0x3a8] sm:$0xff]
        %v1156 = vld [vmem:[%s981 + $0x3b0] sm:$0xff]
        %v1157 = vld [vmem:[%s981 + $0x3b8] sm:$0xff]
        %v1158 = vld [vmem:[%s981 + $0x3c0] sm:$0xff]
        %v1159 = vld [vmem:[%s981 + $0x3c8] sm:$0xff]
        %v1160 = vld [vmem:[%s981 + $0x3d0] sm:$0xff]
        %v1161 = vld [vmem:[%s981 + $0x3d8] sm:$0xff]
        %v1162 = vld [vmem:[%s981 + $0x3e0] sm:$0xff]
        %v1163 = vld [vmem:[%s981 + $0x3e8] sm:$0xff]
        %v1164 = vld [vmem:[%s981 + $0x3f0] sm:$0xff]
        %v1165 = vld [vmem:[%s981 + $0x3f8] sm:$0xff]
        %v1166 = vld [vmem:[%s981 + $0x400] sm:$0xff]
        %v1167 = vld [vmem:[%s981 + $0x408] sm:$0xff]
        %v1168 = vld [vmem:[%s981 + $0x410] sm:$0xff]
        %v1169 = vld [vmem:[%s981 + $0x418] sm:$0xff]
        %v1170 = vld [vmem:[%s981 + $0x420] sm:$0xff]
        %v1171 = vld [vmem:[%s981 + $0x428] sm:$0xff]
        %v1172 = vld [vmem:[%s981 + $0x430] sm:$0xff]
        %v1173 = vld [vmem:[%s981 + $0x438] sm:$0xff]
        %v1174 = vld [vmem:[%s981 + $0x440] sm:$0xff]
        %v1175 = vld [vmem:[%s981 + $0x448] sm:$0xff]
        %v1176 = vld [vmem:[%s981 + $0x450] sm:$0xff]
        %v1177 = vld [vmem:[%s981 + $0x458] sm:$0xff]
        %v1178 = vld [vmem:[%s981 + $0x460] sm:$0xff]
        %v1179 = vld [vmem:[%s981 + $0x468] sm:$0xff]
        %v1180 = vld [vmem:[%s981 + $0x470] sm:$0xff]
        %v1181 = vld [vmem:[%s981 + $0x478] sm:$0xff]
        %v1182 = vld [vmem:[%s981 + $0x480] sm:$0xff]
        %v1183 = vld [vmem:[%s981 + $0x488] sm:$0xff]
        %v1184 = vld [vmem:[%s981 + $0x490] sm:$0xff]
        %v1185 = vld [vmem:[%s981 + $0x498] sm:$0xff]
        %v1186 = vld [vmem:[%s981 + $0x4a0] sm:$0xff]
        %v1187 = vld [vmem:[%s981 + $0x4a8] sm:$0xff]
        %v1188 = vld [vmem:[%s981 + $0x4b0] sm:$0xff]
        %v1189 = vld [vmem:[%s981 + $0x4b8] sm:$0xff]
        %v1190 = vld [vmem:[%s981 + $0x4c0] sm:$0xff]
        %v1191 = vld [vmem:[%s981 + $0x4c8] sm:$0xff]
        %v1192 = vld [vmem:[%s981 + $0x4d0] sm:$0xff]
        %v1193 = vld [vmem:[%s981 + $0x4d8] sm:$0xff]
        %v1194 = vld [vmem:[%s981 + $0x4e0] sm:$0xff]
        %v1195 = vld [vmem:[%s981 + $0x4e8] sm:$0xff]
        %v1196 = vld [vmem:[%s981 + $0x4f0] sm:$0xff]
        %v1197 = vld [vmem:[%s981 + $0x4f8] sm:$0xff]
        %v1198 = vld [vmem:[%s981 + $0x500] sm:$0xff]
        %v1199 = vld [vmem:[%s981 + $0x508] sm:$0xff]
        %v1200 = vld [vmem:[%s981 + $0x510] sm:$0xff]
        %v1201 = vld [vmem:[%s981 + $0x518] sm:$0xff]
        %v1202 = vld [vmem:[%s981 + $0x520] sm:$0xff]
        %v1203 = vld [vmem:[%s981 + $0x528] sm:$0xff]
        %v1204 = vld [vmem:[%s981 + $0x530] sm:$0xff]
        %v1205 = vld [vmem:[%s981 + $0x538] sm:$0xff]
        %v1206 = vld [vmem:[%s981 + $0x540] sm:$0xff]
        %v1207 = vld [vmem:[%s981 + $0x548] sm:$0xff]
        %v1208 = vld [vmem:[%s981 + $0x550] sm:$0xff]
        %v1209 = vld [vmem:[%s981 + $0x558] sm:$0xff]
        %v1210 = vld [vmem:[%s981 + $0x560] sm:$0xff]
        %v1211 = vld [vmem:[%s981 + $0x568] sm:$0xff]
        %v1212 = vld [vmem:[%s981 + $0x570] sm:$0xff]
        %v1213 = vld [vmem:[%s981 + $0x578] sm:$0xff]
        %v1214 = vld [vmem:[%s981 + $0x580] sm:$0xff]
        %v1215 = vld [vmem:[%s981 + $0x588] sm:$0xff]
        %v1216 = vld [vmem:[%s981 + $0x590] sm:$0xff]
        %v1217 = vld [vmem:[%s981 + $0x598] sm:$0xff]
        %v1218 = vld [vmem:[%s981 + $0x5a0] sm:$0xff]
        %v1219 = vld [vmem:[%s981 + $0x5a8] sm:$0xff]
        %v1220 = vld [vmem:[%s981 + $0x5b0] sm:$0xff]
        %v1221 = vld [vmem:[%s981 + $0x5b8] sm:$0xff]
        %v1222 = vld [vmem:[%s981 + $0x5c0] sm:$0xff]
        %v1223 = vld [vmem:[%s981 + $0x5c8] sm:$0xff]
        %v1224 = vld [vmem:[%s981 + $0x5d0] sm:$0xff]
        %v1225 = vld [vmem:[%s981 + $0x5d8] sm:$0xff]
        %v1226 = vld [vmem:[%s981 + $0x5e0] sm:$0xff]
        %v1227 = vld [vmem:[%s981 + $0x5e8] sm:$0xff]
        %v1228 = vld [vmem:[%s981 + $0x5f0] sm:$0xff]
        %v1229 = vld [vmem:[%s981 + $0x5f8] sm:$0xff]
        %v1230 = vld [vmem:[%s1022] sm:$0x3]
        %v1232 = vlaneseq
        %v1233 = vshrl.u32 %v1232, 7
        %v1234 = vsub.s32 0, %v1233
        %v1235 = vrot.slane %v1230, %v1234
        %v1236 = vlaneseq
        %v1237 = vshrl.u32 %v1236, 7
        %v1238 = vsub.s32 1, %v1237
        %v1239 = vrot.slane %v1230, %v1238
        %v1254 = vunpack.c.l.b16 %v1026
        %v1255 = vunpack.c.h.b16 %v1026
        %v1256 = vunpack.c.l.b16 %v1027
        %v1257 = vunpack.c.h.b16 %v1027
        %v1258 = vunpack.c.l.b16 %v1028
        %v1259 = vunpack.c.h.b16 %v1028
        %v1260 = vunpack.c.l.b16 %v1029
        %v1261 = vunpack.c.h.b16 %v1029
        %v1262 = vunpack.c.l.b16 %v1030
        %v1263 = vunpack.c.h.b16 %v1030
        %v1264 = vunpack.c.l.b16 %v1031
        %v1265 = vunpack.c.h.b16 %v1031
        %v1266 = vunpack.c.l.b16 %v1032
        %v1267 = vunpack.c.h.b16 %v1032
        %v1268 = vunpack.c.l.b16 %v1033
        %v1269 = vunpack.c.h.b16 %v1033
        %v1270 = vunpack.c.l.b16 %v1034
        %v1271 = vunpack.c.h.b16 %v1034
        %v1272 = vunpack.c.l.b16 %v1035
        %v1273 = vunpack.c.h.b16 %v1035
        %v1274 = vunpack.c.l.b16 %v1036
        %v1275 = vunpack.c.h.b16 %v1036
        %v1276 = vunpack.c.l.b16 %v1037
        %v1277 = vunpack.c.h.b16 %v1037
        %v1278 = vpack.c.b16 %v1266, %v1254
        %v1279 = vpack.c.b16 %v1267, %v1255
        %v1280 = vpack.c.b16 %v1268, %v1256
        %v1281 = vpack.c.b16 %v1269, %v1257
        %v1282 = vpack.c.b16 %v1270, %v1258
        %v1283 = vpack.c.b16 %v1271, %v1259
        %v1284 = vpack.c.b16 %v1272, %v1260
        %v1285 = vpack.c.b16 %v1273, %v1261
        %v1286 = vpack.c.b16 %v1274, %v1262
        %v1287 = vpack.c.b16 %v1275, %v1263
        %v1288 = vpack.c.b16 %v1276, %v1264
        %v1289 = vpack.c.b16 %v1277, %v1265
        %v1494 = vunpack.c.l.b16 %v1038
        %v1495 = vunpack.c.h.b16 %v1038
        %v1496 = vunpack.c.l.b16 %v1039
        %v1497 = vunpack.c.h.b16 %v1039
        %v1498 = vunpack.c.l.b16 %v1040
        %v1499 = vunpack.c.h.b16 %v1040
        %v1500 = vunpack.c.l.b16 %v1041
        %v1501 = vunpack.c.h.b16 %v1041
        %v1502 = vunpack.c.l.b16 %v1042
        %v1503 = vunpack.c.h.b16 %v1042
        %v1504 = vunpack.c.l.b16 %v1043
        %v1505 = vunpack.c.h.b16 %v1043
        %v1506 = vunpack.c.l.b16 %v1044
        %v1507 = vunpack.c.h.b16 %v1044
        %v1508 = vunpack.c.l.b16 %v1045
        %v1509 = vunpack.c.h.b16 %v1045
        %v1510 = vunpack.c.l.b16 %v1046
        %v1511 = vunpack.c.h.b16 %v1046
        %v1512 = vunpack.c.l.b16 %v1047
        %v1513 = vunpack.c.h.b16 %v1047
        %v1514 = vunpack.c.l.b16 %v1048
        %v1515 = vunpack.c.h.b16 %v1048
        %v1516 = vunpack.c.l.b16 %v1049
        %v1517 = vunpack.c.h.b16 %v1049
        %v1518 = vunpack.c.l.b16 %v1050
        %v1519 = vunpack.c.h.b16 %v1050
        %v1520 = vunpack.c.l.b16 %v1051
        %v1521 = vunpack.c.h.b16 %v1051
        %v1522 = vunpack.c.l.b16 %v1052
        %v1523 = vunpack.c.h.b16 %v1052
        %v1524 = vunpack.c.l.b16 %v1053
        %v1525 = vunpack.c.h.b16 %v1053
        %v1526 = vunpack.c.l.b16 %v1054
        %v1527 = vunpack.c.h.b16 %v1054
        %v1528 = vunpack.c.l.b16 %v1055
        %v1529 = vunpack.c.h.b16 %v1055
        %v1530 = vunpack.c.l.b16 %v1056
        %v1531 = vunpack.c.h.b16 %v1056
        %v1532 = vunpack.c.l.b16 %v1057
        %v1533 = vunpack.c.h.b16 %v1057
        %v1534 = vunpack.c.l.b16 %v1058
        %v1535 = vunpack.c.h.b16 %v1058
        %v1536 = vunpack.c.l.b16 %v1059
        %v1537 = vunpack.c.h.b16 %v1059
        %v1538 = vunpack.c.l.b16 %v1060
        %v1539 = vunpack.c.h.b16 %v1060
        %v1540 = vunpack.c.l.b16 %v1061
        %v1541 = vunpack.c.h.b16 %v1061
        %v1542 = vunpack.c.l.b16 %v1062
        %v1543 = vunpack.c.h.b16 %v1062
        %v1544 = vunpack.c.l.b16 %v1063
        %v1545 = vunpack.c.h.b16 %v1063
        %v1546 = vunpack.c.l.b16 %v1064
        %v1547 = vunpack.c.h.b16 %v1064
        %v1548 = vunpack.c.l.b16 %v1065
        %v1549 = vunpack.c.h.b16 %v1065
        %v1550 = vunpack.c.l.b16 %v1066
        %v1551 = vunpack.c.h.b16 %v1066
        %v1552 = vunpack.c.l.b16 %v1067
        %v1553 = vunpack.c.h.b16 %v1067
        %v1554 = vunpack.c.l.b16 %v1068
        %v1555 = vunpack.c.h.b16 %v1068
        %v1556 = vunpack.c.l.b16 %v1069
        %v1557 = vunpack.c.h.b16 %v1069
        %v1558 = vunpack.c.l.b16 %v1070
        %v1559 = vunpack.c.h.b16 %v1070
        %v1560 = vunpack.c.l.b16 %v1071
        %v1561 = vunpack.c.h.b16 %v1071
        %v1562 = vunpack.c.l.b16 %v1072
        %v1563 = vunpack.c.h.b16 %v1072
        %v1564 = vunpack.c.l.b16 %v1073
        %v1565 = vunpack.c.h.b16 %v1073
        %v1566 = vunpack.c.l.b16 %v1074
        %v1567 = vunpack.c.h.b16 %v1074
        %v1568 = vunpack.c.l.b16 %v1075
        %v1569 = vunpack.c.h.b16 %v1075
        %v1570 = vunpack.c.l.b16 %v1076
        %v1571 = vunpack.c.h.b16 %v1076
        %v1572 = vunpack.c.l.b16 %v1077
        %v1573 = vunpack.c.h.b16 %v1077
        %v1574 = vunpack.c.l.b16 %v1078
        %v1575 = vunpack.c.h.b16 %v1078
        %v1576 = vunpack.c.l.b16 %v1079
        %v1577 = vunpack.c.h.b16 %v1079
        %v1578 = vunpack.c.l.b16 %v1080
        %v1579 = vunpack.c.h.b16 %v1080
        %v1580 = vunpack.c.l.b16 %v1081
        %v1581 = vunpack.c.h.b16 %v1081
        %v1582 = vunpack.c.l.b16 %v1082
        %v1583 = vunpack.c.h.b16 %v1082
        %v1584 = vunpack.c.l.b16 %v1083
        %v1585 = vunpack.c.h.b16 %v1083
        %v1586 = vunpack.c.l.b16 %v1084
        %v1587 = vunpack.c.h.b16 %v1084
        %v1588 = vunpack.c.l.b16 %v1085
        %v1589 = vunpack.c.h.b16 %v1085
        %v1590 = vunpack.c.l.b16 %v1086
        %v1591 = vunpack.c.h.b16 %v1086
        %v1592 = vunpack.c.l.b16 %v1087
        %v1593 = vunpack.c.h.b16 %v1087
        %v1594 = vunpack.c.l.b16 %v1088
        %v1595 = vunpack.c.h.b16 %v1088
        %v1596 = vunpack.c.l.b16 %v1089
        %v1597 = vunpack.c.h.b16 %v1089
        %v1598 = vunpack.c.l.b16 %v1090
        %v1599 = vunpack.c.h.b16 %v1090
        %v1600 = vunpack.c.l.b16 %v1091
        %v1601 = vunpack.c.h.b16 %v1091
        %v1602 = vunpack.c.l.b16 %v1092
        %v1603 = vunpack.c.h.b16 %v1092
        %v1604 = vunpack.c.l.b16 %v1093
        %v1605 = vunpack.c.h.b16 %v1093
        %v1606 = vunpack.c.l.b16 %v1094
        %v1607 = vunpack.c.h.b16 %v1094
        %v1608 = vunpack.c.l.b16 %v1095
        %v1609 = vunpack.c.h.b16 %v1095
        %v1610 = vunpack.c.l.b16 %v1096
        %v1611 = vunpack.c.h.b16 %v1096
        %v1612 = vunpack.c.l.b16 %v1097
        %v1613 = vunpack.c.h.b16 %v1097
        %v1614 = vunpack.c.l.b16 %v1098
        %v1615 = vunpack.c.h.b16 %v1098
        %v1616 = vunpack.c.l.b16 %v1099
        %v1617 = vunpack.c.h.b16 %v1099
        %v1618 = vunpack.c.l.b16 %v1100
        %v1619 = vunpack.c.h.b16 %v1100
        %v1620 = vunpack.c.l.b16 %v1101
        %v1621 = vunpack.c.h.b16 %v1101
        %v1622 = vunpack.c.l.b16 %v1102
        %v1623 = vunpack.c.h.b16 %v1102
        %v1624 = vunpack.c.l.b16 %v1103
        %v1625 = vunpack.c.h.b16 %v1103
        %v1626 = vunpack.c.l.b16 %v1104
        %v1627 = vunpack.c.h.b16 %v1104
        %v1628 = vunpack.c.l.b16 %v1105
        %v1629 = vunpack.c.h.b16 %v1105
        %v1630 = vunpack.c.l.b16 %v1106
        %v1631 = vunpack.c.h.b16 %v1106
        %v1632 = vunpack.c.l.b16 %v1107
        %v1633 = vunpack.c.h.b16 %v1107
        %v1634 = vunpack.c.l.b16 %v1108
        %v1635 = vunpack.c.h.b16 %v1108
        %v1636 = vunpack.c.l.b16 %v1109
        %v1637 = vunpack.c.h.b16 %v1109
        %v1638 = vunpack.c.l.b16 %v1110
        %v1639 = vunpack.c.h.b16 %v1110
        %v1640 = vunpack.c.l.b16 %v1111
        %v1641 = vunpack.c.h.b16 %v1111
        %v1642 = vunpack.c.l.b16 %v1112
        %v1643 = vunpack.c.h.b16 %v1112
        %v1644 = vunpack.c.l.b16 %v1113
        %v1645 = vunpack.c.h.b16 %v1113
        %v1646 = vunpack.c.l.b16 %v1114
        %v1647 = vunpack.c.h.b16 %v1114
        %v1648 = vunpack.c.l.b16 %v1115
        %v1649 = vunpack.c.h.b16 %v1115
        %v1650 = vunpack.c.l.b16 %v1116
        %v1651 = vunpack.c.h.b16 %v1116
        %v1652 = vunpack.c.l.b16 %v1117
        %v1653 = vunpack.c.h.b16 %v1117
        %v1654 = vunpack.c.l.b16 %v1118
        %v1655 = vunpack.c.h.b16 %v1118
        %v1656 = vunpack.c.l.b16 %v1119
        %v1657 = vunpack.c.h.b16 %v1119
        %v1658 = vunpack.c.l.b16 %v1120
        %v1659 = vunpack.c.h.b16 %v1120
        %v1660 = vunpack.c.l.b16 %v1121
        %v1661 = vunpack.c.h.b16 %v1121
        %v1662 = vunpack.c.l.b16 %v1122
        %v1663 = vunpack.c.h.b16 %v1122
        %v1664 = vunpack.c.l.b16 %v1123
        %v1665 = vunpack.c.h.b16 %v1123
        %v1666 = vunpack.c.l.b16 %v1124
        %v1667 = vunpack.c.h.b16 %v1124
        %v1668 = vunpack.c.l.b16 %v1125
        %v1669 = vunpack.c.h.b16 %v1125
        %v1670 = vunpack.c.l.b16 %v1126
        %v1671 = vunpack.c.h.b16 %v1126
        %v1672 = vunpack.c.l.b16 %v1127
        %v1673 = vunpack.c.h.b16 %v1127
        %v1674 = vunpack.c.l.b16 %v1128
        %v1675 = vunpack.c.h.b16 %v1128
        %v1676 = vunpack.c.l.b16 %v1129
        %v1677 = vunpack.c.h.b16 %v1129
        %v1678 = vunpack.c.l.b16 %v1130
        %v1679 = vunpack.c.h.b16 %v1130
        %v1680 = vunpack.c.l.b16 %v1131
        %v1681 = vunpack.c.h.b16 %v1131
        %v1682 = vunpack.c.l.b16 %v1132
        %v1683 = vunpack.c.h.b16 %v1132
        %v1684 = vunpack.c.l.b16 %v1133
        %v1685 = vunpack.c.h.b16 %v1133
        %v1686 = vunpack.c.l.b16 %v1134
        %v1687 = vunpack.c.h.b16 %v1134
        %v1688 = vunpack.c.l.b16 %v1135
        %v1689 = vunpack.c.h.b16 %v1135
        %v1690 = vunpack.c.l.b16 %v1136
        %v1691 = vunpack.c.h.b16 %v1136
        %v1692 = vunpack.c.l.b16 %v1137
        %v1693 = vunpack.c.h.b16 %v1137
        %v1694 = vunpack.c.l.b16 %v1138
        %v1695 = vunpack.c.h.b16 %v1138
        %v1696 = vunpack.c.l.b16 %v1139
        %v1697 = vunpack.c.h.b16 %v1139
        %v1698 = vunpack.c.l.b16 %v1140
        %v1699 = vunpack.c.h.b16 %v1140
        %v1700 = vunpack.c.l.b16 %v1141
        %v1701 = vunpack.c.h.b16 %v1141
        %v1702 = vunpack.c.l.b16 %v1142
        %v1703 = vunpack.c.h.b16 %v1142
        %v1704 = vunpack.c.l.b16 %v1143
        %v1705 = vunpack.c.h.b16 %v1143
        %v1706 = vunpack.c.l.b16 %v1144
        %v1707 = vunpack.c.h.b16 %v1144
        %v1708 = vunpack.c.l.b16 %v1145
        %v1709 = vunpack.c.h.b16 %v1145
        %v1710 = vunpack.c.l.b16 %v1146
        %v1711 = vunpack.c.h.b16 %v1146
        %v1712 = vunpack.c.l.b16 %v1147
        %v1713 = vunpack.c.h.b16 %v1147
        %v1714 = vunpack.c.l.b16 %v1148
        %v1715 = vunpack.c.h.b16 %v1148
        %v1716 = vunpack.c.l.b16 %v1149
        %v1717 = vunpack.c.h.b16 %v1149
        %v1718 = vunpack.c.l.b16 %v1150
        %v1719 = vunpack.c.h.b16 %v1150
        %v1720 = vunpack.c.l.b16 %v1151
        %v1721 = vunpack.c.h.b16 %v1151
        %v1722 = vunpack.c.l.b16 %v1152
        %v1723 = vunpack.c.h.b16 %v1152
        %v1724 = vunpack.c.l.b16 %v1153
        %v1725 = vunpack.c.h.b16 %v1153
        %v1726 = vunpack.c.l.b16 %v1154
        %v1727 = vunpack.c.h.b16 %v1154
        %v1728 = vunpack.c.l.b16 %v1155
        %v1729 = vunpack.c.h.b16 %v1155
        %v1730 = vunpack.c.l.b16 %v1156
        %v1731 = vunpack.c.h.b16 %v1156
        %v1732 = vunpack.c.l.b16 %v1157
        %v1733 = vunpack.c.h.b16 %v1157
        %v1734 = vunpack.c.l.b16 %v1158
        %v1735 = vunpack.c.h.b16 %v1158
        %v1736 = vunpack.c.l.b16 %v1159
        %v1737 = vunpack.c.h.b16 %v1159
        %v1738 = vunpack.c.l.b16 %v1160
        %v1739 = vunpack.c.h.b16 %v1160
        %v1740 = vunpack.c.l.b16 %v1161
        %v1741 = vunpack.c.h.b16 %v1161
        %v1742 = vunpack.c.l.b16 %v1162
        %v1743 = vunpack.c.h.b16 %v1162
        %v1744 = vunpack.c.l.b16 %v1163
        %v1745 = vunpack.c.h.b16 %v1163
        %v1746 = vunpack.c.l.b16 %v1164
        %v1747 = vunpack.c.h.b16 %v1164
        %v1748 = vunpack.c.l.b16 %v1165
        %v1749 = vunpack.c.h.b16 %v1165
        %v1750 = vunpack.c.l.b16 %v1166
        %v1751 = vunpack.c.h.b16 %v1166
        %v1752 = vunpack.c.l.b16 %v1167
        %v1753 = vunpack.c.h.b16 %v1167
        %v1754 = vunpack.c.l.b16 %v1168
        %v1755 = vunpack.c.h.b16 %v1168
        %v1756 = vunpack.c.l.b16 %v1169
        %v1757 = vunpack.c.h.b16 %v1169
        %v1758 = vunpack.c.l.b16 %v1170
        %v1759 = vunpack.c.h.b16 %v1170
        %v1760 = vunpack.c.l.b16 %v1171
        %v1761 = vunpack.c.h.b16 %v1171
        %v1762 = vunpack.c.l.b16 %v1172
        %v1763 = vunpack.c.h.b16 %v1172
        %v1764 = vunpack.c.l.b16 %v1173
        %v1765 = vunpack.c.h.b16 %v1173
        %v1766 = vunpack.c.l.b16 %v1174
        %v1767 = vunpack.c.h.b16 %v1174
        %v1768 = vunpack.c.l.b16 %v1175
        %v1769 = vunpack.c.h.b16 %v1175
        %v1770 = vunpack.c.l.b16 %v1176
        %v1771 = vunpack.c.h.b16 %v1176
        %v1772 = vunpack.c.l.b16 %v1177
        %v1773 = vunpack.c.h.b16 %v1177
        %v1774 = vunpack.c.l.b16 %v1178
        %v1775 = vunpack.c.h.b16 %v1178
        %v1776 = vunpack.c.l.b16 %v1179
        %v1777 = vunpack.c.h.b16 %v1179
        %v1778 = vunpack.c.l.b16 %v1180
        %v1779 = vunpack.c.h.b16 %v1180
        %v1780 = vunpack.c.l.b16 %v1181
        %v1781 = vunpack.c.h.b16 %v1181
        %v1782 = vunpack.c.l.b16 %v1182
        %v1783 = vunpack.c.h.b16 %v1182
        %v1784 = vunpack.c.l.b16 %v1183
        %v1785 = vunpack.c.h.b16 %v1183
        %v1786 = vunpack.c.l.b16 %v1184
        %v1787 = vunpack.c.h.b16 %v1184
        %v1788 = vunpack.c.l.b16 %v1185
        %v1789 = vunpack.c.h.b16 %v1185
        %v1790 = vunpack.c.l.b16 %v1186
        %v1791 = vunpack.c.h.b16 %v1186
        %v1792 = vunpack.c.l.b16 %v1187
        %v1793 = vunpack.c.h.b16 %v1187
        %v1794 = vunpack.c.l.b16 %v1188
        %v1795 = vunpack.c.h.b16 %v1188
        %v1796 = vunpack.c.l.b16 %v1189
        %v1797 = vunpack.c.h.b16 %v1189
        %v1798 = vunpack.c.l.b16 %v1190
        %v1799 = vunpack.c.h.b16 %v1190
        %v1800 = vunpack.c.l.b16 %v1191
        %v1801 = vunpack.c.h.b16 %v1191
        %v1802 = vunpack.c.l.b16 %v1192
        %v1803 = vunpack.c.h.b16 %v1192
        %v1804 = vunpack.c.l.b16 %v1193
        %v1805 = vunpack.c.h.b16 %v1193
        %v1806 = vunpack.c.l.b16 %v1194
        %v1807 = vunpack.c.h.b16 %v1194
        %v1808 = vunpack.c.l.b16 %v1195
        %v1809 = vunpack.c.h.b16 %v1195
        %v1810 = vunpack.c.l.b16 %v1196
        %v1811 = vunpack.c.h.b16 %v1196
        %v1812 = vunpack.c.l.b16 %v1197
        %v1813 = vunpack.c.h.b16 %v1197
        %v1814 = vunpack.c.l.b16 %v1198
        %v1815 = vunpack.c.h.b16 %v1198
        %v1816 = vunpack.c.l.b16 %v1199
        %v1817 = vunpack.c.h.b16 %v1199
        %v1818 = vunpack.c.l.b16 %v1200
        %v1819 = vunpack.c.h.b16 %v1200
        %v1820 = vunpack.c.l.b16 %v1201
        %v1821 = vunpack.c.h.b16 %v1201
        %v1822 = vunpack.c.l.b16 %v1202
        %v1823 = vunpack.c.h.b16 %v1202
        %v1824 = vunpack.c.l.b16 %v1203
        %v1825 = vunpack.c.h.b16 %v1203
        %v1826 = vunpack.c.l.b16 %v1204
        %v1827 = vunpack.c.h.b16 %v1204
        %v1828 = vunpack.c.l.b16 %v1205
        %v1829 = vunpack.c.h.b16 %v1205
        %v1830 = vunpack.c.l.b16 %v1206
        %v1831 = vunpack.c.h.b16 %v1206
        %v1832 = vunpack.c.l.b16 %v1207
        %v1833 = vunpack.c.h.b16 %v1207
        %v1834 = vunpack.c.l.b16 %v1208
        %v1835 = vunpack.c.h.b16 %v1208
        %v1836 = vunpack.c.l.b16 %v1209
        %v1837 = vunpack.c.h.b16 %v1209
        %v1838 = vunpack.c.l.b16 %v1210
        %v1839 = vunpack.c.h.b16 %v1210
        %v1840 = vunpack.c.l.b16 %v1211
        %v1841 = vunpack.c.h.b16 %v1211
        %v1842 = vunpack.c.l.b16 %v1212
        %v1843 = vunpack.c.h.b16 %v1212
        %v1844 = vunpack.c.l.b16 %v1213
        %v1845 = vunpack.c.h.b16 %v1213
        %v1846 = vunpack.c.l.b16 %v1214
        %v1847 = vunpack.c.h.b16 %v1214
        %v1848 = vunpack.c.l.b16 %v1215
        %v1849 = vunpack.c.h.b16 %v1215
        %v1850 = vunpack.c.l.b16 %v1216
        %v1851 = vunpack.c.h.b16 %v1216
        %v1852 = vunpack.c.l.b16 %v1217
        %v1853 = vunpack.c.h.b16 %v1217
        %v1854 = vunpack.c.l.b16 %v1218
        %v1855 = vunpack.c.h.b16 %v1218
        %v1856 = vunpack.c.l.b16 %v1219
        %v1857 = vunpack.c.h.b16 %v1219
        %v1858 = vunpack.c.l.b16 %v1220
        %v1859 = vunpack.c.h.b16 %v1220
        %v1860 = vunpack.c.l.b16 %v1221
        %v1861 = vunpack.c.h.b16 %v1221
        %v1862 = vunpack.c.l.b16 %v1222
        %v1863 = vunpack.c.h.b16 %v1222
        %v1864 = vunpack.c.l.b16 %v1223
        %v1865 = vunpack.c.h.b16 %v1223
        %v1866 = vunpack.c.l.b16 %v1224
        %v1867 = vunpack.c.h.b16 %v1224
        %v1868 = vunpack.c.l.b16 %v1225
        %v1869 = vunpack.c.h.b16 %v1225
        %v1870 = vunpack.c.l.b16 %v1226
        %v1871 = vunpack.c.h.b16 %v1226
        %v1872 = vunpack.c.l.b16 %v1227
        %v1873 = vunpack.c.h.b16 %v1227
        %v1874 = vunpack.c.l.b16 %v1228
        %v1875 = vunpack.c.h.b16 %v1228
        %v1876 = vunpack.c.l.b16 %v1229
        %v1877 = vunpack.c.h.b16 %v1229
        %v1878 = vpack.c.b16 %v1496, %v1494
        %v1879 = vpack.c.b16 %v1497, %v1495
        %v1880 = vpack.c.b16 %v1500, %v1498
        %v1881 = vpack.c.b16 %v1501, %v1499
        %v1882 = vpack.c.b16 %v1504, %v1502
        %v1883 = vpack.c.b16 %v1505, %v1503
        %v1884 = vpack.c.b16 %v1508, %v1506
        %v1885 = vpack.c.b16 %v1509, %v1507
        %v1886 = vpack.c.b16 %v1512, %v1510
        %v1887 = vpack.c.b16 %v1513, %v1511
        %v1888 = vpack.c.b16 %v1516, %v1514
        %v1889 = vpack.c.b16 %v1517, %v1515
        %v1890 = vpack.c.b16 %v1520, %v1518
        %v1891 = vpack.c.b16 %v1521, %v1519
        %v1892 = vpack.c.b16 %v1524, %v1522
        %v1893 = vpack.c.b16 %v1525, %v1523
        %v1894 = vpack.c.b16 %v1528, %v1526
        %v1895 = vpack.c.b16 %v1529, %v1527
        %v1896 = vpack.c.b16 %v1532, %v1530
        %v1897 = vpack.c.b16 %v1533, %v1531
        %v1898 = vpack.c.b16 %v1536, %v1534
        %v1899 = vpack.c.b16 %v1537, %v1535
        %v1900 = vpack.c.b16 %v1540, %v1538
        %v1901 = vpack.c.b16 %v1541, %v1539
        %v1902 = vpack.c.b16 %v1544, %v1542
        %v1903 = vpack.c.b16 %v1545, %v1543
        %v1904 = vpack.c.b16 %v1548, %v1546
        %v1905 = vpack.c.b16 %v1549, %v1547
        %v1906 = vpack.c.b16 %v1552, %v1550
        %v1907 = vpack.c.b16 %v1553, %v1551
        %v1908 = vpack.c.b16 %v1556, %v1554
        %v1909 = vpack.c.b16 %v1557, %v1555
        %v1910 = vpack.c.b16 %v1560, %v1558
        %v1911 = vpack.c.b16 %v1561, %v1559
        %v1912 = vpack.c.b16 %v1564, %v1562
        %v1913 = vpack.c.b16 %v1565, %v1563
        %v1914 = vpack.c.b16 %v1568, %v1566
        %v1915 = vpack.c.b16 %v1569, %v1567
        %v1916 = vpack.c.b16 %v1572, %v1570
        %v1917 = vpack.c.b16 %v1573, %v1571
        %v1918 = vpack.c.b16 %v1576, %v1574
        %v1919 = vpack.c.b16 %v1577, %v1575
        %v1920 = vpack.c.b16 %v1580, %v1578
        %v1921 = vpack.c.b16 %v1581, %v1579
        %v1922 = vpack.c.b16 %v1584, %v1582
        %v1923 = vpack.c.b16 %v1585, %v1583
        %v1924 = vpack.c.b16 %v1588, %v1586
        %v1925 = vpack.c.b16 %v1589, %v1587
        %v1926 = vpack.c.b16 %v1592, %v1590
        %v1927 = vpack.c.b16 %v1593, %v1591
        %v1928 = vpack.c.b16 %v1596, %v1594
        %v1929 = vpack.c.b16 %v1597, %v1595
        %v1930 = vpack.c.b16 %v1600, %v1598
        %v1931 = vpack.c.b16 %v1601, %v1599
        %v1932 = vpack.c.b16 %v1604, %v1602
        %v1933 = vpack.c.b16 %v1605, %v1603
        %v1934 = vpack.c.b16 %v1608, %v1606
        %v1935 = vpack.c.b16 %v1609, %v1607
        %v1936 = vpack.c.b16 %v1612, %v1610
        %v1937 = vpack.c.b16 %v1613, %v1611
        %v1938 = vpack.c.b16 %v1616, %v1614
        %v1939 = vpack.c.b16 %v1617, %v1615
        %v1940 = vpack.c.b16 %v1620, %v1618
        %v1941 = vpack.c.b16 %v1621, %v1619
        %v1942 = vpack.c.b16 %v1624, %v1622
        %v1943 = vpack.c.b16 %v1625, %v1623
        %v1944 = vpack.c.b16 %v1628, %v1626
        %v1945 = vpack.c.b16 %v1629, %v1627
        %v1946 = vpack.c.b16 %v1632, %v1630
        %v1947 = vpack.c.b16 %v1633, %v1631
        %v1948 = vpack.c.b16 %v1636, %v1634
        %v1949 = vpack.c.b16 %v1637, %v1635
        %v1950 = vpack.c.b16 %v1640, %v1638
        %v1951 = vpack.c.b16 %v1641, %v1639
        %v1952 = vpack.c.b16 %v1644, %v1642
        %v1953 = vpack.c.b16 %v1645, %v1643
        %v1954 = vpack.c.b16 %v1648, %v1646
        %v1955 = vpack.c.b16 %v1649, %v1647
        %v1956 = vpack.c.b16 %v1652, %v1650
        %v1957 = vpack.c.b16 %v1653, %v1651
        %v1958 = vpack.c.b16 %v1656, %v1654
        %v1959 = vpack.c.b16 %v1657, %v1655
        %v1960 = vpack.c.b16 %v1660, %v1658
        %v1961 = vpack.c.b16 %v1661, %v1659
        %v1962 = vpack.c.b16 %v1664, %v1662
        %v1963 = vpack.c.b16 %v1665, %v1663
        %v1964 = vpack.c.b16 %v1668, %v1666
        %v1965 = vpack.c.b16 %v1669, %v1667
        %v1966 = vpack.c.b16 %v1672, %v1670
        %v1967 = vpack.c.b16 %v1673, %v1671
        %v1968 = vpack.c.b16 %v1676, %v1674
        %v1969 = vpack.c.b16 %v1677, %v1675
        %v1970 = vpack.c.b16 %v1680, %v1678
        %v1971 = vpack.c.b16 %v1681, %v1679
        %v1972 = vpack.c.b16 %v1684, %v1682
        %v1973 = vpack.c.b16 %v1685, %v1683
        %v1974 = vpack.c.b16 %v1688, %v1686
        %v1975 = vpack.c.b16 %v1689, %v1687
        %v1976 = vpack.c.b16 %v1692, %v1690
        %v1977 = vpack.c.b16 %v1693, %v1691
        %v1978 = vpack.c.b16 %v1696, %v1694
        %v1979 = vpack.c.b16 %v1697, %v1695
        %v1980 = vpack.c.b16 %v1700, %v1698
        %v1981 = vpack.c.b16 %v1701, %v1699
        %v1982 = vpack.c.b16 %v1704, %v1702
        %v1983 = vpack.c.b16 %v1705, %v1703
        %v1984 = vpack.c.b16 %v1708, %v1706
        %v1985 = vpack.c.b16 %v1709, %v1707
        %v1986 = vpack.c.b16 %v1712, %v1710
        %v1987 = vpack.c.b16 %v1713, %v1711
        %v1988 = vpack.c.b16 %v1716, %v1714
        %v1989 = vpack.c.b16 %v1717, %v1715
        %v1990 = vpack.c.b16 %v1720, %v1718
        %v1991 = vpack.c.b16 %v1721, %v1719
        %v1992 = vpack.c.b16 %v1724, %v1722
        %v1993 = vpack.c.b16 %v1725, %v1723
        %v1994 = vpack.c.b16 %v1728, %v1726
        %v1995 = vpack.c.b16 %v1729, %v1727
        %v1996 = vpack.c.b16 %v1732, %v1730
        %v1997 = vpack.c.b16 %v1733, %v1731
        %v1998 = vpack.c.b16 %v1736, %v1734
        %v1999 = vpack.c.b16 %v1737, %v1735
        %v2000 = vpack.c.b16 %v1740, %v1738
        %v2001 = vpack.c.b16 %v1741, %v1739
        %v2002 = vpack.c.b16 %v1744, %v1742
        %v2003 = vpack.c.b16 %v1745, %v1743
        %v2004 = vpack.c.b16 %v1748, %v1746
        %v2005 = vpack.c.b16 %v1749, %v1747
        %v2006 = vpack.c.b16 %v1752, %v1750
        %v2007 = vpack.c.b16 %v1753, %v1751
        %v2008 = vpack.c.b16 %v1756, %v1754
        %v2009 = vpack.c.b16 %v1757, %v1755
        %v2010 = vpack.c.b16 %v1760, %v1758
        %v2011 = vpack.c.b16 %v1761, %v1759
        %v2012 = vpack.c.b16 %v1764, %v1762
        %v2013 = vpack.c.b16 %v1765, %v1763
        %v2014 = vpack.c.b16 %v1768, %v1766
        %v2015 = vpack.c.b16 %v1769, %v1767
        %v2016 = vpack.c.b16 %v1772, %v1770
        %v2017 = vpack.c.b16 %v1773, %v1771
        %v2018 = vpack.c.b16 %v1776, %v1774
        %v2019 = vpack.c.b16 %v1777, %v1775
        %v2020 = vpack.c.b16 %v1780, %v1778
        %v2021 = vpack.c.b16 %v1781, %v1779
        %v2022 = vpack.c.b16 %v1784, %v1782
        %v2023 = vpack.c.b16 %v1785, %v1783
        %v2024 = vpack.c.b16 %v1788, %v1786
        %v2025 = vpack.c.b16 %v1789, %v1787
        %v2026 = vpack.c.b16 %v1792, %v1790
        %v2027 = vpack.c.b16 %v1793, %v1791
        %v2028 = vpack.c.b16 %v1796, %v1794
        %v2029 = vpack.c.b16 %v1797, %v1795
        %v2030 = vpack.c.b16 %v1800, %v1798
        %v2031 = vpack.c.b16 %v1801, %v1799
        %v2032 = vpack.c.b16 %v1804, %v1802
        %v2033 = vpack.c.b16 %v1805, %v1803
        %v2034 = vpack.c.b16 %v1808, %v1806
        %v2035 = vpack.c.b16 %v1809, %v1807
        %v2036 = vpack.c.b16 %v1812, %v1810
        %v2037 = vpack.c.b16 %v1813, %v1811
        %v2038 = vpack.c.b16 %v1816, %v1814
        %v2039 = vpack.c.b16 %v1817, %v1815
        %v2040 = vpack.c.b16 %v1820, %v1818
        %v2041 = vpack.c.b16 %v1821, %v1819
        %v2042 = vpack.c.b16 %v1824, %v1822
        %v2043 = vpack.c.b16 %v1825, %v1823
        %v2044 = vpack.c.b16 %v1828, %v1826
        %v2045 = vpack.c.b16 %v1829, %v1827
        %v2046 = vpack.c.b16 %v1832, %v1830
        %v2047 = vpack.c.b16 %v1833, %v1831
        %v2048 = vpack.c.b16 %v1836, %v1834
        %v2049 = vpack.c.b16 %v1837, %v1835
        %v2050 = vpack.c.b16 %v1840, %v1838
        %v2051 = vpack.c.b16 %v1841, %v1839
        %v2052 = vpack.c.b16 %v1844, %v1842
        %v2053 = vpack.c.b16 %v1845, %v1843
        %v2054 = vpack.c.b16 %v1848, %v1846
        %v2055 = vpack.c.b16 %v1849, %v1847
        %v2056 = vpack.c.b16 %v1852, %v1850
        %v2057 = vpack.c.b16 %v1853, %v1851
        %v2058 = vpack.c.b16 %v1856, %v1854
        %v2059 = vpack.c.b16 %v1857, %v1855
        %v2060 = vpack.c.b16 %v1860, %v1858
        %v2061 = vpack.c.b16 %v1861, %v1859
        %v2062 = vpack.c.b16 %v1864, %v1862
        %v2063 = vpack.c.b16 %v1865, %v1863
        %v2064 = vpack.c.b16 %v1868, %v1866
        %v2065 = vpack.c.b16 %v1869, %v1867
        %v2066 = vpack.c.b16 %v1872, %v1870
        %v2067 = vpack.c.b16 %v1873, %v1871
        %v2068 = vpack.c.b16 %v1876, %v1874
        %v2069 = vpack.c.b16 %v1877, %v1875
        %2262 = vmatprep.subr.bf16.mxu0 %v1893
        %2263 = vmatpush1.bf16.msra.mxu0 %v1892
        %2264 = vmatprep.subr.bf16.mxu0 %v1891
        %2265 = vmatpush1.bf16.msra.mxu0 %v1890
        %2266 = vmatprep.subr.bf16.mxu0 %v1889
        %2267 = vmatpush1.bf16.msra.mxu0 %v1888
        %2268 = vmatprep.subr.bf16.mxu0 %v1887
        %2269 = vmatpush1.bf16.msra.mxu0 %v1886
        %2270 = vmatprep.subr.bf16.mxu0 %v1885
        %2271 = vmatpush1.bf16.msra.mxu0 %v1884
        %2272 = vmatprep.subr.bf16.mxu0 %v1883
        %2273 = vmatpush1.bf16.msra.mxu0 %v1882
        %2274 = vmatprep.subr.bf16.mxu0 %v1881
        %2275 = vmatpush1.bf16.msra.mxu0 %v1880
        %2276 = vmatprep.subr.bf16.mxu0 %v1879
        %2277 = vmatpush1.bf16.msra.mxu0 %v1878
        %2278 = vmatprep.subr.bf16.mxu0 %v1909
        %2279 = vmatpush2.bf16.msra.mxu0 %v1908
        %2280 = vmatprep.subr.bf16.mxu0 %v1907
        %2281 = vmatpush2.bf16.msra.mxu0 %v1906
        %2282 = vmatprep.subr.bf16.mxu0 %v1905
        %2283 = vmatpush2.bf16.msra.mxu0 %v1904
        %2284 = vmatprep.subr.bf16.mxu0 %v1903
        %2285 = vmatpush2.bf16.msra.mxu0 %v1902
        %2286 = vmatprep.subr.bf16.mxu0 %v1901
        %2287 = vmatpush2.bf16.msra.mxu0 %v1900
        %2288 = vmatprep.subr.bf16.mxu0 %v1899
        %2289 = vmatpush2.bf16.msra.mxu0 %v1898
        %2290 = vmatprep.subr.bf16.mxu0 %v1897
        %2291 = vmatpush2.bf16.msra.mxu0 %v1896
        %2292 = vmatprep.subr.bf16.mxu0 %v1895
        %2293 = vmatpush2.bf16.msra.mxu0 %v1894
        %2294 = vmatprep.mubr.bf16.mxu0 %v1279
        %2295 = vmatmul.mubr.bf16.gmra.mxu0 %v1278
        %v2296 = vpop.f32.mrf.mxu0
        %v2297 = vadd.f32 %v1235, %v2296
        %v2298 = vpop.f32.mrf.mxu0
        %v2299 = vadd.f32 %v1239, %v2298
        %v2300 = vpop.f32.mrf.mxu0
        %v2301 = vadd.f32 %v1235, %v2300
        %v2302 = vpop.f32.mrf.mxu0
        %v2303 = vadd.f32 %v1239, %v2302
        %2304 = vdwg.mxu0
        %2305 = vmatprep.subr.bf16.mxu0 %v1925
        %2306 = vmatpush1.bf16.msra.mxu0 %v1924
        %2307 = vmatprep.subr.bf16.mxu0 %v1923
        %2308 = vmatpush1.bf16.msra.mxu0 %v1922
        %2309 = vmatprep.subr.bf16.mxu0 %v1921
        %2310 = vmatpush1.bf16.msra.mxu0 %v1920
        %2311 = vmatprep.subr.bf16.mxu0 %v1919
        %2312 = vmatpush1.bf16.msra.mxu0 %v1918
        %2313 = vmatprep.subr.bf16.mxu0 %v1917
        %2314 = vmatpush1.bf16.msra.mxu0 %v1916
        %2315 = vmatprep.subr.bf16.mxu0 %v1915
        %2316 = vmatpush1.bf16.msra.mxu0 %v1914
        %2317 = vmatprep.subr.bf16.mxu0 %v1913
        %2318 = vmatpush1.bf16.msra.mxu0 %v1912
        %2319 = vmatprep.subr.bf16.mxu0 %v1911
        %2320 = vmatpush1.bf16.msra.mxu0 %v1910
        %2321 = vmatprep.subr.bf16.mxu0 %v1941
        %2322 = vmatpush2.bf16.msra.mxu0 %v1940
        %2323 = vmatprep.subr.bf16.mxu0 %v1939
        %2324 = vmatpush2.bf16.msra.mxu0 %v1938
        %2325 = vmatprep.subr.bf16.mxu0 %v1937
        %2326 = vmatpush2.bf16.msra.mxu0 %v1936
        %2327 = vmatprep.subr.bf16.mxu0 %v1935
        %2328 = vmatpush2.bf16.msra.mxu0 %v1934
        %2329 = vmatprep.subr.bf16.mxu0 %v1933
        %2330 = vmatpush2.bf16.msra.mxu0 %v1932
        %2331 = vmatprep.subr.bf16.mxu0 %v1931
        %2332 = vmatpush2.bf16.msra.mxu0 %v1930
        %2333 = vmatprep.subr.bf16.mxu0 %v1929
        %2334 = vmatpush2.bf16.msra.mxu0 %v1928
        %2335 = vmatprep.subr.bf16.mxu0 %v1927
        %2336 = vmatpush2.bf16.msra.mxu0 %v1926
        %2337 = vmatprep.mubr.bf16.mxu0 %v1281
        %2338 = vmatmul.mubr.bf16.gmra.mxu0 %v1280
        %v2339 = vpop.f32.mrf.mxu0
        %v2340 = vadd.f32 %v2297, %v2339
        %v2341 = vpop.f32.mrf.mxu0
        %v2342 = vadd.f32 %v2299, %v2341
        %v2343 = vpop.f32.mrf.mxu0
        %v2344 = vadd.f32 %v2301, %v2343
        %v2345 = vpop.f32.mrf.mxu0
        %v2346 = vadd.f32 %v2303, %v2345
        %2347 = vdwg.mxu0
        %2348 = vmatprep.subr.bf16.mxu0 %v1957
        %2349 = vmatpush1.bf16.msra.mxu0 %v1956
        %2350 = vmatprep.subr.bf16.mxu0 %v1955
        %2351 = vmatpush1.bf16.msra.mxu0 %v1954
        %2352 = vmatprep.subr.bf16.mxu0 %v1953
        %2353 = vmatpush1.bf16.msra.mxu0 %v1952
        %2354 = vmatprep.subr.bf16.mxu0 %v1951
        %2355 = vmatpush1.bf16.msra.mxu0 %v1950
        %2356 = vmatprep.subr.bf16.mxu0 %v1949
        %2357 = vmatpush1.bf16.msra.mxu0 %v1948
        %2358 = vmatprep.subr.bf16.mxu0 %v1947
        %2359 = vmatpush1.bf16.msra.mxu0 %v1946
        %2360 = vmatprep.subr.bf16.mxu0 %v1945
        %2361 = vmatpush1.bf16.msra.mxu0 %v1944
        %2362 = vmatprep.subr.bf16.mxu0 %v1943
        %2363 = vmatpush1.bf16.msra.mxu0 %v1942
        %2364 = vmatprep.subr.bf16.mxu0 %v1973
        %2365 = vmatpush2.bf16.msra.mxu0 %v1972
        %2366 = vmatprep.subr.bf16.mxu0 %v1971
        %2367 = vmatpush2.bf16.msra.mxu0 %v1970
        %2368 = vmatprep.subr.bf16.mxu0 %v1969
        %2369 = vmatpush2.bf16.msra.mxu0 %v1968
        %2370 = vmatprep.subr.bf16.mxu0 %v1967
        %2371 = vmatpush2.bf16.msra.mxu0 %v1966
        %2372 = vmatprep.subr.bf16.mxu0 %v1965
        %2373 = vmatpush2.bf16.msra.mxu0 %v1964
        %2374 = vmatprep.subr.bf16.mxu0 %v1963
        %2375 = vmatpush2.bf16.msra.mxu0 %v1962
        %2376 = vmatprep.subr.bf16.mxu0 %v1961
        %2377 = vmatpush2.bf16.msra.mxu0 %v1960
        %2378 = vmatprep.subr.bf16.mxu0 %v1959
        %2379 = vmatpush2.bf16.msra.mxu0 %v1958
        %2380 = vmatprep.mubr.bf16.mxu0 %v1283
        %2381 = vmatmul.mubr.bf16.gmra.mxu0 %v1282
        %v2382 = vpop.f32.mrf.mxu0
        %v2383 = vadd.f32 %v2340, %v2382
        %v2384 = vpop.f32.mrf.mxu0
        %v2385 = vadd.f32 %v2342, %v2384
        %v2386 = vpop.f32.mrf.mxu0
        %v2387 = vadd.f32 %v2344, %v2386
        %v2388 = vpop.f32.mrf.mxu0
        %v2389 = vadd.f32 %v2346, %v2388
        %2390 = vdwg.mxu0
        %2391 = vmatprep.subr.bf16.mxu0 %v1989
        %2392 = vmatpush1.bf16.msra.mxu0 %v1988
        %2393 = vmatprep.subr.bf16.mxu0 %v1987
        %2394 = vmatpush1.bf16.msra.mxu0 %v1986
        %2395 = vmatprep.subr.bf16.mxu0 %v1985
        %2396 = vmatpush1.bf16.msra.mxu0 %v1984
        %2397 = vmatprep.subr.bf16.mxu0 %v1983
        %2398 = vmatpush1.bf16.msra.mxu0 %v1982
        %2399 = vmatprep.subr.bf16.mxu0 %v1981
        %2400 = vmatpush1.bf16.msra.mxu0 %v1980
        %2401 = vmatprep.subr.bf16.mxu0 %v1979
        %2402 = vmatpush1.bf16.msra.mxu0 %v1978
        %2403 = vmatprep.subr.bf16.mxu0 %v1977
        %2404 = vmatpush1.bf16.msra.mxu0 %v1976
        %2405 = vmatprep.subr.bf16.mxu0 %v1975
        %2406 = vmatpush1.bf16.msra.mxu0 %v1974
        %2407 = vmatprep.subr.bf16.mxu0 %v2005
        %2408 = vmatpush2.bf16.msra.mxu0 %v2004
        %2409 = vmatprep.subr.bf16.mxu0 %v2003
        %2410 = vmatpush2.bf16.msra.mxu0 %v2002
        %2411 = vmatprep.subr.bf16.mxu0 %v2001
        %2412 = vmatpush2.bf16.msra.mxu0 %v2000
        %2413 = vmatprep.subr.bf16.mxu0 %v1999
        %2414 = vmatpush2.bf16.msra.mxu0 %v1998
        %2415 = vmatprep.subr.bf16.mxu0 %v1997
        %2416 = vmatpush2.bf16.msra.mxu0 %v1996
        %2417 = vmatprep.subr.bf16.mxu0 %v1995
        %2418 = vmatpush2.bf16.msra.mxu0 %v1994
        %2419 = vmatprep.subr.bf16.mxu0 %v1993
        %2420 = vmatpush2.bf16.msra.mxu0 %v1992
        %2421 = vmatprep.subr.bf16.mxu0 %v1991
        %2422 = vmatpush2.bf16.msra.mxu0 %v1990
        %2423 = vmatprep.mubr.bf16.mxu0 %v1285
        %2424 = vmatmul.mubr.bf16.gmra.mxu0 %v1284
        %v2425 = vpop.f32.mrf.mxu0
        %v2426 = vadd.f32 %v2383, %v2425
        %v2427 = vpop.f32.mrf.mxu0
        %v2428 = vadd.f32 %v2385, %v2427
        %v2429 = vpop.f32.mrf.mxu0
        %v2430 = vadd.f32 %v2387, %v2429
        %v2431 = vpop.f32.mrf.mxu0
        %v2432 = vadd.f32 %v2389, %v2431
        %2433 = vdwg.mxu0
        %2434 = vmatprep.subr.bf16.mxu0 %v2021
        %2435 = vmatpush1.bf16.msra.mxu0 %v2020
        %2436 = vmatprep.subr.bf16.mxu0 %v2019
        %2437 = vmatpush1.bf16.msra.mxu0 %v2018
        %2438 = vmatprep.subr.bf16.mxu0 %v2017
        %2439 = vmatpush1.bf16.msra.mxu0 %v2016
        %2440 = vmatprep.subr.bf16.mxu0 %v2015
        %2441 = vmatpush1.bf16.msra.mxu0 %v2014
        %2442 = vmatprep.subr.bf16.mxu0 %v2013
        %2443 = vmatpush1.bf16.msra.mxu0 %v2012
        %2444 = vmatprep.subr.bf16.mxu0 %v2011
        %2445 = vmatpush1.bf16.msra.mxu0 %v2010
        %2446 = vmatprep.subr.bf16.mxu0 %v2009
        %2447 = vmatpush1.bf16.msra.mxu0 %v2008
        %2448 = vmatprep.subr.bf16.mxu0 %v2007
        %2449 = vmatpush1.bf16.msra.mxu0 %v2006
        %2450 = vmatprep.subr.bf16.mxu0 %v2037
        %2451 = vmatpush2.bf16.msra.mxu0 %v2036
        %2452 = vmatprep.subr.bf16.mxu0 %v2035
        %2453 = vmatpush2.bf16.msra.mxu0 %v2034
        %2454 = vmatprep.subr.bf16.mxu0 %v2033
        %2455 = vmatpush2.bf16.msra.mxu0 %v2032
        %2456 = vmatprep.subr.bf16.mxu0 %v2031
        %2457 = vmatpush2.bf16.msra.mxu0 %v2030
        %2458 = vmatprep.subr.bf16.mxu0 %v2029
        %2459 = vmatpush2.bf16.msra.mxu0 %v2028
        %2460 = vmatprep.subr.bf16.mxu0 %v2027
        %2461 = vmatpush2.bf16.msra.mxu0 %v2026
        %2462 = vmatprep.subr.bf16.mxu0 %v2025
        %2463 = vmatpush2.bf16.msra.mxu0 %v2024
        %2464 = vmatprep.subr.bf16.mxu0 %v2023
        %2465 = vmatpush2.bf16.msra.mxu0 %v2022
        %2466 = vmatprep.mubr.bf16.mxu0 %v1287
        %2467 = vmatmul.mubr.bf16.gmra.mxu0 %v1286
        %v2468 = vpop.f32.mrf.mxu0
        %v2469 = vadd.f32 %v2426, %v2468
        %v2470 = vpop.f32.mrf.mxu0
        %v2471 = vadd.f32 %v2428, %v2470
        %v2472 = vpop.f32.mrf.mxu0
        %v2473 = vadd.f32 %v2430, %v2472
        %v2474 = vpop.f32.mrf.mxu0
        %v2475 = vadd.f32 %v2432, %v2474
        %2476 = vdwg.mxu0
        %2477 = vmatprep.subr.bf16.mxu0 %v2053
        %2478 = vmatpush1.bf16.msra.mxu0 %v2052
        %2479 = vmatprep.subr.bf16.mxu0 %v2051
        %2480 = vmatpush1.bf16.msra.mxu0 %v2050
        %2481 = vmatprep.subr.bf16.mxu0 %v2049
        %2482 = vmatpush1.bf16.msra.mxu0 %v2048
        %2483 = vmatprep.subr.bf16.mxu0 %v2047
        %2484 = vmatpush1.bf16.msra.mxu0 %v2046
        %2485 = vmatprep.subr.bf16.mxu0 %v2045
        %2486 = vmatpush1.bf16.msra.mxu0 %v2044
        %2487 = vmatprep.subr.bf16.mxu0 %v2043
        %2488 = vmatpush1.bf16.msra.mxu0 %v2042
        %2489 = vmatprep.subr.bf16.mxu0 %v2041
        %2490 = vmatpush1.bf16.msra.mxu0 %v2040
        %2491 = vmatprep.subr.bf16.mxu0 %v2039
        %2492 = vmatpush1.bf16.msra.mxu0 %v2038
        %2493 = vmatprep.subr.bf16.mxu0 %v2069
        %2494 = vmatpush2.bf16.msra.mxu0 %v2068
        %2495 = vmatprep.subr.bf16.mxu0 %v2067
        %2496 = vmatpush2.bf16.msra.mxu0 %v2066
        %2497 = vmatprep.subr.bf16.mxu0 %v2065
        %2498 = vmatpush2.bf16.msra.mxu0 %v2064
        %2499 = vmatprep.subr.bf16.mxu0 %v2063
        %2500 = vmatpush2.bf16.msra.mxu0 %v2062
        %2501 = vmatprep.subr.bf16.mxu0 %v2061
        %2502 = vmatpush2.bf16.msra.mxu0 %v2060
        %2503 = vmatprep.subr.bf16.mxu0 %v2059
        %2504 = vmatpush2.bf16.msra.mxu0 %v2058
        %2505 = vmatprep.subr.bf16.mxu0 %v2057
        %2506 = vmatpush2.bf16.msra.mxu0 %v2056
        %2507 = vmatprep.subr.bf16.mxu0 %v2055
        %2508 = vmatpush2.bf16.msra.mxu0 %v2054
        %2509 = vmatprep.mubr.bf16.mxu0 %v1289
        %2510 = vmatmul.mubr.bf16.gmra.mxu0 %v1288
        %v2511 = vpop.f32.mrf.mxu0
        %v2512 = vadd.f32 %v2469, %v2511
        %v2513 = vpop.f32.mrf.mxu0
        %v2514 = vadd.f32 %v2471, %v2513
        %v2515 = vpop.f32.mrf.mxu0
        %v2516 = vadd.f32 %v2473, %v2515
        %v2517 = vpop.f32.mrf.mxu0
        %v2518 = vadd.f32 %v2475, %v2517
        %2519 = vdwg.mxu0
        %v2520 = vmax.f32 %v2512, 0.0
        %v2521 = vmax.f32 %v2514, 0.0
        %v2522 = vmax.f32 %v2516, 0.0
        %v2523 = vmax.f32 %v2518, 0.0
        %v2524 = vpack.c.bf16 %v2522, %v2520
        %v2525 = vpack.c.bf16 %v2523, %v2521
        %v2528 = vunpack.c.l.b16 %v2524
        %v2529 = vunpack.c.l.b16 %v2525
        %v2530 = vunpack.c.h.b16 %v2524
        %v2531 = vunpack.c.h.b16 %v2525
        %v2532 = vpack.c.b16 %v2529, %v2528
        %v2533 = vpack.c.b16 %v2531, %v2530
        %2536 = vst [vmem:[%s1010] sm:$0xff] %v2532
        %2537 = vst [vmem:[%s1010 + $0x8] sm:$0xff] %v2533
        %s2538 = sand.u32 %s114, 1
        %s2539 = sand.u32 %s114, 1
        %s2540 = smul.addr %s2539, 16
        %s2541 = scalar_lea.vmem [#allocation3], %s2540
        // Predicated region
        $region71: #{vgg19ca_forward.6} parent=65 // pred_check
          %p2542 = pneg %p124
        $region72: #{vgg19ca_forward.6} parent=65 // pred_check_branch
          %2544 = sbr.rel (%p2542) target = $region74
        $region73: #{vgg19ca_forward.6} parent=65 // pred_region
          %s2545 = smul.u32 2, %s18
          %s2546 = smul.u32 2, %s19
          %s2547 = smul.addr %s2545, 4
          %s2548 = sadd.s32 %s2546, %s2547
          %s2549 = smul.addr %s2548, 4
          %s2550 = scalar_lea.vmem %s3, %s2549
          // Predicated region
          $region75: #{vgg19ca_forward.6} parent=73 // pred_check
            _
          $region76: #{vgg19ca_forward.6} parent=73 // pred_check_branch
            %2552 = sbr.rel (0) target = $region78
          $region77: #{vgg19ca_forward.6} parent=73 // pred_region
            // Predicated region
            $region79: #{vgg19ca_forward.6} parent=77 // pred_check
              _
            $region80: #{vgg19ca_forward.6} parent=77 // pred_check_branch
              %2554 = sbr.rel (0) target = $region82
            $region81: #{vgg19ca_forward.6} parent=77 // pred_region
              // Predicated region
              $region94: #{vgg19ca_forward.6} parent=81 // pred_check
                _
              $region95: #{vgg19ca_forward.6} parent=81 // pred_check_branch
                %2572 = sbr.rel (0) target = $region97
              $region96: #{vgg19ca_forward.6} parent=81 // pred_region
                loop: start=0, step=1, limit=1
                $region98: #{vgg19ca_forward.6} parent=96 // loop_pre_header
                  _
                $region99: #{vgg19ca_forward.6} parent=96 // loop_header
                  %s2574 = sphi 0, %s2578
                  %p2575 = scmp.ge.s32.totalorder %s2574, 1
                  %s2579 = sphi %s2541, %s2541
                  %s2580 = sphi %s2550, %s2550
                $region100: #{vgg19ca_forward.6} parent=96 // loop_header_branch
                  %2577 = sbr.rel (%p2575) target = $region104
                $region101: #{vgg19ca_forward.6} parent=96 // loop_body
                  %v2581 = vld [vmem:[%s2579] sm:$0xff]
                  %2582 = vst [vmem:[%s2580] sm:$0xff] %v2581
                  %v2583 = vld [vmem:[%s2579 + $0x8] sm:$0xff]
                  %2584 = vst [vmem:[%s2580 + $0x10] sm:$0xff] %v2583
                $region102: #{vgg19ca_forward.6} parent=96 // loop_footer
                  %s2578 = sadd.s32 1, %s2574
                $region103: #{vgg19ca_forward.6} parent=96 // loop_footer_branch
                  %2573 = sbr.rel target = $region99
                $region104: #{vgg19ca_forward.6} parent=96 // loop_exit
                  _
              $region97: #{vgg19ca_forward.6} parent=81 // pred_fallthru
                _
              // Predicated region
              $region105: #{vgg19ca_forward.6} parent=81 // pred_check
                _
              $region106: #{vgg19ca_forward.6} parent=81 // pred_check_branch
                %2586 = sbr.rel target = $region108
              $region107: #{vgg19ca_forward.6} parent=81 // pred_region
                _
              $region108: #{vgg19ca_forward.6} parent=81 // pred_fallthru
                _
            $region82: #{vgg19ca_forward.6} parent=77 // pred_fallthru
              _
            // Predicated region
            $region83: #{vgg19ca_forward.6} parent=77 // pred_check
              _
            $region84: #{vgg19ca_forward.6} parent=77 // pred_check_branch
              %2556 = sbr.rel target = $region86
            $region85: #{vgg19ca_forward.6} parent=77 // pred_region
              %s2558 = ssub.s32 256, 1
              loop: start=0, step=1, limit=1
              $region87: #{vgg19ca_forward.6} parent=85 // loop_pre_header
                _
              $region88: #{vgg19ca_forward.6} parent=85 // loop_header
                %s2560 = sphi 0, %s2564
                %p2561 = scmp.ge.s32.totalorder %s2560, 1
                %s2565 = sphi %s2541, %s2541
                %s2566 = sphi %s2550, %s2550
              $region89: #{vgg19ca_forward.6} parent=85 // loop_header_branch
                %2563 = sbr.rel (%p2561) target = $region93
              $region90: #{vgg19ca_forward.6} parent=85 // loop_body
                %v2567 = vld [vmem:[%s2565] sm:%s2558]
                %2568 = vst [vmem:[%s2566] sm:%s2558] %v2567
                %v2569 = vld [vmem:[%s2565 + $0x8] sm:%s2558]
                %2570 = vst [vmem:[%s2566 + $0x10] sm:%s2558] %v2569
              $region91: #{vgg19ca_forward.6} parent=85 // loop_footer
                %s2564 = sadd.s32 1, %s2560
              $region92: #{vgg19ca_forward.6} parent=85 // loop_footer_branch
                %2559 = sbr.rel target = $region88
              $region93: #{vgg19ca_forward.6} parent=85 // loop_exit
                _
            $region86: #{vgg19ca_forward.6} parent=77 // pred_fallthru
              _
          $region78: #{vgg19ca_forward.6} parent=73 // pred_fallthru
            _
          %2587 = vnop
        $region74: #{vgg19ca_forward.6} parent=65 // pred_fallthru
          _
      $region66: #{vgg19ca_forward.6} parent=5 // pred_fallthru
        _
      %p2588 = scmp.le.s32.totalorder 2, %s9
      // Predicated region
      $region109: #{vgg19ca_forward.6} parent=5 // pred_check
        %p2589 = pneg %p2588
      $region110: #{vgg19ca_forward.6} parent=5 // pred_check_branch
        %2591 = sbr.rel (%p2589) target = $region112
      $region111: #{vgg19ca_forward.6} parent=5 // pred_region
        %s2592 = ssub.s32 %s9, 2
        // Predicated region
        $region113: #{vgg19ca_forward.6} parent=111 // pred_check
          %p2593 = pneg %p130
        $region114: #{vgg19ca_forward.6} parent=111 // pred_check_branch
          %2595 = sbr.rel (%p2593) target = $region116
        $region115: #{vgg19ca_forward.6} parent=111 // pred_region
          %s2596 = sand.u32 %s115, 1
          %s2597 = sand.u32 %s115, 1
          %s2598 = smul.addr %s2597, 16
          %s2599 = scalar_lea.vmem [#allocation3], %s2598
        $region116: #{vgg19ca_forward.6} parent=111 // pred_fallthru
          _
      $region112: #{vgg19ca_forward.6} parent=5 // pred_fallthru
        _
    $region6: #{vgg19ca_forward.6} parent=1 // loop_footer
      %s13 = sadd.s32 1, %s9
    $region7: #{vgg19ca_forward.6} parent=1 // loop_footer_branch
      %8 = sbr.rel target = $region3
    $region8: #{vgg19ca_forward.6} parent=1 // loop_exit
      _

</llo_original>
